<compile_context>
chip_gen: v5e
topology: v5e:2x2
jax: 0.10.0
libtpu: 0.0.40
codegen_flags: <defaults>
</compile_context>

<pallas_src>
import functools
import math

import jax
import jax.numpy as jnp
from jax.experimental import pallas as pl
from jax.experimental.pallas import tpu as pltpu

PI = math.pi
PHI_SCALE = PI       # phi_max - phi_min = pi/2 - (-pi/2)
PHI_EPS = 1e-6       # keep phi away from +-pi/2 so tan stays finite


# ----------------------------------------------------------------------------
# Fused kernel: reverse 2-layer GRU + linear head + SphereSurfaceModel MLP
#               + Riemann-sphere -> complex map + Fourier ILT line integral
# ----------------------------------------------------------------------------
def neural_laplace_kernel(
    # reversed, time-major trajectory (time feature appended), rows = t*B + b
    x_ref,
    # GRU layer 1 (per-gate, lane-aligned)
    w1r_i, w1z_i, w1n_i, w1r_h, w1z_h, w1n_h, b1r, b1z, b1ni, b1nh,
    # GRU layer 2
    w2r_i, w2z_i, w2n_i, w2r_h, w2z_h, w2n_h, b2r, b2z, b2ni, b2nh,
    # linear_out head
    wout, bout,
    # SphereSurfaceModel MLP (layer-1 weight split: sphere-coord part / latent part)
    w1s, w1p, bm1, wm2, bm2, wm3, bm3,
    # ILT constants
    sph_ref, cosw_ref, sinw_ref, scale_ref,
    out_ref,
):
    f32 = jnp.float32
    dot = functools.partial(jnp.dot, preferred_element_type=f32)

    Tp = sph_ref.shape[0]
    M, OD = out_ref.shape          # M = B * Tp
    B = M // Tp
    T = x_ref.shape[0] // B
    H = w1r_h.shape[0]
    S = sph_ref.shape[1] // 2

    # ---------------- GRU encoder ----------------
    # Hoisted layer-1 input projection: one matmul per gate for ALL timesteps.
    x = x_ref[...]                                   # (T*B, Din)
    gi_r = dot(x, w1r_i[...]) + b1r[...]             # bias = b_ih_r + b_hh_r (folded)
    gi_z = dot(x, w1z_i[...]) + b1z[...]
    gi_n = dot(x, w1n_i[...]) + b1ni[...]            # b_hh_n stays inside r*(.)

    # Hoist all weight/bias reads out of the recurrence.
    W1r, W1z, W1n, B1nh = w1r_h[...], w1z_h[...], w1n_h[...], b1nh[...]
    U2r, U2z, U2n = w2r_i[...], w2z_i[...], w2n_i[...]
    W2r, W2z, W2n = w2r_h[...], w2z_h[...], w2n_h[...]
    B2r, B2z, B2ni, B2nh = b2r[...], b2z[...], b2ni[...], b2nh[...]

    def gru_cell(gir, giz, gin, h, Wr, Wz, Wn, Bnh, first):
        if first:
            # h == 0: recurrent matmuls vanish (r/z hidden biases already folded).
            r = jax.nn.sigmoid(gir)
            z = jax.nn.sigmoid(giz)
            n = jnp.tanh(gin + r * Bnh)
            return (1.0 - z) * n
        r = jax.nn.sigmoid(gir + dot(h, Wr))
        z = jax.nn.sigmoid(giz + dot(h, Wz))
        n = jnp.tanh(gin + r * (dot(h, Wn) + Bnh))
        return (1.0 - z) * n + z * h

    h1 = jnp.zeros((B, H), f32)
    h2 = jnp.zeros((B, H), f32)
    # T is small and static -> full unroll for cross-step scheduler visibility.
    for t in range(T):
        lo = t * B
        h1 = gru_cell(gi_r[lo:lo + B], gi_z[lo:lo + B], gi_n[lo:lo + B],
                      h1, W1r, W1z, W1n, B1nh, first=(t == 0))
        g2r = dot(h1, U2r) + B2r
        g2z = dot(h1, U2z) + B2z
        g2n = dot(h1, U2n) + B2ni
        h2 = gru_cell(g2r, g2z, g2n, h2, W2r, W2z, W2n, B2nh, first=(t == 0))

    p = dot(h2, wout[...]) + bout[...]               # (B, latent)

    # ---------------- SphereSurfaceModel MLP ----------------
    # Layer 1 split: sphere-coordinate part is batch independent.
    A = dot(sph_ref[...], w1s[...]) + bm1[...]       # (Tp, HU)
    Bp = dot(p, w1p[...])                            # (B, HU)
    # rows are b-major: m = b*Tp + t_idx
    h1m = jnp.tanh(jnp.concatenate([A + Bp[b:b + 1, :] for b in range(B)], axis=0))
    h2m = jnp.tanh(dot(h1m, wm2[...]) + bm2[...])
    o = dot(h2m, wm3[...]) + bm3[...]                # (M, 2*OD*S)

    half = OD * S
    theta = jnp.tanh(o[:, :half]) * PI
    phi = jnp.tanh(o[:, half:]) * (PHI_SCALE / 2.0) - PI / 2.0 + PHI_SCALE / 2.0
    phi = jnp.clip(phi, -PI / 2.0 + PHI_EPS, PI / 2.0 - PHI_EPS)

    # Riemann sphere -> complex plane: s = tan(pi/4 + phi/2) * exp(i*theta)
    a = 0.5 * phi + PI / 4.0
    rad = jnp.sin(a) * pl.reciprocal(jnp.cos(a), approx=True)
    fr = rad * jnp.cos(theta)
    fi = rad * jnp.sin(theta)

    # Fourier-series ILT: sum_k w_k * Re(F_k * exp(i k pi t / T)), then row scale.
    contrib = fr * cosw_ref[...] - fi * sinw_ref[...]          # (M, OD*S)
    summed = jnp.concatenate(
        [jnp.sum(contrib[:, d * S:(d + 1) * S], axis=1, keepdims=True)
         for d in range(OD)], axis=1)                          # (M, OD)
    out_ref[...] = summed * scale_ref[...]                     # 2 e^{sigma t}/T per row


# ----------------------------------------------------------------------------
# Forward wrapper (wrapper does only tiny per-call constant prep)
# ----------------------------------------------------------------------------
def neural_laplace_forward(observed_data, observed_tp, tp_to_predict, params,
                           s_dim, output_dim, alpha=1e-3, eps_tol=1e-6, nu=2.0):
    B, T_obs, _ = observed_data.shape
    Tp = tp_to_predict.shape[0]

    # ReverseGRUEncoder glue: append time feature, reverse, go time-major, flatten.
    tp_feat = jnp.broadcast_to(observed_tp[None, :, None].astype(jnp.float32),
                               (B, T_obs, 1))
    trajs = jnp.concatenate([observed_data.astype(jnp.float32), tp_feat], axis=2)
    x_tm = jnp.transpose(jnp.flip(trajs, axis=1), (1, 0, 2))     # (T, B, Din)
    x_flat = x_tm.reshape(T_obs * B, -1)                         # rows = t*B + b

    # Fourier ILT query points: s_k(t) = sigma(t) + i*k*pi/T(t), T = nu*t.
    t = tp_to_predict.astype(jnp.float32)
    T_ = nu * t
    sigma = alpha - math.log(eps_tol) / T_
    k = jnp.arange(s_dim, dtype=jnp.float32)
    s_real = jnp.broadcast_to(sigma[:, None], (Tp, s_dim))
    s_imag = PI * k[None, :] / T_[:, None]
    theta_s = jnp.arctan2(s_imag, s_real)
    phi_s = 2.0 * jnp.arctan(jnp.sqrt(s_real ** 2 + s_imag ** 2)) - PI / 2.0
    sph = jnp.concatenate([theta_s, phi_s], axis=1)              # (Tp, 2S)

    # ILT reconstruction weights: ang = pi*k*t/T = pi*k/nu (t-independent); k=0 halved.
    ang = PI * k / nu
    wk = jnp.where(k == 0, 0.5, 1.0)
    cosw = jnp.tile((wk * jnp.cos(ang))[None, :], (1, output_dim))   # (1, OD*S)
    sinw = jnp.tile((wk * jnp.sin(ang))[None, :], (1, output_dim))
    # Per-row scale 2*e^{sigma t}/T (rows are b-major: m = b*Tp + t_idx).
    scale_rows = jnp.tile((2.0 * jnp.exp(sigma * t) / T_)[:, None], (B, 1))

    g, m = params["gru"], params["mlp"]
    args = (x_flat,
            g["w1r_i"], g["w1z_i"], g["w1n_i"], g["w1r_h"], g["w1z_h"], g["w1n_h"],
            g["b1r"], g["b1z"], g["b1ni"], g["b1nh"],
            g["w2r_i"], g["w2z_i"], g["w2n_i"], g["w2r_h"], g["w2z_h"], g["w2n_h"],
            g["b2r"], g["b2z"], g["b2ni"], g["b2nh"],
            g["wout"], g["bout"],
            m["w1s"], m["w1p"], m["b1"], m["w2"], m["b2"], m["w3"], m["b3"],
            sph, cosw, sinw, scale_rows)

    vmem = pl.BlockSpec(memory_space=pltpu.MemorySpace.VMEM)
    out = pl.pallas_call(
        neural_laplace_kernel,
        out_shape=jax.ShapeDtypeStruct((B * Tp, output_dim), jnp.float32),
        in_specs=[vmem] * len(args),
        out_specs=vmem,
    )(*args)
    return out.reshape(B, Tp, output_dim)


# ----------------------------------------------------------------------------
# Parameter init (deterministic; per-gate, kernel-ready layout)
# ----------------------------------------------------------------------------
def _uniform(key, shape, bound):
    return jax.random.uniform(key, shape, jnp.float32, -bound, bound)


def _xavier(key, fan_in, fan_out):
    bound = math.sqrt(6.0 / (fan_in + fan_out))
    return _uniform(key, (fan_in, fan_out), bound)


def init_params(key, din_gru, H, latent_dim, s_dim, output_dim, hidden_units):
    ks = iter(jax.random.split(key, 64))
    kb = 1.0 / math.sqrt(H)

    def gru_layer(din, prefix):
        w_i = {n: _uniform(next(ks), (din, H), kb) for n in "rzn"}
        w_h = {n: _uniform(next(ks), (H, H), kb) for n in "rzn"}
        b_i = {n: _uniform(next(ks), (1, H), kb) for n in "rzn"}
        b_h = {n: _uniform(next(ks), (1, H), kb) for n in "rzn"}
        return {
            f"{prefix}r_i": w_i["r"], f"{prefix}z_i": w_i["z"], f"{prefix}n_i": w_i["n"],
            f"{prefix}r_h": w_h["r"], f"{prefix}z_h": w_h["z"], f"{prefix}n_h": w_h["n"],
            # r/z biases pre-folded (b_ih + b_hh); n-gate hidden bias kept separate
            # because PyTorch applies it inside r * (W_hn h + b_hn).
            f"{prefix}r": b_i["r"] + b_h["r"], f"{prefix}z": b_i["z"] + b_h["z"],
            f"{prefix}ni": b_i["n"], f"{prefix}nh": b_h["n"],
        }

    gru = {}
    gru.update({("w" + k[1:]) if k[1] == "1" or True else k: v  # keep names as built
                for k, v in gru_layer(din_gru, "1").items()})
    # fix names: gru_layer("1") produced keys like "1r_i"; prepend w/b properly
    gru = {}
    l1 = gru_layer(din_gru, "1")
    l2 = gru_layer(H, "2")
    for k, v in {**l1, **l2}.items():
        gru[("w" + k) if "_" in k else ("b" + k)] = v
    gru["wout"] = _xavier(next(ks), H, latent_dim)
    gru["bout"] = _uniform(next(ks), (1, latent_dim), kb)

    in_mlp = s_dim * 2 + latent_dim
    out_mlp = s_dim * 2 * output_dim
    w1_full = _xavier(next(ks), in_mlp, hidden_units)
    mlp = {
        "w1s": w1_full[:s_dim * 2],              # sphere-coordinate input rows
        "w1p": w1_full[s_dim * 2:],              # latent-encoding input rows
        "b1": _uniform(next(ks), (1, hidden_units), 1.0 / math.sqrt(in_mlp)),
        "w2": _xavier(next(ks), hidden_units, hidden_units),
        "b2": _uniform(next(ks), (1, hidden_units), 1.0 / math.sqrt(hidden_units)),
        "w3": _xavier(next(ks), hidden_units, out_mlp),
        "b3": _uniform(next(ks), (1, out_mlp), 1.0 / math.sqrt(hidden_units)),
    }
    return {"gru": gru, "mlp": mlp}


# ----------------------------------------------------------------------------
if __name__ == "__main__":
    # Small shapes consistent with the module defaults.
    B, T_obs, input_dim = 2, 8, 3
    output_dim, latent_dim, hidden_units, s_dim = 2, 2, 64, 33
    Tp = 8
    H = hidden_units // 2     # ReverseGRUEncoder uses hidden_units // 2

    key = jax.random.PRNGKey(0)
    k_data, k_param = jax.random.split(key)
    observed_data = jax.random.normal(k_data, (B, T_obs, input_dim), jnp.float32)
    observed_tp = jnp.linspace(0.1, 1.0, T_obs, dtype=jnp.float32)
    tp_to_predict = jnp.linspace(0.5, 1.5, Tp, dtype=jnp.float32)

    params = init_params(k_param, din_gru=input_dim + 1, H=H,
                         latent_dim=latent_dim, s_dim=s_dim,
                         output_dim=output_dim, hidden_units=hidden_units)

    fwd = jax.jit(functools.partial(neural_laplace_forward,
                                    s_dim=s_dim, output_dim=output_dim))
    out = jax.block_until_ready(fwd(observed_data, observed_tp, tp_to_predict, params))
    assert out.shape == (B, Tp, output_dim)
    assert bool(jnp.all(jnp.isfinite(out)))
    print("KERNEL_OK")
</pallas_src>

<mosaic_0001>
module attributes {stable_mosaic.version = 11 : i64} {
  func.func @neural_laplace_kernel(%arg0: memref<16x4xf32, #tpu.memory_space<vmem>>, %arg1: memref<4x32xf32, #tpu.memory_space<vmem>>, %arg2: memref<4x32xf32, #tpu.memory_space<vmem>>, %arg3: memref<4x32xf32, #tpu.memory_space<vmem>>, %arg4: memref<32x32xf32, #tpu.memory_space<vmem>>, %arg5: memref<32x32xf32, #tpu.memory_space<vmem>>, %arg6: memref<32x32xf32, #tpu.memory_space<vmem>>, %arg7: memref<1x32xf32, #tpu.memory_space<vmem>>, %arg8: memref<1x32xf32, #tpu.memory_space<vmem>>, %arg9: memref<1x32xf32, #tpu.memory_space<vmem>>, %arg10: memref<1x32xf32, #tpu.memory_space<vmem>>, %arg11: memref<32x32xf32, #tpu.memory_space<vmem>>, %arg12: memref<32x32xf32, #tpu.memory_space<vmem>>, %arg13: memref<32x32xf32, #tpu.memory_space<vmem>>, %arg14: memref<32x32xf32, #tpu.memory_space<vmem>>, %arg15: memref<32x32xf32, #tpu.memory_space<vmem>>, %arg16: memref<32x32xf32, #tpu.memory_space<vmem>>, %arg17: memref<1x32xf32, #tpu.memory_space<vmem>>, %arg18: memref<1x32xf32, #tpu.memory_space<vmem>>, %arg19: memref<1x32xf32, #tpu.memory_space<vmem>>, %arg20: memref<1x32xf32, #tpu.memory_space<vmem>>, %arg21: memref<32x2xf32, #tpu.memory_space<vmem>>, %arg22: memref<1x2xf32, #tpu.memory_space<vmem>>, %arg23: memref<66x64xf32, #tpu.memory_space<vmem>>, %arg24: memref<2x64xf32, #tpu.memory_space<vmem>>, %arg25: memref<1x64xf32, #tpu.memory_space<vmem>>, %arg26: memref<64x64xf32, #tpu.memory_space<vmem>>, %arg27: memref<1x64xf32, #tpu.memory_space<vmem>>, %arg28: memref<64x132xf32, #tpu.memory_space<vmem>>, %arg29: memref<1x132xf32, #tpu.memory_space<vmem>>, %arg30: memref<8x66xf32, #tpu.memory_space<vmem>>, %arg31: memref<1x66xf32, #tpu.memory_space<vmem>>, %arg32: memref<1x66xf32, #tpu.memory_space<vmem>>, %arg33: memref<16x1xf32, #tpu.memory_space<vmem>>, %arg34: memref<16x2xf32, #tpu.memory_space<vmem>>) attributes {dimension_semantics = [], scalar_prefetch = 0 : i64, scratch_operands = 0 : i64, tpu.core_type = #tpu.core_type<tc>} {
    %c0 = arith.constant 0 : index
    %c0_0 = arith.constant 0 : index
    %0 = vector.load %arg0[%c0, %c0_0] : memref<16x4xf32, #tpu.memory_space<vmem>>, vector<16x4xf32>
    %c0_1 = arith.constant 0 : index
    %c0_2 = arith.constant 0 : index
    %1 = vector.load %arg1[%c0_1, %c0_2] : memref<4x32xf32, #tpu.memory_space<vmem>>, vector<4x32xf32>
    %cst = arith.constant dense<0.000000e+00> : vector<16x32xf32>
    %2 = tpu.matmul %0, %1, %cst {dimension_numbers = #tpu.dot_dimension_numbers<[1], [0], [0], [1], [0, 0, 1, 1], [], []>} : vector<16x4xf32>, vector<4x32xf32>, vector<16x32xf32> -> vector<16x32xf32>
    %c0_3 = arith.constant 0 : index
    %c0_4 = arith.constant 0 : index
    %3 = vector.load %arg7[%c0_3, %c0_4] : memref<1x32xf32, #tpu.memory_space<vmem>>, vector<1x32xf32>
    %4 = vector.broadcast %3 : vector<1x32xf32> to vector<16x32xf32>
    %5 = arith.addf %2, %4 : vector<16x32xf32>
    %c0_5 = arith.constant 0 : index
    %c0_6 = arith.constant 0 : index
    %6 = vector.load %arg2[%c0_5, %c0_6] : memref<4x32xf32, #tpu.memory_space<vmem>>, vector<4x32xf32>
    %cst_7 = arith.constant dense<0.000000e+00> : vector<16x32xf32>
    %7 = tpu.matmul %0, %6, %cst_7 {dimension_numbers = #tpu.dot_dimension_numbers<[1], [0], [0], [1], [0, 0, 1, 1], [], []>} : vector<16x4xf32>, vector<4x32xf32>, vector<16x32xf32> -> vector<16x32xf32>
    %c0_8 = arith.constant 0 : index
    %c0_9 = arith.constant 0 : index
    %8 = vector.load %arg8[%c0_8, %c0_9] : memref<1x32xf32, #tpu.memory_space<vmem>>, vector<1x32xf32>
    %9 = vector.broadcast %8 : vector<1x32xf32> to vector<16x32xf32>
    %10 = arith.addf %7, %9 : vector<16x32xf32>
    %c0_10 = arith.constant 0 : index
    %c0_11 = arith.constant 0 : index
    %11 = vector.load %arg3[%c0_10, %c0_11] : memref<4x32xf32, #tpu.memory_space<vmem>>, vector<4x32xf32>
    %cst_12 = arith.constant dense<0.000000e+00> : vector<16x32xf32>
    %12 = tpu.matmul %0, %11, %cst_12 {dimension_numbers = #tpu.dot_dimension_numbers<[1], [0], [0], [1], [0, 0, 1, 1], [], []>} : vector<16x4xf32>, vector<4x32xf32>, vector<16x32xf32> -> vector<16x32xf32>
    %c0_13 = arith.constant 0 : index
    %c0_14 = arith.constant 0 : index
    %13 = vector.load %arg9[%c0_13, %c0_14] : memref<1x32xf32, #tpu.memory_space<vmem>>, vector<1x32xf32>
    %14 = vector.broadcast %13 : vector<1x32xf32> to vector<16x32xf32>
    %15 = arith.addf %12, %14 : vector<16x32xf32>
    %c0_15 = arith.constant 0 : index
    %c0_16 = arith.constant 0 : index
    %16 = vector.load %arg4[%c0_15, %c0_16] : memref<32x32xf32, #tpu.memory_space<vmem>>, vector<32x32xf32>
    %c0_17 = arith.constant 0 : index
    %c0_18 = arith.constant 0 : index
    %17 = vector.load %arg5[%c0_17, %c0_18] : memref<32x32xf32, #tpu.memory_space<vmem>>, vector<32x32xf32>
    %c0_19 = arith.constant 0 : index
    %c0_20 = arith.constant 0 : index
    %18 = vector.load %arg6[%c0_19, %c0_20] : memref<32x32xf32, #tpu.memory_space<vmem>>, vector<32x32xf32>
    %c0_21 = arith.constant 0 : index
    %c0_22 = arith.constant 0 : index
    %19 = vector.load %arg10[%c0_21, %c0_22] : memref<1x32xf32, #tpu.memory_space<vmem>>, vector<1x32xf32>
    %c0_23 = arith.constant 0 : index
    %c0_24 = arith.constant 0 : index
    %20 = vector.load %arg11[%c0_23, %c0_24] : memref<32x32xf32, #tpu.memory_space<vmem>>, vector<32x32xf32>
    %c0_25 = arith.constant 0 : index
    %c0_26 = arith.constant 0 : index
    %21 = vector.load %arg12[%c0_25, %c0_26] : memref<32x32xf32, #tpu.memory_space<vmem>>, vector<32x32xf32>
    %c0_27 = arith.constant 0 : index
    %c0_28 = arith.constant 0 : index
    %22 = vector.load %arg13[%c0_27, %c0_28] : memref<32x32xf32, #tpu.memory_space<vmem>>, vector<32x32xf32>
    %c0_29 = arith.constant 0 : index
    %c0_30 = arith.constant 0 : index
    %23 = vector.load %arg14[%c0_29, %c0_30] : memref<32x32xf32, #tpu.memory_space<vmem>>, vector<32x32xf32>
    %c0_31 = arith.constant 0 : index
    %c0_32 = arith.constant 0 : index
    %24 = vector.load %arg15[%c0_31, %c0_32] : memref<32x32xf32, #tpu.memory_space<vmem>>, vector<32x32xf32>
    %c0_33 = arith.constant 0 : index
    %c0_34 = arith.constant 0 : index
    %25 = vector.load %arg16[%c0_33, %c0_34] : memref<32x32xf32, #tpu.memory_space<vmem>>, vector<32x32xf32>
    %c0_35 = arith.constant 0 : index
    %c0_36 = arith.constant 0 : index
    %26 = vector.load %arg17[%c0_35, %c0_36] : memref<1x32xf32, #tpu.memory_space<vmem>>, vector<1x32xf32>
    %c0_37 = arith.constant 0 : index
    %c0_38 = arith.constant 0 : index
    %27 = vector.load %arg18[%c0_37, %c0_38] : memref<1x32xf32, #tpu.memory_space<vmem>>, vector<1x32xf32>
    %c0_39 = arith.constant 0 : index
    %c0_40 = arith.constant 0 : index
    %28 = vector.load %arg19[%c0_39, %c0_40] : memref<1x32xf32, #tpu.memory_space<vmem>>, vector<1x32xf32>
    %c0_41 = arith.constant 0 : index
    %c0_42 = arith.constant 0 : index
    %29 = vector.load %arg20[%c0_41, %c0_42] : memref<1x32xf32, #tpu.memory_space<vmem>>, vector<1x32xf32>
    %30 = vector.extract_strided_slice %5 {offsets = [0, 0], sizes = [2, 32], strides = [1, 1]} : vector<16x32xf32> to vector<2x32xf32>
    %31 = vector.extract_strided_slice %10 {offsets = [0, 0], sizes = [2, 32], strides = [1, 1]} : vector<16x32xf32> to vector<2x32xf32>
    %32 = vector.extract_strided_slice %15 {offsets = [0, 0], sizes = [2, 32], strides = [1, 1]} : vector<16x32xf32> to vector<2x32xf32>
    %33 = arith.negf %30 : vector<2x32xf32>
    %34 = math.exp %33 : vector<2x32xf32>
    %cst_43 = arith.constant 1.000000e+00 : f32
    %35 = vector.broadcast %cst_43 : f32 to vector<2x32xf32>
    %36 = arith.addf %35, %34 : vector<2x32xf32>
    %37 = arith.divf %35, %36 : vector<2x32xf32>
    %38 = arith.negf %31 : vector<2x32xf32>
    %39 = math.exp %38 : vector<2x32xf32>
    %cst_44 = arith.constant 1.000000e+00 : f32
    %40 = vector.broadcast %cst_44 : f32 to vector<2x32xf32>
    %41 = arith.addf %40, %39 : vector<2x32xf32>
    %42 = arith.divf %40, %41 : vector<2x32xf32>
    %43 = vector.broadcast %19 : vector<1x32xf32> to vector<2x32xf32>
    %44 = arith.mulf %37, %43 : vector<2x32xf32>
    %45 = arith.addf %32, %44 : vector<2x32xf32>
    %46 = math.tanh %45 : vector<2x32xf32>
    %cst_45 = arith.constant 1.000000e+00 : f32
    %47 = vector.broadcast %cst_45 : f32 to vector<2x32xf32>
    %48 = arith.subf %47, %42 : vector<2x32xf32>
    %49 = arith.mulf %48, %46 : vector<2x32xf32>
    %cst_46 = arith.constant dense<0.000000e+00> : vector<2x32xf32>
    %50 = tpu.matmul %49, %20, %cst_46 {dimension_numbers = #tpu.dot_dimension_numbers<[1], [0], [0], [1], [0, 0, 1, 1], [], []>} : vector<2x32xf32>, vector<32x32xf32>, vector<2x32xf32> -> vector<2x32xf32>
    %51 = vector.broadcast %26 : vector<1x32xf32> to vector<2x32xf32>
    %52 = arith.addf %50, %51 : vector<2x32xf32>
    %cst_47 = arith.constant dense<0.000000e+00> : vector<2x32xf32>
    %53 = tpu.matmul %49, %21, %cst_47 {dimension_numbers = #tpu.dot_dimension_numbers<[1], [0], [0], [1], [0, 0, 1, 1], [], []>} : vector<2x32xf32>, vector<32x32xf32>, vector<2x32xf32> -> vector<2x32xf32>
    %54 = vector.broadcast %27 : vector<1x32xf32> to vector<2x32xf32>
    %55 = arith.addf %53, %54 : vector<2x32xf32>
    %cst_48 = arith.constant dense<0.000000e+00> : vector<2x32xf32>
    %56 = tpu.matmul %49, %22, %cst_48 {dimension_numbers = #tpu.dot_dimension_numbers<[1], [0], [0], [1], [0, 0, 1, 1], [], []>} : vector<2x32xf32>, vector<32x32xf32>, vector<2x32xf32> -> vector<2x32xf32>
    %57 = vector.broadcast %28 : vector<1x32xf32> to vector<2x32xf32>
    %58 = arith.addf %56, %57 : vector<2x32xf32>
    %59 = arith.negf %52 : vector<2x32xf32>
    %60 = math.exp %59 : vector<2x32xf32>
    %cst_49 = arith.constant 1.000000e+00 : f32
    %61 = vector.broadcast %cst_49 : f32 to vector<2x32xf32>
    %62 = arith.addf %61, %60 : vector<2x32xf32>
    %63 = arith.divf %61, %62 : vector<2x32xf32>
    %64 = arith.negf %55 : vector<2x32xf32>
    %65 = math.exp %64 : vector<2x32xf32>
    %cst_50 = arith.constant 1.000000e+00 : f32
    %66 = vector.broadcast %cst_50 : f32 to vector<2x32xf32>
    %67 = arith.addf %66, %65 : vector<2x32xf32>
    %68 = arith.divf %66, %67 : vector<2x32xf32>
    %69 = vector.broadcast %29 : vector<1x32xf32> to vector<2x32xf32>
    %70 = arith.mulf %63, %69 : vector<2x32xf32>
    %71 = arith.addf %58, %70 : vector<2x32xf32>
    %72 = math.tanh %71 : vector<2x32xf32>
    %cst_51 = arith.constant 1.000000e+00 : f32
    %73 = vector.broadcast %cst_51 : f32 to vector<2x32xf32>
    %74 = arith.subf %73, %68 : vector<2x32xf32>
    %75 = arith.mulf %74, %72 : vector<2x32xf32>
    %76 = vector.extract_strided_slice %5 {offsets = [2, 0], sizes = [2, 32], strides = [1, 1]} : vector<16x32xf32> to vector<2x32xf32>
    %77 = vector.extract_strided_slice %10 {offsets = [2, 0], sizes = [2, 32], strides = [1, 1]} : vector<16x32xf32> to vector<2x32xf32>
    %78 = vector.extract_strided_slice %15 {offsets = [2, 0], sizes = [2, 32], strides = [1, 1]} : vector<16x32xf32> to vector<2x32xf32>
    %cst_52 = arith.constant dense<0.000000e+00> : vector<2x32xf32>
    %79 = tpu.matmul %49, %16, %cst_52 {dimension_numbers = #tpu.dot_dimension_numbers<[1], [0], [0], [1], [0, 0, 1, 1], [], []>} : vector<2x32xf32>, vector<32x32xf32>, vector<2x32xf32> -> vector<2x32xf32>
    %80 = arith.addf %76, %79 : vector<2x32xf32>
    %81 = arith.negf %80 : vector<2x32xf32>
    %82 = math.exp %81 : vector<2x32xf32>
    %cst_53 = arith.constant 1.000000e+00 : f32
    %83 = vector.broadcast %cst_53 : f32 to vector<2x32xf32>
    %84 = arith.addf %83, %82 : vector<2x32xf32>
    %85 = arith.divf %83, %84 : vector<2x32xf32>
    %cst_54 = arith.constant dense<0.000000e+00> : vector<2x32xf32>
    %86 = tpu.matmul %49, %17, %cst_54 {dimension_numbers = #tpu.dot_dimension_numbers<[1], [0], [0], [1], [0, 0, 1, 1], [], []>} : vector<2x32xf32>, vector<32x32xf32>, vector<2x32xf32> -> vector<2x32xf32>
    %87 = arith.addf %77, %86 : vector<2x32xf32>
    %88 = arith.negf %87 : vector<2x32xf32>
    %89 = math.exp %88 : vector<2x32xf32>
    %cst_55 = arith.constant 1.000000e+00 : f32
    %90 = vector.broadcast %cst_55 : f32 to vector<2x32xf32>
    %91 = arith.addf %90, %89 : vector<2x32xf32>
    %92 = arith.divf %90, %91 : vector<2x32xf32>
    %cst_56 = arith.constant dense<0.000000e+00> : vector<2x32xf32>
    %93 = tpu.matmul %49, %18, %cst_56 {dimension_numbers = #tpu.dot_dimension_numbers<[1], [0], [0], [1], [0, 0, 1, 1], [], []>} : vector<2x32xf32>, vector<32x32xf32>, vector<2x32xf32> -> vector<2x32xf32>
    %94 = vector.broadcast %19 : vector<1x32xf32> to vector<2x32xf32>
    %95 = arith.addf %93, %94 : vector<2x32xf32>
    %96 = arith.mulf %85, %95 : vector<2x32xf32>
    %97 = arith.addf %78, %96 : vector<2x32xf32>
    %98 = math.tanh %97 : vector<2x32xf32>
    %cst_57 = arith.constant 1.000000e+00 : f32
    %99 = vector.broadcast %cst_57 : f32 to vector<2x32xf32>
    %100 = arith.subf %99, %92 : vector<2x32xf32>
    %101 = arith.mulf %100, %98 : vector<2x32xf32>
    %102 = arith.mulf %92, %49 : vector<2x32xf32>
    %103 = arith.addf %101, %102 : vector<2x32xf32>
    %cst_58 = arith.constant dense<0.000000e+00> : vector<2x32xf32>
    %104 = tpu.matmul %103, %20, %cst_58 {dimension_numbers = #tpu.dot_dimension_numbers<[1], [0], [0], [1], [0, 0, 1, 1], [], []>} : vector<2x32xf32>, vector<32x32xf32>, vector<2x32xf32> -> vector<2x32xf32>
    %105 = vector.broadcast %26 : vector<1x32xf32> to vector<2x32xf32>
    %106 = arith.addf %104, %105 : vector<2x32xf32>
    %cst_59 = arith.constant dense<0.000000e+00> : vector<2x32xf32>
    %107 = tpu.matmul %103, %21, %cst_59 {dimension_numbers = #tpu.dot_dimension_numbers<[1], [0], [0], [1], [0, 0, 1, 1], [], []>} : vector<2x32xf32>, vector<32x32xf32>, vector<2x32xf32> -> vector<2x32xf32>
    %108 = vector.broadcast %27 : vector<1x32xf32> to vector<2x32xf32>
    %109 = arith.addf %107, %108 : vector<2x32xf32>
    %cst_60 = arith.constant dense<0.000000e+00> : vector<2x32xf32>
    %110 = tpu.matmul %103, %22, %cst_60 {dimension_numbers = #tpu.dot_dimension_numbers<[1], [0], [0], [1], [0, 0, 1, 1], [], []>} : vector<2x32xf32>, vector<32x32xf32>, vector<2x32xf32> -> vector<2x32xf32>
    %111 = vector.broadcast %28 : vector<1x32xf32> to vector<2x32xf32>
    %112 = arith.addf %110, %111 : vector<2x32xf32>
    %cst_61 = arith.constant dense<0.000000e+00> : vector<2x32xf32>
    %113 = tpu.matmul %75, %23, %cst_61 {dimension_numbers = #tpu.dot_dimension_numbers<[1], [0], [0], [1], [0, 0, 1, 1], [], []>} : vector<2x32xf32>, vector<32x32xf32>, vector<2x32xf32> -> vector<2x32xf32>
    %114 = arith.addf %106, %113 : vector<2x32xf32>
    %115 = arith.negf %114 : vector<2x32xf32>
    %116 = math.exp %115 : vector<2x32xf32>
    %cst_62 = arith.constant 1.000000e+00 : f32
    %117 = vector.broadcast %cst_62 : f32 to vector<2x32xf32>
    %118 = arith.addf %117, %116 : vector<2x32xf32>
    %119 = arith.divf %117, %118 : vector<2x32xf32>
    %cst_63 = arith.constant dense<0.000000e+00> : vector<2x32xf32>
    %120 = tpu.matmul %75, %24, %cst_63 {dimension_numbers = #tpu.dot_dimension_numbers<[1], [0], [0], [1], [0, 0, 1, 1], [], []>} : vector<2x32xf32>, vector<32x32xf32>, vector<2x32xf32> -> vector<2x32xf32>
    %121 = arith.addf %109, %120 : vector<2x32xf32>
    %122 = arith.negf %121 : vector<2x32xf32>
    %123 = math.exp %122 : vector<2x32xf32>
    %cst_64 = arith.constant 1.000000e+00 : f32
    %124 = vector.broadcast %cst_64 : f32 to vector<2x32xf32>
    %125 = arith.addf %124, %123 : vector<2x32xf32>
    %126 = arith.divf %124, %125 : vector<2x32xf32>
    %cst_65 = arith.constant dense<0.000000e+00> : vector<2x32xf32>
    %127 = tpu.matmul %75, %25, %cst_65 {dimension_numbers = #tpu.dot_dimension_numbers<[1], [0], [0], [1], [0, 0, 1, 1], [], []>} : vector<2x32xf32>, vector<32x32xf32>, vector<2x32xf32> -> vector<2x32xf32>
    %128 = vector.broadcast %29 : vector<1x32xf32> to vector<2x32xf32>
    %129 = arith.addf %127, %128 : vector<2x32xf32>
    %130 = arith.mulf %119, %129 : vector<2x32xf32>
    %131 = arith.addf %112, %130 : vector<2x32xf32>
    %132 = math.tanh %131 : vector<2x32xf32>
    %cst_66 = arith.constant 1.000000e+00 : f32
    %133 = vector.broadcast %cst_66 : f32 to vector<2x32xf32>
    %134 = arith.subf %133, %126 : vector<2x32xf32>
    %135 = arith.mulf %134, %132 : vector<2x32xf32>
    %136 = arith.mulf %126, %75 : vector<2x32xf32>
    %137 = arith.addf %135, %136 : vector<2x32xf32>
    %138 = vector.extract_strided_slice %5 {offsets = [4, 0], sizes = [2, 32], strides = [1, 1]} : vector<16x32xf32> to vector<2x32xf32>
    %139 = vector.extract_strided_slice %10 {offsets = [4, 0], sizes = [2, 32], strides = [1, 1]} : vector<16x32xf32> to vector<2x32xf32>
    %140 = vector.extract_strided_slice %15 {offsets = [4, 0], sizes = [2, 32], strides = [1, 1]} : vector<16x32xf32> to vector<2x32xf32>
    %cst_67 = arith.constant dense<0.000000e+00> : vector<2x32xf32>
    %141 = tpu.matmul %103, %16, %cst_67 {dimension_numbers = #tpu.dot_dimension_numbers<[1], [0], [0], [1], [0, 0, 1, 1], [], []>} : vector<2x32xf32>, vector<32x32xf32>, vector<2x32xf32> -> vector<2x32xf32>
    %142 = arith.addf %138, %141 : vector<2x32xf32>
    %143 = arith.negf %142 : vector<2x32xf32>
    %144 = math.exp %143 : vector<2x32xf32>
    %cst_68 = arith.constant 1.000000e+00 : f32
    %145 = vector.broadcast %cst_68 : f32 to vector<2x32xf32>
    %146 = arith.addf %145, %144 : vector<2x32xf32>
    %147 = arith.divf %145, %146 : vector<2x32xf32>
    %cst_69 = arith.constant dense<0.000000e+00> : vector<2x32xf32>
    %148 = tpu.matmul %103, %17, %cst_69 {dimension_numbers = #tpu.dot_dimension_numbers<[1], [0], [0], [1], [0, 0, 1, 1], [], []>} : vector<2x32xf32>, vector<32x32xf32>, vector<2x32xf32> -> vector<2x32xf32>
    %149 = arith.addf %139, %148 : vector<2x32xf32>
    %150 = arith.negf %149 : vector<2x32xf32>
    %151 = math.exp %150 : vector<2x32xf32>
    %cst_70 = arith.constant 1.000000e+00 : f32
    %152 = vector.broadcast %cst_70 : f32 to vector<2x32xf32>
    %153 = arith.addf %152, %151 : vector<2x32xf32>
    %154 = arith.divf %152, %153 : vector<2x32xf32>
    %cst_71 = arith.constant dense<0.000000e+00> : vector<2x32xf32>
    %155 = tpu.matmul %103, %18, %cst_71 {dimension_numbers = #tpu.dot_dimension_numbers<[1], [0], [0], [1], [0, 0, 1, 1], [], []>} : vector<2x32xf32>, vector<32x32xf32>, vector<2x32xf32> -> vector<2x32xf32>
    %156 = vector.broadcast %19 : vector<1x32xf32> to vector<2x32xf32>
    %157 = arith.addf %155, %156 : vector<2x32xf32>
    %158 = arith.mulf %147, %157 : vector<2x32xf32>
    %159 = arith.addf %140, %158 : vector<2x32xf32>
    %160 = math.tanh %159 : vector<2x32xf32>
    %cst_72 = arith.constant 1.000000e+00 : f32
    %161 = vector.broadcast %cst_72 : f32 to vector<2x32xf32>
    %162 = arith.subf %161, %154 : vector<2x32xf32>
    %163 = arith.mulf %162, %160 : vector<2x32xf32>
    %164 = arith.mulf %154, %103 : vector<2x32xf32>
    %165 = arith.addf %163, %164 : vector<2x32xf32>
    %cst_73 = arith.constant dense<0.000000e+00> : vector<2x32xf32>
    %166 = tpu.matmul %165, %20, %cst_73 {dimension_numbers = #tpu.dot_dimension_numbers<[1], [0], [0], [1], [0, 0, 1, 1], [], []>} : vector<2x32xf32>, vector<32x32xf32>, vector<2x32xf32> -> vector<2x32xf32>
    %167 = vector.broadcast %26 : vector<1x32xf32> to vector<2x32xf32>
    %168 = arith.addf %166, %167 : vector<2x32xf32>
    %cst_74 = arith.constant dense<0.000000e+00> : vector<2x32xf32>
    %169 = tpu.matmul %165, %21, %cst_74 {dimension_numbers = #tpu.dot_dimension_numbers<[1], [0], [0], [1], [0, 0, 1, 1], [], []>} : vector<2x32xf32>, vector<32x32xf32>, vector<2x32xf32> -> vector<2x32xf32>
    %170 = vector.broadcast %27 : vector<1x32xf32> to vector<2x32xf32>
    %171 = arith.addf %169, %170 : vector<2x32xf32>
    %cst_75 = arith.constant dense<0.000000e+00> : vector<2x32xf32>
    %172 = tpu.matmul %165, %22, %cst_75 {dimension_numbers = #tpu.dot_dimension_numbers<[1], [0], [0], [1], [0, 0, 1, 1], [], []>} : vector<2x32xf32>, vector<32x32xf32>, vector<2x32xf32> -> vector<2x32xf32>
    %173 = vector.broadcast %28 : vector<1x32xf32> to vector<2x32xf32>
    %174 = arith.addf %172, %173 : vector<2x32xf32>
    %cst_76 = arith.constant dense<0.000000e+00> : vector<2x32xf32>
    %175 = tpu.matmul %137, %23, %cst_76 {dimension_numbers = #tpu.dot_dimension_numbers<[1], [0], [0], [1], [0, 0, 1, 1], [], []>} : vector<2x32xf32>, vector<32x32xf32>, vector<2x32xf32> -> vector<2x32xf32>
    %176 = arith.addf %168, %175 : vector<2x32xf32>
    %177 = arith.negf %176 : vector<2x32xf32>
    %178 = math.exp %177 : vector<2x32xf32>
    %cst_77 = arith.constant 1.000000e+00 : f32
    %179 = vector.broadcast %cst_77 : f32 to vector<2x32xf32>
    %180 = arith.addf %179, %178 : vector<2x32xf32>
    %181 = arith.divf %179, %180 : vector<2x32xf32>
    %cst_78 = arith.constant dense<0.000000e+00> : vector<2x32xf32>
    %182 = tpu.matmul %137, %24, %cst_78 {dimension_numbers = #tpu.dot_dimension_numbers<[1], [0], [0], [1], [0, 0, 1, 1], [], []>} : vector<2x32xf32>, vector<32x32xf32>, vector<2x32xf32> -> vector<2x32xf32>
    %183 = arith.addf %171, %182 : vector<2x32xf32>
    %184 = arith.negf %183 : vector<2x32xf32>
    %185 = math.exp %184 : vector<2x32xf32>
    %cst_79 = arith.constant 1.000000e+00 : f32
    %186 = vector.broadcast %cst_79 : f32 to vector<2x32xf32>
    %187 = arith.addf %186, %185 : vector<2x32xf32>
    %188 = arith.divf %186, %187 : vector<2x32xf32>
    %cst_80 = arith.constant dense<0.000000e+00> : vector<2x32xf32>
    %189 = tpu.matmul %137, %25, %cst_80 {dimension_numbers = #tpu.dot_dimension_numbers<[1], [0], [0], [1], [0, 0, 1, 1], [], []>} : vector<2x32xf32>, vector<32x32xf32>, vector<2x32xf32> -> vector<2x32xf32>
    %190 = vector.broadcast %29 : vector<1x32xf32> to vector<2x32xf32>
    %191 = arith.addf %189, %190 : vector<2x32xf32>
    %192 = arith.mulf %181, %191 : vector<2x32xf32>
    %193 = arith.addf %174, %192 : vector<2x32xf32>
    %194 = math.tanh %193 : vector<2x32xf32>
    %cst_81 = arith.constant 1.000000e+00 : f32
    %195 = vector.broadcast %cst_81 : f32 to vector<2x32xf32>
    %196 = arith.subf %195, %188 : vector<2x32xf32>
    %197 = arith.mulf %196, %194 : vector<2x32xf32>
    %198 = arith.mulf %188, %137 : vector<2x32xf32>
    %199 = arith.addf %197, %198 : vector<2x32xf32>
    %200 = vector.extract_strided_slice %5 {offsets = [6, 0], sizes = [2, 32], strides = [1, 1]} : vector<16x32xf32> to vector<2x32xf32>
    %201 = vector.extract_strided_slice %10 {offsets = [6, 0], sizes = [2, 32], strides = [1, 1]} : vector<16x32xf32> to vector<2x32xf32>
    %202 = vector.extract_strided_slice %15 {offsets = [6, 0], sizes = [2, 32], strides = [1, 1]} : vector<16x32xf32> to vector<2x32xf32>
    %cst_82 = arith.constant dense<0.000000e+00> : vector<2x32xf32>
    %203 = tpu.matmul %165, %16, %cst_82 {dimension_numbers = #tpu.dot_dimension_numbers<[1], [0], [0], [1], [0, 0, 1, 1], [], []>} : vector<2x32xf32>, vector<32x32xf32>, vector<2x32xf32> -> vector<2x32xf32>
    %204 = arith.addf %200, %203 : vector<2x32xf32>
    %205 = arith.negf %204 : vector<2x32xf32>
    %206 = math.exp %205 : vector<2x32xf32>
    %cst_83 = arith.constant 1.000000e+00 : f32
    %207 = vector.broadcast %cst_83 : f32 to vector<2x32xf32>
    %208 = arith.addf %207, %206 : vector<2x32xf32>
    %209 = arith.divf %207, %208 : vector<2x32xf32>
    %cst_84 = arith.constant dense<0.000000e+00> : vector<2x32xf32>
    %210 = tpu.matmul %165, %17, %cst_84 {dimension_numbers = #tpu.dot_dimension_numbers<[1], [0], [0], [1], [0, 0, 1, 1], [], []>} : vector<2x32xf32>, vector<32x32xf32>, vector<2x32xf32> -> vector<2x32xf32>
    %211 = arith.addf %201, %210 : vector<2x32xf32>
    %212 = arith.negf %211 : vector<2x32xf32>
    %213 = math.exp %212 : vector<2x32xf32>
    %cst_85 = arith.constant 1.000000e+00 : f32
    %214 = vector.broadcast %cst_85 : f32 to vector<2x32xf32>
    %215 = arith.addf %214, %213 : vector<2x32xf32>
    %216 = arith.divf %214, %215 : vector<2x32xf32>
    %cst_86 = arith.constant dense<0.000000e+00> : vector<2x32xf32>
    %217 = tpu.matmul %165, %18, %cst_86 {dimension_numbers = #tpu.dot_dimension_numbers<[1], [0], [0], [1], [0, 0, 1, 1], [], []>} : vector<2x32xf32>, vector<32x32xf32>, vector<2x32xf32> -> vector<2x32xf32>
    %218 = vector.broadcast %19 : vector<1x32xf32> to vector<2x32xf32>
    %219 = arith.addf %217, %218 : vector<2x32xf32>
    %220 = arith.mulf %209, %219 : vector<2x32xf32>
    %221 = arith.addf %202, %220 : vector<2x32xf32>
    %222 = math.tanh %221 : vector<2x32xf32>
    %cst_87 = arith.constant 1.000000e+00 : f32
    %223 = vector.broadcast %cst_87 : f32 to vector<2x32xf32>
    %224 = arith.subf %223, %216 : vector<2x32xf32>
    %225 = arith.mulf %224, %222 : vector<2x32xf32>
    %226 = arith.mulf %216, %165 : vector<2x32xf32>
    %227 = arith.addf %225, %226 : vector<2x32xf32>
    %cst_88 = arith.constant dense<0.000000e+00> : vector<2x32xf32>
    %228 = tpu.matmul %227, %20, %cst_88 {dimension_numbers = #tpu.dot_dimension_numbers<[1], [0], [0], [1], [0, 0, 1, 1], [], []>} : vector<2x32xf32>, vector<32x32xf32>, vector<2x32xf32> -> vector<2x32xf32>
    %229 = vector.broadcast %26 : vector<1x32xf32> to vector<2x32xf32>
    %230 = arith.addf %228, %229 : vector<2x32xf32>
    %cst_89 = arith.constant dense<0.000000e+00> : vector<2x32xf32>
    %231 = tpu.matmul %227, %21, %cst_89 {dimension_numbers = #tpu.dot_dimension_numbers<[1], [0], [0], [1], [0, 0, 1, 1], [], []>} : vector<2x32xf32>, vector<32x32xf32>, vector<2x32xf32> -> vector<2x32xf32>
    %232 = vector.broadcast %27 : vector<1x32xf32> to vector<2x32xf32>
    %233 = arith.addf %231, %232 : vector<2x32xf32>
    %cst_90 = arith.constant dense<0.000000e+00> : vector<2x32xf32>
    %234 = tpu.matmul %227, %22, %cst_90 {dimension_numbers = #tpu.dot_dimension_numbers<[1], [0], [0], [1], [0, 0, 1, 1], [], []>} : vector<2x32xf32>, vector<32x32xf32>, vector<2x32xf32> -> vector<2x32xf32>
    %235 = vector.broadcast %28 : vector<1x32xf32> to vector<2x32xf32>
    %236 = arith.addf %234, %235 : vector<2x32xf32>
    %cst_91 = arith.constant dense<0.000000e+00> : vector<2x32xf32>
    %237 = tpu.matmul %199, %23, %cst_91 {dimension_numbers = #tpu.dot_dimension_numbers<[1], [0], [0], [1], [0, 0, 1, 1], [], []>} : vector<2x32xf32>, vector<32x32xf32>, vector<2x32xf32> -> vector<2x32xf32>
    %238 = arith.addf %230, %237 : vector<2x32xf32>
    %239 = arith.negf %238 : vector<2x32xf32>
    %240 = math.exp %239 : vector<2x32xf32>
    %cst_92 = arith.constant 1.000000e+00 : f32
    %241 = vector.broadcast %cst_92 : f32 to vector<2x32xf32>
    %242 = arith.addf %241, %240 : vector<2x32xf32>
    %243 = arith.divf %241, %242 : vector<2x32xf32>
    %cst_93 = arith.constant dense<0.000000e+00> : vector<2x32xf32>
    %244 = tpu.matmul %199, %24, %cst_93 {dimension_numbers = #tpu.dot_dimension_numbers<[1], [0], [0], [1], [0, 0, 1, 1], [], []>} : vector<2x32xf32>, vector<32x32xf32>, vector<2x32xf32> -> vector<2x32xf32>
    %245 = arith.addf %233, %244 : vector<2x32xf32>
    %246 = arith.negf %245 : vector<2x32xf32>
    %247 = math.exp %246 : vector<2x32xf32>
    %cst_94 = arith.constant 1.000000e+00 : f32
    %248 = vector.broadcast %cst_94 : f32 to vector<2x32xf32>
    %249 = arith.addf %248, %247 : vector<2x32xf32>
    %250 = arith.divf %248, %249 : vector<2x32xf32>
    %cst_95 = arith.constant dense<0.000000e+00> : vector<2x32xf32>
    %251 = tpu.matmul %199, %25, %cst_95 {dimension_numbers = #tpu.dot_dimension_numbers<[1], [0], [0], [1], [0, 0, 1, 1], [], []>} : vector<2x32xf32>, vector<32x32xf32>, vector<2x32xf32> -> vector<2x32xf32>
    %252 = vector.broadcast %29 : vector<1x32xf32> to vector<2x32xf32>
    %253 = arith.addf %251, %252 : vector<2x32xf32>
    %254 = arith.mulf %243, %253 : vector<2x32xf32>
    %255 = arith.addf %236, %254 : vector<2x32xf32>
    %256 = math.tanh %255 : vector<2x32xf32>
    %cst_96 = arith.constant 1.000000e+00 : f32
    %257 = vector.broadcast %cst_96 : f32 to vector<2x32xf32>
    %258 = arith.subf %257, %250 : vector<2x32xf32>
    %259 = arith.mulf %258, %256 : vector<2x32xf32>
    %260 = arith.mulf %250, %199 : vector<2x32xf32>
    %261 = arith.addf %259, %260 : vector<2x32xf32>
    %262 = vector.extract_strided_slice %5 {offsets = [8, 0], sizes = [2, 32], strides = [1, 1]} : vector<16x32xf32> to vector<2x32xf32>
    %263 = vector.extract_strided_slice %10 {offsets = [8, 0], sizes = [2, 32], strides = [1, 1]} : vector<16x32xf32> to vector<2x32xf32>
    %264 = vector.extract_strided_slice %15 {offsets = [8, 0], sizes = [2, 32], strides = [1, 1]} : vector<16x32xf32> to vector<2x32xf32>
    %cst_97 = arith.constant dense<0.000000e+00> : vector<2x32xf32>
    %265 = tpu.matmul %227, %16, %cst_97 {dimension_numbers = #tpu.dot_dimension_numbers<[1], [0], [0], [1], [0, 0, 1, 1], [], []>} : vector<2x32xf32>, vector<32x32xf32>, vector<2x32xf32> -> vector<2x32xf32>
    %266 = arith.addf %262, %265 : vector<2x32xf32>
    %267 = arith.negf %266 : vector<2x32xf32>
    %268 = math.exp %267 : vector<2x32xf32>
    %cst_98 = arith.constant 1.000000e+00 : f32
    %269 = vector.broadcast %cst_98 : f32 to vector<2x32xf32>
    %270 = arith.addf %269, %268 : vector<2x32xf32>
    %271 = arith.divf %269, %270 : vector<2x32xf32>
    %cst_99 = arith.constant dense<0.000000e+00> : vector<2x32xf32>
    %272 = tpu.matmul %227, %17, %cst_99 {dimension_numbers = #tpu.dot_dimension_numbers<[1], [0], [0], [1], [0, 0, 1, 1], [], []>} : vector<2x32xf32>, vector<32x32xf32>, vector<2x32xf32> -> vector<2x32xf32>
    %273 = arith.addf %263, %272 : vector<2x32xf32>
    %274 = arith.negf %273 : vector<2x32xf32>
    %275 = math.exp %274 : vector<2x32xf32>
    %cst_100 = arith.constant 1.000000e+00 : f32
    %276 = vector.broadcast %cst_100 : f32 to vector<2x32xf32>
    %277 = arith.addf %276, %275 : vector<2x32xf32>
    %278 = arith.divf %276, %277 : vector<2x32xf32>
    %cst_101 = arith.constant dense<0.000000e+00> : vector<2x32xf32>
    %279 = tpu.matmul %227, %18, %cst_101 {dimension_numbers = #tpu.dot_dimension_numbers<[1], [0], [0], [1], [0, 0, 1, 1], [], []>} : vector<2x32xf32>, vector<32x32xf32>, vector<2x32xf32> -> vector<2x32xf32>
    %280 = vector.broadcast %19 : vector<1x32xf32> to vector<2x32xf32>
    %281 = arith.addf %279, %280 : vector<2x32xf32>
    %282 = arith.mulf %271, %281 : vector<2x32xf32>
    %283 = arith.addf %264, %282 : vector<2x32xf32>
    %284 = math.tanh %283 : vector<2x32xf32>
    %cst_102 = arith.constant 1.000000e+00 : f32
    %285 = vector.broadcast %cst_102 : f32 to vector<2x32xf32>
    %286 = arith.subf %285, %278 : vector<2x32xf32>
    %287 = arith.mulf %286, %284 : vector<2x32xf32>
    %288 = arith.mulf %278, %227 : vector<2x32xf32>
    %289 = arith.addf %287, %288 : vector<2x32xf32>
    %cst_103 = arith.constant dense<0.000000e+00> : vector<2x32xf32>
    %290 = tpu.matmul %289, %20, %cst_103 {dimension_numbers = #tpu.dot_dimension_numbers<[1], [0], [0], [1], [0, 0, 1, 1], [], []>} : vector<2x32xf32>, vector<32x32xf32>, vector<2x32xf32> -> vector<2x32xf32>
    %291 = vector.broadcast %26 : vector<1x32xf32> to vector<2x32xf32>
    %292 = arith.addf %290, %291 : vector<2x32xf32>
    %cst_104 = arith.constant dense<0.000000e+00> : vector<2x32xf32>
    %293 = tpu.matmul %289, %21, %cst_104 {dimension_numbers = #tpu.dot_dimension_numbers<[1], [0], [0], [1], [0, 0, 1, 1], [], []>} : vector<2x32xf32>, vector<32x32xf32>, vector<2x32xf32> -> vector<2x32xf32>
    %294 = vector.broadcast %27 : vector<1x32xf32> to vector<2x32xf32>
    %295 = arith.addf %293, %294 : vector<2x32xf32>
    %cst_105 = arith.constant dense<0.000000e+00> : vector<2x32xf32>
    %296 = tpu.matmul %289, %22, %cst_105 {dimension_numbers = #tpu.dot_dimension_numbers<[1], [0], [0], [1], [0, 0, 1, 1], [], []>} : vector<2x32xf32>, vector<32x32xf32>, vector<2x32xf32> -> vector<2x32xf32>
    %297 = vector.broadcast %28 : vector<1x32xf32> to vector<2x32xf32>
    %298 = arith.addf %296, %297 : vector<2x32xf32>
    %cst_106 = arith.constant dense<0.000000e+00> : vector<2x32xf32>
    %299 = tpu.matmul %261, %23, %cst_106 {dimension_numbers = #tpu.dot_dimension_numbers<[1], [0], [0], [1], [0, 0, 1, 1], [], []>} : vector<2x32xf32>, vector<32x32xf32>, vector<2x32xf32> -> vector<2x32xf32>
    %300 = arith.addf %292, %299 : vector<2x32xf32>
    %301 = arith.negf %300 : vector<2x32xf32>
    %302 = math.exp %301 : vector<2x32xf32>
    %cst_107 = arith.constant 1.000000e+00 : f32
    %303 = vector.broadcast %cst_107 : f32 to vector<2x32xf32>
    %304 = arith.addf %303, %302 : vector<2x32xf32>
    %305 = arith.divf %303, %304 : vector<2x32xf32>
    %cst_108 = arith.constant dense<0.000000e+00> : vector<2x32xf32>
    %306 = tpu.matmul %261, %24, %cst_108 {dimension_numbers = #tpu.dot_dimension_numbers<[1], [0], [0], [1], [0, 0, 1, 1], [], []>} : vector<2x32xf32>, vector<32x32xf32>, vector<2x32xf32> -> vector<2x32xf32>
    %307 = arith.addf %295, %306 : vector<2x32xf32>
    %308 = arith.negf %307 : vector<2x32xf32>
    %309 = math.exp %308 : vector<2x32xf32>
    %cst_109 = arith.constant 1.000000e+00 : f32
    %310 = vector.broadcast %cst_109 : f32 to vector<2x32xf32>
    %311 = arith.addf %310, %309 : vector<2x32xf32>
    %312 = arith.divf %310, %311 : vector<2x32xf32>
    %cst_110 = arith.constant dense<0.000000e+00> : vector<2x32xf32>
    %313 = tpu.matmul %261, %25, %cst_110 {dimension_numbers = #tpu.dot_dimension_numbers<[1], [0], [0], [1], [0, 0, 1, 1], [], []>} : vector<2x32xf32>, vector<32x32xf32>, vector<2x32xf32> -> vector<2x32xf32>
    %314 = vector.broadcast %29 : vector<1x32xf32> to vector<2x32xf32>
    %315 = arith.addf %313, %314 : vector<2x32xf32>
    %316 = arith.mulf %305, %315 : vector<2x32xf32>
    %317 = arith.addf %298, %316 : vector<2x32xf32>
    %318 = math.tanh %317 : vector<2x32xf32>
    %cst_111 = arith.constant 1.000000e+00 : f32
    %319 = vector.broadcast %cst_111 : f32 to vector<2x32xf32>
    %320 = arith.subf %319, %312 : vector<2x32xf32>
    %321 = arith.mulf %320, %318 : vector<2x32xf32>
    %322 = arith.mulf %312, %261 : vector<2x32xf32>
    %323 = arith.addf %321, %322 : vector<2x32xf32>
    %324 = vector.extract_strided_slice %5 {offsets = [10, 0], sizes = [2, 32], strides = [1, 1]} : vector<16x32xf32> to vector<2x32xf32>
    %325 = vector.extract_strided_slice %10 {offsets = [10, 0], sizes = [2, 32], strides = [1, 1]} : vector<16x32xf32> to vector<2x32xf32>
    %326 = vector.extract_strided_slice %15 {offsets = [10, 0], sizes = [2, 32], strides = [1, 1]} : vector<16x32xf32> to vector<2x32xf32>
    %cst_112 = arith.constant dense<0.000000e+00> : vector<2x32xf32>
    %327 = tpu.matmul %289, %16, %cst_112 {dimension_numbers = #tpu.dot_dimension_numbers<[1], [0], [0], [1], [0, 0, 1, 1], [], []>} : vector<2x32xf32>, vector<32x32xf32>, vector<2x32xf32> -> vector<2x32xf32>
    %328 = arith.addf %324, %327 : vector<2x32xf32>
    %329 = arith.negf %328 : vector<2x32xf32>
    %330 = math.exp %329 : vector<2x32xf32>
    %cst_113 = arith.constant 1.000000e+00 : f32
    %331 = vector.broadcast %cst_113 : f32 to vector<2x32xf32>
    %332 = arith.addf %331, %330 : vector<2x32xf32>
    %333 = arith.divf %331, %332 : vector<2x32xf32>
    %cst_114 = arith.constant dense<0.000000e+00> : vector<2x32xf32>
    %334 = tpu.matmul %289, %17, %cst_114 {dimension_numbers = #tpu.dot_dimension_numbers<[1], [0], [0], [1], [0, 0, 1, 1], [], []>} : vector<2x32xf32>, vector<32x32xf32>, vector<2x32xf32> -> vector<2x32xf32>
    %335 = arith.addf %325, %334 : vector<2x32xf32>
    %336 = arith.negf %335 : vector<2x32xf32>
    %337 = math.exp %336 : vector<2x32xf32>
    %cst_115 = arith.constant 1.000000e+00 : f32
    %338 = vector.broadcast %cst_115 : f32 to vector<2x32xf32>
    %339 = arith.addf %338, %337 : vector<2x32xf32>
    %340 = arith.divf %338, %339 : vector<2x32xf32>
    %cst_116 = arith.constant dense<0.000000e+00> : vector<2x32xf32>
    %341 = tpu.matmul %289, %18, %cst_116 {dimension_numbers = #tpu.dot_dimension_numbers<[1], [0], [0], [1], [0, 0, 1, 1], [], []>} : vector<2x32xf32>, vector<32x32xf32>, vector<2x32xf32> -> vector<2x32xf32>
    %342 = vector.broadcast %19 : vector<1x32xf32> to vector<2x32xf32>
    %343 = arith.addf %341, %342 : vector<2x32xf32>
    %344 = arith.mulf %333, %343 : vector<2x32xf32>
    %345 = arith.addf %326, %344 : vector<2x32xf32>
    %346 = math.tanh %345 : vector<2x32xf32>
    %cst_117 = arith.constant 1.000000e+00 : f32
    %347 = vector.broadcast %cst_117 : f32 to vector<2x32xf32>
    %348 = arith.subf %347, %340 : vector<2x32xf32>
    %349 = arith.mulf %348, %346 : vector<2x32xf32>
    %350 = arith.mulf %340, %289 : vector<2x32xf32>
    %351 = arith.addf %349, %350 : vector<2x32xf32>
    %cst_118 = arith.constant dense<0.000000e+00> : vector<2x32xf32>
    %352 = tpu.matmul %351, %20, %cst_118 {dimension_numbers = #tpu.dot_dimension_numbers<[1], [0], [0], [1], [0, 0, 1, 1], [], []>} : vector<2x32xf32>, vector<32x32xf32>, vector<2x32xf32> -> vector<2x32xf32>
    %353 = vector.broadcast %26 : vector<1x32xf32> to vector<2x32xf32>
    %354 = arith.addf %352, %353 : vector<2x32xf32>
    %cst_119 = arith.constant dense<0.000000e+00> : vector<2x32xf32>
    %355 = tpu.matmul %351, %21, %cst_119 {dimension_numbers = #tpu.dot_dimension_numbers<[1], [0], [0], [1], [0, 0, 1, 1], [], []>} : vector<2x32xf32>, vector<32x32xf32>, vector<2x32xf32> -> vector<2x32xf32>
    %356 = vector.broadcast %27 : vector<1x32xf32> to vector<2x32xf32>
    %357 = arith.addf %355, %356 : vector<2x32xf32>
    %cst_120 = arith.constant dense<0.000000e+00> : vector<2x32xf32>
    %358 = tpu.matmul %351, %22, %cst_120 {dimension_numbers = #tpu.dot_dimension_numbers<[1], [0], [0], [1], [0, 0, 1, 1], [], []>} : vector<2x32xf32>, vector<32x32xf32>, vector<2x32xf32> -> vector<2x32xf32>
    %359 = vector.broadcast %28 : vector<1x32xf32> to vector<2x32xf32>
    %360 = arith.addf %358, %359 : vector<2x32xf32>
    %cst_121 = arith.constant dense<0.000000e+00> : vector<2x32xf32>
    %361 = tpu.matmul %323, %23, %cst_121 {dimension_numbers = #tpu.dot_dimension_numbers<[1], [0], [0], [1], [0, 0, 1, 1], [], []>} : vector<2x32xf32>, vector<32x32xf32>, vector<2x32xf32> -> vector<2x32xf32>
    %362 = arith.addf %354, %361 : vector<2x32xf32>
    %363 = arith.negf %362 : vector<2x32xf32>
    %364 = math.exp %363 : vector<2x32xf32>
    %cst_122 = arith.constant 1.000000e+00 : f32
    %365 = vector.broadcast %cst_122 : f32 to vector<2x32xf32>
    %366 = arith.addf %365, %364 : vector<2x32xf32>
    %367 = arith.divf %365, %366 : vector<2x32xf32>
    %cst_123 = arith.constant dense<0.000000e+00> : vector<2x32xf32>
    %368 = tpu.matmul %323, %24, %cst_123 {dimension_numbers = #tpu.dot_dimension_numbers<[1], [0], [0], [1], [0, 0, 1, 1], [], []>} : vector<2x32xf32>, vector<32x32xf32>, vector<2x32xf32> -> vector<2x32xf32>
    %369 = arith.addf %357, %368 : vector<2x32xf32>
    %370 = arith.negf %369 : vector<2x32xf32>
    %371 = math.exp %370 : vector<2x32xf32>
    %cst_124 = arith.constant 1.000000e+00 : f32
    %372 = vector.broadcast %cst_124 : f32 to vector<2x32xf32>
    %373 = arith.addf %372, %371 : vector<2x32xf32>
    %374 = arith.divf %372, %373 : vector<2x32xf32>
    %cst_125 = arith.constant dense<0.000000e+00> : vector<2x32xf32>
    %375 = tpu.matmul %323, %25, %cst_125 {dimension_numbers = #tpu.dot_dimension_numbers<[1], [0], [0], [1], [0, 0, 1, 1], [], []>} : vector<2x32xf32>, vector<32x32xf32>, vector<2x32xf32> -> vector<2x32xf32>
    %376 = vector.broadcast %29 : vector<1x32xf32> to vector<2x32xf32>
    %377 = arith.addf %375, %376 : vector<2x32xf32>
    %378 = arith.mulf %367, %377 : vector<2x32xf32>
    %379 = arith.addf %360, %378 : vector<2x32xf32>
    %380 = math.tanh %379 : vector<2x32xf32>
    %cst_126 = arith.constant 1.000000e+00 : f32
    %381 = vector.broadcast %cst_126 : f32 to vector<2x32xf32>
    %382 = arith.subf %381, %374 : vector<2x32xf32>
    %383 = arith.mulf %382, %380 : vector<2x32xf32>
    %384 = arith.mulf %374, %323 : vector<2x32xf32>
    %385 = arith.addf %383, %384 : vector<2x32xf32>
    %386 = vector.extract_strided_slice %5 {offsets = [12, 0], sizes = [2, 32], strides = [1, 1]} : vector<16x32xf32> to vector<2x32xf32>
    %387 = vector.extract_strided_slice %10 {offsets = [12, 0], sizes = [2, 32], strides = [1, 1]} : vector<16x32xf32> to vector<2x32xf32>
    %388 = vector.extract_strided_slice %15 {offsets = [12, 0], sizes = [2, 32], strides = [1, 1]} : vector<16x32xf32> to vector<2x32xf32>
    %cst_127 = arith.constant dense<0.000000e+00> : vector<2x32xf32>
    %389 = tpu.matmul %351, %16, %cst_127 {dimension_numbers = #tpu.dot_dimension_numbers<[1], [0], [0], [1], [0, 0, 1, 1], [], []>} : vector<2x32xf32>, vector<32x32xf32>, vector<2x32xf32> -> vector<2x32xf32>
    %390 = arith.addf %386, %389 : vector<2x32xf32>
    %391 = arith.negf %390 : vector<2x32xf32>
    %392 = math.exp %391 : vector<2x32xf32>
    %cst_128 = arith.constant 1.000000e+00 : f32
    %393 = vector.broadcast %cst_128 : f32 to vector<2x32xf32>
    %394 = arith.addf %393, %392 : vector<2x32xf32>
    %395 = arith.divf %393, %394 : vector<2x32xf32>
    %cst_129 = arith.constant dense<0.000000e+00> : vector<2x32xf32>
    %396 = tpu.matmul %351, %17, %cst_129 {dimension_numbers = #tpu.dot_dimension_numbers<[1], [0], [0], [1], [0, 0, 1, 1], [], []>} : vector<2x32xf32>, vector<32x32xf32>, vector<2x32xf32> -> vector<2x32xf32>
    %397 = arith.addf %387, %396 : vector<2x32xf32>
    %398 = arith.negf %397 : vector<2x32xf32>
    %399 = math.exp %398 : vector<2x32xf32>
    %cst_130 = arith.constant 1.000000e+00 : f32
    %400 = vector.broadcast %cst_130 : f32 to vector<2x32xf32>
    %401 = arith.addf %400, %399 : vector<2x32xf32>
    %402 = arith.divf %400, %401 : vector<2x32xf32>
    %cst_131 = arith.constant dense<0.000000e+00> : vector<2x32xf32>
    %403 = tpu.matmul %351, %18, %cst_131 {dimension_numbers = #tpu.dot_dimension_numbers<[1], [0], [0], [1], [0, 0, 1, 1], [], []>} : vector<2x32xf32>, vector<32x32xf32>, vector<2x32xf32> -> vector<2x32xf32>
    %404 = vector.broadcast %19 : vector<1x32xf32> to vector<2x32xf32>
    %405 = arith.addf %403, %404 : vector<2x32xf32>
    %406 = arith.mulf %395, %405 : vector<2x32xf32>
    %407 = arith.addf %388, %406 : vector<2x32xf32>
    %408 = math.tanh %407 : vector<2x32xf32>
    %cst_132 = arith.constant 1.000000e+00 : f32
    %409 = vector.broadcast %cst_132 : f32 to vector<2x32xf32>
    %410 = arith.subf %409, %402 : vector<2x32xf32>
    %411 = arith.mulf %410, %408 : vector<2x32xf32>
    %412 = arith.mulf %402, %351 : vector<2x32xf32>
    %413 = arith.addf %411, %412 : vector<2x32xf32>
    %cst_133 = arith.constant dense<0.000000e+00> : vector<2x32xf32>
    %414 = tpu.matmul %413, %20, %cst_133 {dimension_numbers = #tpu.dot_dimension_numbers<[1], [0], [0], [1], [0, 0, 1, 1], [], []>} : vector<2x32xf32>, vector<32x32xf32>, vector<2x32xf32> -> vector<2x32xf32>
    %415 = vector.broadcast %26 : vector<1x32xf32> to vector<2x32xf32>
    %416 = arith.addf %414, %415 : vector<2x32xf32>
    %cst_134 = arith.constant dense<0.000000e+00> : vector<2x32xf32>
    %417 = tpu.matmul %413, %21, %cst_134 {dimension_numbers = #tpu.dot_dimension_numbers<[1], [0], [0], [1], [0, 0, 1, 1], [], []>} : vector<2x32xf32>, vector<32x32xf32>, vector<2x32xf32> -> vector<2x32xf32>
    %418 = vector.broadcast %27 : vector<1x32xf32> to vector<2x32xf32>
    %419 = arith.addf %417, %418 : vector<2x32xf32>
    %cst_135 = arith.constant dense<0.000000e+00> : vector<2x32xf32>
    %420 = tpu.matmul %413, %22, %cst_135 {dimension_numbers = #tpu.dot_dimension_numbers<[1], [0], [0], [1], [0, 0, 1, 1], [], []>} : vector<2x32xf32>, vector<32x32xf32>, vector<2x32xf32> -> vector<2x32xf32>
    %421 = vector.broadcast %28 : vector<1x32xf32> to vector<2x32xf32>
    %422 = arith.addf %420, %421 : vector<2x32xf32>
    %cst_136 = arith.constant dense<0.000000e+00> : vector<2x32xf32>
    %423 = tpu.matmul %385, %23, %cst_136 {dimension_numbers = #tpu.dot_dimension_numbers<[1], [0], [0], [1], [0, 0, 1, 1], [], []>} : vector<2x32xf32>, vector<32x32xf32>, vector<2x32xf32> -> vector<2x32xf32>
    %424 = arith.addf %416, %423 : vector<2x32xf32>
    %425 = arith.negf %424 : vector<2x32xf32>
    %426 = math.exp %425 : vector<2x32xf32>
    %cst_137 = arith.constant 1.000000e+00 : f32
    %427 = vector.broadcast %cst_137 : f32 to vector<2x32xf32>
    %428 = arith.addf %427, %426 : vector<2x32xf32>
    %429 = arith.divf %427, %428 : vector<2x32xf32>
    %cst_138 = arith.constant dense<0.000000e+00> : vector<2x32xf32>
    %430 = tpu.matmul %385, %24, %cst_138 {dimension_numbers = #tpu.dot_dimension_numbers<[1], [0], [0], [1], [0, 0, 1, 1], [], []>} : vector<2x32xf32>, vector<32x32xf32>, vector<2x32xf32> -> vector<2x32xf32>
    %431 = arith.addf %419, %430 : vector<2x32xf32>
    %432 = arith.negf %431 : vector<2x32xf32>
    %433 = math.exp %432 : vector<2x32xf32>
    %cst_139 = arith.constant 1.000000e+00 : f32
    %434 = vector.broadcast %cst_139 : f32 to vector<2x32xf32>
    %435 = arith.addf %434, %433 : vector<2x32xf32>
    %436 = arith.divf %434, %435 : vector<2x32xf32>
    %cst_140 = arith.constant dense<0.000000e+00> : vector<2x32xf32>
    %437 = tpu.matmul %385, %25, %cst_140 {dimension_numbers = #tpu.dot_dimension_numbers<[1], [0], [0], [1], [0, 0, 1, 1], [], []>} : vector<2x32xf32>, vector<32x32xf32>, vector<2x32xf32> -> vector<2x32xf32>
    %438 = vector.broadcast %29 : vector<1x32xf32> to vector<2x32xf32>
    %439 = arith.addf %437, %438 : vector<2x32xf32>
    %440 = arith.mulf %429, %439 : vector<2x32xf32>
    %441 = arith.addf %422, %440 : vector<2x32xf32>
    %442 = math.tanh %441 : vector<2x32xf32>
    %cst_141 = arith.constant 1.000000e+00 : f32
    %443 = vector.broadcast %cst_141 : f32 to vector<2x32xf32>
    %444 = arith.subf %443, %436 : vector<2x32xf32>
    %445 = arith.mulf %444, %442 : vector<2x32xf32>
    %446 = arith.mulf %436, %385 : vector<2x32xf32>
    %447 = arith.addf %445, %446 : vector<2x32xf32>
    %448 = vector.extract_strided_slice %5 {offsets = [14, 0], sizes = [2, 32], strides = [1, 1]} : vector<16x32xf32> to vector<2x32xf32>
    %449 = vector.extract_strided_slice %10 {offsets = [14, 0], sizes = [2, 32], strides = [1, 1]} : vector<16x32xf32> to vector<2x32xf32>
    %450 = vector.extract_strided_slice %15 {offsets = [14, 0], sizes = [2, 32], strides = [1, 1]} : vector<16x32xf32> to vector<2x32xf32>
    %cst_142 = arith.constant dense<0.000000e+00> : vector<2x32xf32>
    %451 = tpu.matmul %413, %16, %cst_142 {dimension_numbers = #tpu.dot_dimension_numbers<[1], [0], [0], [1], [0, 0, 1, 1], [], []>} : vector<2x32xf32>, vector<32x32xf32>, vector<2x32xf32> -> vector<2x32xf32>
    %452 = arith.addf %448, %451 : vector<2x32xf32>
    %453 = arith.negf %452 : vector<2x32xf32>
    %454 = math.exp %453 : vector<2x32xf32>
    %cst_143 = arith.constant 1.000000e+00 : f32
    %455 = vector.broadcast %cst_143 : f32 to vector<2x32xf32>
    %456 = arith.addf %455, %454 : vector<2x32xf32>
    %457 = arith.divf %455, %456 : vector<2x32xf32>
    %cst_144 = arith.constant dense<0.000000e+00> : vector<2x32xf32>
    %458 = tpu.matmul %413, %17, %cst_144 {dimension_numbers = #tpu.dot_dimension_numbers<[1], [0], [0], [1], [0, 0, 1, 1], [], []>} : vector<2x32xf32>, vector<32x32xf32>, vector<2x32xf32> -> vector<2x32xf32>
    %459 = arith.addf %449, %458 : vector<2x32xf32>
    %460 = arith.negf %459 : vector<2x32xf32>
    %461 = math.exp %460 : vector<2x32xf32>
    %cst_145 = arith.constant 1.000000e+00 : f32
    %462 = vector.broadcast %cst_145 : f32 to vector<2x32xf32>
    %463 = arith.addf %462, %461 : vector<2x32xf32>
    %464 = arith.divf %462, %463 : vector<2x32xf32>
    %cst_146 = arith.constant dense<0.000000e+00> : vector<2x32xf32>
    %465 = tpu.matmul %413, %18, %cst_146 {dimension_numbers = #tpu.dot_dimension_numbers<[1], [0], [0], [1], [0, 0, 1, 1], [], []>} : vector<2x32xf32>, vector<32x32xf32>, vector<2x32xf32> -> vector<2x32xf32>
    %466 = vector.broadcast %19 : vector<1x32xf32> to vector<2x32xf32>
    %467 = arith.addf %465, %466 : vector<2x32xf32>
    %468 = arith.mulf %457, %467 : vector<2x32xf32>
    %469 = arith.addf %450, %468 : vector<2x32xf32>
    %470 = math.tanh %469 : vector<2x32xf32>
    %cst_147 = arith.constant 1.000000e+00 : f32
    %471 = vector.broadcast %cst_147 : f32 to vector<2x32xf32>
    %472 = arith.subf %471, %464 : vector<2x32xf32>
    %473 = arith.mulf %472, %470 : vector<2x32xf32>
    %474 = arith.mulf %464, %413 : vector<2x32xf32>
    %475 = arith.addf %473, %474 : vector<2x32xf32>
    %cst_148 = arith.constant dense<0.000000e+00> : vector<2x32xf32>
    %476 = tpu.matmul %475, %20, %cst_148 {dimension_numbers = #tpu.dot_dimension_numbers<[1], [0], [0], [1], [0, 0, 1, 1], [], []>} : vector<2x32xf32>, vector<32x32xf32>, vector<2x32xf32> -> vector<2x32xf32>
    %477 = vector.broadcast %26 : vector<1x32xf32> to vector<2x32xf32>
    %478 = arith.addf %476, %477 : vector<2x32xf32>
    %cst_149 = arith.constant dense<0.000000e+00> : vector<2x32xf32>
    %479 = tpu.matmul %475, %21, %cst_149 {dimension_numbers = #tpu.dot_dimension_numbers<[1], [0], [0], [1], [0, 0, 1, 1], [], []>} : vector<2x32xf32>, vector<32x32xf32>, vector<2x32xf32> -> vector<2x32xf32>
    %480 = vector.broadcast %27 : vector<1x32xf32> to vector<2x32xf32>
    %481 = arith.addf %479, %480 : vector<2x32xf32>
    %cst_150 = arith.constant dense<0.000000e+00> : vector<2x32xf32>
    %482 = tpu.matmul %475, %22, %cst_150 {dimension_numbers = #tpu.dot_dimension_numbers<[1], [0], [0], [1], [0, 0, 1, 1], [], []>} : vector<2x32xf32>, vector<32x32xf32>, vector<2x32xf32> -> vector<2x32xf32>
    %483 = vector.broadcast %28 : vector<1x32xf32> to vector<2x32xf32>
    %484 = arith.addf %482, %483 : vector<2x32xf32>
    %cst_151 = arith.constant dense<0.000000e+00> : vector<2x32xf32>
    %485 = tpu.matmul %447, %23, %cst_151 {dimension_numbers = #tpu.dot_dimension_numbers<[1], [0], [0], [1], [0, 0, 1, 1], [], []>} : vector<2x32xf32>, vector<32x32xf32>, vector<2x32xf32> -> vector<2x32xf32>
    %486 = arith.addf %478, %485 : vector<2x32xf32>
    %487 = arith.negf %486 : vector<2x32xf32>
    %488 = math.exp %487 : vector<2x32xf32>
    %cst_152 = arith.constant 1.000000e+00 : f32
    %489 = vector.broadcast %cst_152 : f32 to vector<2x32xf32>
    %490 = arith.addf %489, %488 : vector<2x32xf32>
    %491 = arith.divf %489, %490 : vector<2x32xf32>
    %cst_153 = arith.constant dense<0.000000e+00> : vector<2x32xf32>
    %492 = tpu.matmul %447, %24, %cst_153 {dimension_numbers = #tpu.dot_dimension_numbers<[1], [0], [0], [1], [0, 0, 1, 1], [], []>} : vector<2x32xf32>, vector<32x32xf32>, vector<2x32xf32> -> vector<2x32xf32>
    %493 = arith.addf %481, %492 : vector<2x32xf32>
    %494 = arith.negf %493 : vector<2x32xf32>
    %495 = math.exp %494 : vector<2x32xf32>
    %cst_154 = arith.constant 1.000000e+00 : f32
    %496 = vector.broadcast %cst_154 : f32 to vector<2x32xf32>
    %497 = arith.addf %496, %495 : vector<2x32xf32>
    %498 = arith.divf %496, %497 : vector<2x32xf32>
    %cst_155 = arith.constant dense<0.000000e+00> : vector<2x32xf32>
    %499 = tpu.matmul %447, %25, %cst_155 {dimension_numbers = #tpu.dot_dimension_numbers<[1], [0], [0], [1], [0, 0, 1, 1], [], []>} : vector<2x32xf32>, vector<32x32xf32>, vector<2x32xf32> -> vector<2x32xf32>
    %500 = vector.broadcast %29 : vector<1x32xf32> to vector<2x32xf32>
    %501 = arith.addf %499, %500 : vector<2x32xf32>
    %502 = arith.mulf %491, %501 : vector<2x32xf32>
    %503 = arith.addf %484, %502 : vector<2x32xf32>
    %504 = math.tanh %503 : vector<2x32xf32>
    %cst_156 = arith.constant 1.000000e+00 : f32
    %505 = vector.broadcast %cst_156 : f32 to vector<2x32xf32>
    %506 = arith.subf %505, %498 : vector<2x32xf32>
    %507 = arith.mulf %506, %504 : vector<2x32xf32>
    %508 = arith.mulf %498, %447 : vector<2x32xf32>
    %509 = arith.addf %507, %508 : vector<2x32xf32>
    %c0_157 = arith.constant 0 : index
    %c0_158 = arith.constant 0 : index
    %510 = vector.load %arg21[%c0_157, %c0_158] : memref<32x2xf32, #tpu.memory_space<vmem>>, vector<32x2xf32>
    %cst_159 = arith.constant dense<0.000000e+00> : vector<2x2xf32>
    %511 = tpu.matmul %509, %510, %cst_159 {dimension_numbers = #tpu.dot_dimension_numbers<[1], [0], [0], [1], [0, 0, 1, 1], [], []>} : vector<2x32xf32>, vector<32x2xf32>, vector<2x2xf32> -> vector<2x2xf32>
    %c0_160 = arith.constant 0 : index
    %c0_161 = arith.constant 0 : index
    %512 = vector.load %arg22[%c0_160, %c0_161] : memref<1x2xf32, #tpu.memory_space<vmem>>, vector<1x2xf32>
    %513 = vector.broadcast %512 : vector<1x2xf32> to vector<2x2xf32>
    %514 = arith.addf %511, %513 : vector<2x2xf32>
    %c0_162 = arith.constant 0 : index
    %c0_163 = arith.constant 0 : index
    %515 = vector.load %arg30[%c0_162, %c0_163] : memref<8x66xf32, #tpu.memory_space<vmem>>, vector<8x66xf32>
    %c0_164 = arith.constant 0 : index
    %c0_165 = arith.constant 0 : index
    %516 = vector.load %arg23[%c0_164, %c0_165] : memref<66x64xf32, #tpu.memory_space<vmem>>, vector<66x64xf32>
    %cst_166 = arith.constant dense<0.000000e+00> : vector<8x64xf32>
    %517 = tpu.matmul %515, %516, %cst_166 {dimension_numbers = #tpu.dot_dimension_numbers<[1], [0], [0], [1], [0, 0, 1, 1], [], []>} : vector<8x66xf32>, vector<66x64xf32>, vector<8x64xf32> -> vector<8x64xf32>
    %c0_167 = arith.constant 0 : index
    %c0_168 = arith.constant 0 : index
    %518 = vector.load %arg25[%c0_167, %c0_168] : memref<1x64xf32, #tpu.memory_space<vmem>>, vector<1x64xf32>
    %519 = vector.broadcast %518 : vector<1x64xf32> to vector<8x64xf32>
    %520 = arith.addf %517, %519 : vector<8x64xf32>
    %c0_169 = arith.constant 0 : index
    %c0_170 = arith.constant 0 : index
    %521 = vector.load %arg24[%c0_169, %c0_170] : memref<2x64xf32, #tpu.memory_space<vmem>>, vector<2x64xf32>
    %cst_171 = arith.constant dense<0.000000e+00> : vector<2x64xf32>
    %522 = tpu.matmul %514, %521, %cst_171 {dimension_numbers = #tpu.dot_dimension_numbers<[1], [0], [0], [1], [0, 0, 1, 1], [], []>} : vector<2x2xf32>, vector<2x64xf32>, vector<2x64xf32> -> vector<2x64xf32>
    %523 = vector.extract_strided_slice %522 {offsets = [0, 0], sizes = [1, 64], strides = [1, 1]} : vector<2x64xf32> to vector<1x64xf32>
    %524 = vector.broadcast %523 : vector<1x64xf32> to vector<8x64xf32>
    %525 = arith.addf %520, %524 : vector<8x64xf32>
    %526 = vector.extract_strided_slice %522 {offsets = [1, 0], sizes = [1, 64], strides = [1, 1]} : vector<2x64xf32> to vector<1x64xf32>
    %527 = vector.broadcast %526 : vector<1x64xf32> to vector<8x64xf32>
    %528 = arith.addf %520, %527 : vector<8x64xf32>
    %529 = tpu.concatenate %525, %528 in 0 : vector<8x64xf32>, vector<8x64xf32> -> vector<16x64xf32>
    %530 = math.tanh %529 : vector<16x64xf32>
    %c0_172 = arith.constant 0 : index
    %c0_173 = arith.constant 0 : index
    %531 = vector.load %arg26[%c0_172, %c0_173] : memref<64x64xf32, #tpu.memory_space<vmem>>, vector<64x64xf32>
    %cst_174 = arith.constant dense<0.000000e+00> : vector<16x64xf32>
    %532 = tpu.matmul %530, %531, %cst_174 {dimension_numbers = #tpu.dot_dimension_numbers<[1], [0], [0], [1], [0, 0, 1, 1], [], []>} : vector<16x64xf32>, vector<64x64xf32>, vector<16x64xf32> -> vector<16x64xf32>
    %c0_175 = arith.constant 0 : index
    %c0_176 = arith.constant 0 : index
    %533 = vector.load %arg27[%c0_175, %c0_176] : memref<1x64xf32, #tpu.memory_space<vmem>>, vector<1x64xf32>
    %534 = vector.broadcast %533 : vector<1x64xf32> to vector<16x64xf32>
    %535 = arith.addf %532, %534 : vector<16x64xf32>
    %536 = math.tanh %535 : vector<16x64xf32>
    %c0_177 = arith.constant 0 : index
    %c0_178 = arith.constant 0 : index
    %537 = vector.load %arg28[%c0_177, %c0_178] : memref<64x132xf32, #tpu.memory_space<vmem>>, vector<64x132xf32>
    %cst_179 = arith.constant dense<0.000000e+00> : vector<16x132xf32>
    %538 = tpu.matmul %536, %537, %cst_179 {dimension_numbers = #tpu.dot_dimension_numbers<[1], [0], [0], [1], [0, 0, 1, 1], [], []>} : vector<16x64xf32>, vector<64x132xf32>, vector<16x132xf32> -> vector<16x132xf32>
    %c0_180 = arith.constant 0 : index
    %c0_181 = arith.constant 0 : index
    %539 = vector.load %arg29[%c0_180, %c0_181] : memref<1x132xf32, #tpu.memory_space<vmem>>, vector<1x132xf32>
    %540 = vector.broadcast %539 : vector<1x132xf32> to vector<16x132xf32>
    %541 = arith.addf %538, %540 : vector<16x132xf32>
    %542 = vector.extract_strided_slice %541 {offsets = [0, 0], sizes = [16, 66], strides = [1, 1]} : vector<16x132xf32> to vector<16x66xf32>
    %543 = math.tanh %542 : vector<16x66xf32>
    %cst_182 = arith.constant 3.14159274 : f32
    %544 = vector.broadcast %cst_182 : f32 to vector<16x66xf32>
    %545 = arith.mulf %543, %544 : vector<16x66xf32>
    %546 = vector.extract_strided_slice %541 {offsets = [0, 66], sizes = [16, 66], strides = [1, 1]} : vector<16x132xf32> to vector<16x66xf32>
    %547 = math.tanh %546 : vector<16x66xf32>
    %cst_183 = arith.constant 1.57079637 : f32
    %548 = vector.broadcast %cst_183 : f32 to vector<16x66xf32>
    %549 = arith.mulf %547, %548 : vector<16x66xf32>
    %cst_184 = arith.constant 1.57079637 : f32
    %550 = vector.broadcast %cst_184 : f32 to vector<16x66xf32>
    %551 = arith.subf %549, %550 : vector<16x66xf32>
    %cst_185 = arith.constant 1.57079637 : f32
    %552 = vector.broadcast %cst_185 : f32 to vector<16x66xf32>
    %553 = arith.addf %551, %552 : vector<16x66xf32>
    %cst_186 = arith.constant -1.5707953 : f32
    %cst_187 = arith.constant 1.5707953 : f32
    %554 = vector.broadcast %cst_186 : f32 to vector<16x66xf32>
    %555 = arith.maximumf %554, %553 : vector<16x66xf32>
    %556 = vector.broadcast %cst_187 : f32 to vector<16x66xf32>
    %557 = arith.minimumf %556, %555 : vector<16x66xf32>
    %cst_188 = arith.constant 5.000000e-01 : f32
    %558 = vector.broadcast %cst_188 : f32 to vector<16x66xf32>
    %559 = arith.mulf %558, %557 : vector<16x66xf32>
    %cst_189 = arith.constant 0.785398185 : f32
    %560 = vector.broadcast %cst_189 : f32 to vector<16x66xf32>
    %561 = arith.addf %559, %560 : vector<16x66xf32>
    %562 = math.sin %561 : vector<16x66xf32>
    %563 = math.cos %561 : vector<16x66xf32>
    %564 = tpu.reciprocal %563 {approx = true} : vector<16x66xf32> -> vector<16x66xf32>
    %565 = arith.mulf %562, %564 : vector<16x66xf32>
    %566 = math.cos %545 : vector<16x66xf32>
    %567 = arith.mulf %565, %566 : vector<16x66xf32>
    %568 = math.sin %545 : vector<16x66xf32>
    %569 = arith.mulf %565, %568 : vector<16x66xf32>
    %c0_190 = arith.constant 0 : index
    %c0_191 = arith.constant 0 : index
    %570 = vector.load %arg31[%c0_190, %c0_191] : memref<1x66xf32, #tpu.memory_space<vmem>>, vector<1x66xf32>
    %571 = vector.broadcast %570 : vector<1x66xf32> to vector<16x66xf32>
    %572 = arith.mulf %567, %571 : vector<16x66xf32>
    %c0_192 = arith.constant 0 : index
    %c0_193 = arith.constant 0 : index
    %573 = vector.load %arg32[%c0_192, %c0_193] : memref<1x66xf32, #tpu.memory_space<vmem>>, vector<1x66xf32>
    %574 = vector.broadcast %573 : vector<1x66xf32> to vector<16x66xf32>
    %575 = arith.mulf %569, %574 : vector<16x66xf32>
    %576 = arith.subf %572, %575 : vector<16x66xf32>
    %577 = vector.extract_strided_slice %576 {offsets = [0, 0], sizes = [16, 33], strides = [1, 1]} : vector<16x66xf32> to vector<16x33xf32>
    %cst_194 = arith.constant dense<0.000000e+00> : vector<16xf32>
    %578 = vector.multi_reduction <add>, %577, %cst_194 [1] : vector<16x33xf32> to vector<16xf32>
    %579 = vector.shape_cast %578 : vector<16xf32> to vector<16x1xf32>
    %580 = vector.extract_strided_slice %576 {offsets = [0, 33], sizes = [16, 33], strides = [1, 1]} : vector<16x66xf32> to vector<16x33xf32>
    %cst_195 = arith.constant dense<0.000000e+00> : vector<16xf32>
    %581 = vector.multi_reduction <add>, %580, %cst_195 [1] : vector<16x33xf32> to vector<16xf32>
    %582 = vector.shape_cast %581 : vector<16xf32> to vector<16x1xf32>
    %583 = tpu.concatenate %579, %582 in 1 : vector<16x1xf32>, vector<16x1xf32> -> vector<16x2xf32>
    %c0_196 = arith.constant 0 : index
    %c0_197 = arith.constant 0 : index
    %584 = vector.load %arg33[%c0_196, %c0_197] : memref<16x1xf32, #tpu.memory_space<vmem>>, vector<16x1xf32>
    %585 = vector.broadcast %584 : vector<16x1xf32> to vector<16x2xf32>
    %586 = arith.mulf %583, %585 : vector<16x2xf32>
    %c0_198 = arith.constant 0 : index
    %c0_199 = arith.constant 0 : index
    %587 = vector.load %arg34[%c0_198, %c0_199] : memref<16x2xf32, #tpu.memory_space<vmem>>, vector<16x2xf32>
    tpu.vector_store %arg34[%c0_198, %c0_199], %586 {strides = array<i32>} : memref<16x2xf32, #tpu.memory_space<vmem>>, vector<16x2xf32>,
    return
  }
}

</mosaic_0001>

<llo_original>
// kernel: neural_laplace_forward.1
$region0: #{neural_laplace_forward.1}
  #allocation0 [shape = 'u32[]', space=smem, size = 0x4, offset = 0x4, fixed_abs, tag = 'smem constant byte address 0x4 - core index']
  #allocation1 [shape = 'u32[72,128]{1,0:T(1,128)}', space=vmem, size = 0x9000, scoped, tag = 'internal scratch']
  %s0 = inlined_call_operand.smem [shape: u32[35], index: -1, kind: input, shape index: {}]
  %s1 = sld [smem:[%s0]]
  %s2 = scalar_lea.smem %s0, 1
  %s3 = sld [smem:[%s2]]
  %s4 = scalar_lea.smem %s0, 2
  %s5 = sld [smem:[%s4]]
  %s6 = scalar_lea.smem %s0, 3
  %s7 = sld [smem:[%s6]]
  %s8 = scalar_lea.smem %s0, 4
  %s9 = sld [smem:[%s8]]
  %s10 = scalar_lea.smem %s0, 5
  %s11 = sld [smem:[%s10]]
  %s12 = scalar_lea.smem %s0, 6
  %s13 = sld [smem:[%s12]]
  %s14 = scalar_lea.smem %s0, 7
  %s15 = sld [smem:[%s14]]
  %s16 = scalar_lea.smem %s0, 8
  %s17 = sld [smem:[%s16]]
  %s18 = scalar_lea.smem %s0, 9
  %s19 = sld [smem:[%s18]]
  %s20 = scalar_lea.smem %s0, 10
  %s21 = sld [smem:[%s20]]
  %s22 = scalar_lea.smem %s0, 11
  %s23 = sld [smem:[%s22]]
  %s24 = scalar_lea.smem %s0, 12
  %s25 = sld [smem:[%s24]]
  %s26 = scalar_lea.smem %s0, 13
  %s27 = sld [smem:[%s26]]
  %s28 = scalar_lea.smem %s0, 14
  %s29 = sld [smem:[%s28]]
  %s30 = scalar_lea.smem %s0, 15
  %s31 = sld [smem:[%s30]]
  %s32 = scalar_lea.smem %s0, 16
  %s33 = sld [smem:[%s32]]
  %s34 = scalar_lea.smem %s0, 17
  %s35 = sld [smem:[%s34]]
  %s36 = scalar_lea.smem %s0, 18
  %s37 = sld [smem:[%s36]]
  %s38 = scalar_lea.smem %s0, 19
  %s39 = sld [smem:[%s38]]
  %s40 = scalar_lea.smem %s0, 20
  %s41 = sld [smem:[%s40]]
  %s42 = scalar_lea.smem %s0, 21
  %s43 = sld [smem:[%s42]]
  %s44 = scalar_lea.smem %s0, 22
  %s45 = sld [smem:[%s44]]
  %s46 = scalar_lea.smem %s0, 23
  %s47 = sld [smem:[%s46]]
  %s48 = scalar_lea.smem %s0, 24
  %s49 = sld [smem:[%s48]]
  %s50 = scalar_lea.smem %s0, 25
  %s51 = sld [smem:[%s50]]
  %s52 = scalar_lea.smem %s0, 26
  %s53 = sld [smem:[%s52]]
  %s54 = scalar_lea.smem %s0, 27
  %s55 = sld [smem:[%s54]]
  %s56 = scalar_lea.smem %s0, 28
  %s57 = sld [smem:[%s56]]
  %s58 = scalar_lea.smem %s0, 29
  %s59 = sld [smem:[%s58]]
  %s60 = scalar_lea.smem %s0, 30
  %s61 = sld [smem:[%s60]]
  %s62 = scalar_lea.smem %s0, 31
  %s63 = sld [smem:[%s62]]
  %s64 = scalar_lea.smem %s0, 32
  %s65 = sld [smem:[%s64]]
  %s66 = scalar_lea.smem %s0, 33
  %s67 = sld [smem:[%s66]]
  %s68 = scalar_lea.smem %s0, 34
  %s69 = sld [smem:[%s68]]
  %s70 = sld [smem:[#allocation0]]
  $region210: #{neural_laplace_forward.1} parent=0
    _
  %s72 = ssub.s32 1, %s70
  %s73 = scalar_select 0, %s72, %s70
  $region1: #{neural_laplace_forward.1} parent=0
    #allocation2 [shape = 'u8[2048]{0}', space=vmem, size = 0x800, scoped, tag = 'input window, operand 3, single buffered']
    #allocation3 [shape = 's32[1]{0}', space=sflag, size = 0x4, scoped, tag = 'scoped memory for neural_laplace_forward.1']
    #allocation4 [shape = 'u8[16384]{0}', space=vmem, size = 0x4000, scoped, tag = 'input window, operand 5, single buffered']
    #allocation5 [shape = 's32[1]{0}', space=sflag, size = 0x4, scoped, tag = 'scoped memory for neural_laplace_forward.1']
    #allocation6 [shape = 'u8[16384]{0}', space=vmem, size = 0x4000, scoped, tag = 'input window, operand 6, single buffered']
    #allocation7 [shape = 'u8[512]{0}', space=vmem, size = 0x400, scoped, tag = 'input window, operand 9, single buffered']
    #allocation8 [shape = 's32[1]{0}', space=sflag, size = 0x4, scoped, tag = 'scoped memory for neural_laplace_forward.1']
    #allocation9 [shape = 'u8[512]{0}', space=vmem, size = 0x400, scoped, tag = 'input window, operand 10, single buffered']
    #allocation10 [shape = 'u8[16384]{0}', space=vmem, size = 0x4000, scoped, tag = 'input window, operand 11, single buffered']
    #allocation11 [shape = 's32[1]{0}', space=sflag, size = 0x4, scoped, tag = 'scoped memory for neural_laplace_forward.1']
    #allocation12 [shape = 'u8[16384]{0}', space=vmem, size = 0x4000, scoped, tag = 'input window, operand 13, single buffered']
    #allocation13 [shape = 'u8[16384]{0}', space=vmem, size = 0x4000, scoped, tag = 'input window, operand 14, single buffered']
    #allocation14 [shape = 's32[1]{0}', space=sflag, size = 0x4, scoped, tag = 'scoped memory for neural_laplace_forward.1']
    #allocation15 [shape = 'u8[16384]{0}', space=vmem, size = 0x4000, scoped, tag = 'input window, operand 15, single buffered']
    #allocation16 [shape = 'u8[16384]{0}', space=vmem, size = 0x4000, scoped, tag = 'input window, operand 16, single buffered']
    #allocation17 [shape = 's32[1]{0}', space=sflag, size = 0x4, scoped, tag = 'scoped memory for neural_laplace_forward.1']
    #allocation18 [shape = 'u8[512]{0}', space=vmem, size = 0x400, scoped, tag = 'input window, operand 17, single buffered']
    #allocation19 [shape = 'u8[512]{0}', space=vmem, size = 0x400, scoped, tag = 'input window, operand 18, single buffered']
    #allocation20 [shape = 's32[1]{0}', space=sflag, size = 0x4, scoped, tag = 'scoped memory for neural_laplace_forward.1']
    #allocation21 [shape = 'u8[512]{0}', space=vmem, size = 0x400, scoped, tag = 'input window, operand 19, single buffered']
    #allocation22 [shape = 'u8[512]{0}', space=vmem, size = 0x400, scoped, tag = 'input window, operand 20, single buffered']
    #allocation23 [shape = 's32[1]{0}', space=sflag, size = 0x4, scoped, tag = 'scoped memory for neural_laplace_forward.1']
    #allocation24 [shape = 'u8[512]{0}', space=vmem, size = 0x400, scoped, tag = 'input window, operand 22, single buffered']
    #allocation25 [shape = 'u8[512]{0}', space=vmem, size = 0x400, scoped, tag = 'input window, operand 25, single buffered']
    #allocation26 [shape = 's32[1]{0}', space=sflag, size = 0x4, scoped, tag = 'scoped memory for neural_laplace_forward.1']
    %74 = vsyncpa [#allocation3], 0
    %75 = vsyncpa [#allocation5], 0
    %76 = vsyncpa [#allocation8], 0
    %77 = vsyncpa [#allocation11], 0
    %78 = vsyncpa [#allocation14], 0
    %79 = vsyncpa [#allocation17], 0
    %80 = vsyncpa [#allocation20], 0
    %81 = vsyncpa [#allocation23], 0
    %82 = vsyncpa [#allocation26], 0
    // Predicated region
    $region2: #{neural_laplace_forward.1} parent=1 // pred_check
      _
    $region3: #{neural_laplace_forward.1} parent=1 // pred_check_branch
      %84 = sbr.rel (0) target = $region5
    $region4: #{neural_laplace_forward.1} parent=1 // pred_region
      _
    $region5: #{neural_laplace_forward.1} parent=1 // pred_fallthru
      _
    // Predicated region
    $region6: #{neural_laplace_forward.1} parent=1 // pred_check
      _
    $region7: #{neural_laplace_forward.1} parent=1 // pred_check_branch
      %86 = sbr.rel (0) target = $region9
    $region8: #{neural_laplace_forward.1} parent=1 // pred_region
      _
    $region9: #{neural_laplace_forward.1} parent=1 // pred_fallthru
      _
    // Predicated region
    $region10: #{neural_laplace_forward.1} parent=1 // pred_check
      _
    $region11: #{neural_laplace_forward.1} parent=1 // pred_check_branch
      %88 = sbr.rel (0) target = $region13
    $region12: #{neural_laplace_forward.1} parent=1 // pred_region
      _
    $region13: #{neural_laplace_forward.1} parent=1 // pred_fallthru
      _
    // Predicated region
    $region14: #{neural_laplace_forward.1} parent=1 // pred_check
      _
    $region15: #{neural_laplace_forward.1} parent=1 // pred_check_branch
      %90 = sbr.rel (0) target = $region17
    $region16: #{neural_laplace_forward.1} parent=1 // pred_region
      %92 = vsyncadd [#allocation3], 0
      %s94 = sshll.u32 %s7, 4
      %s95 = int_to_ptr.hbm [resolvable:$true] %s94
      %s96 = sshll.u32 [#allocation2], 4
      %s97 = int_to_ptr.vmem [resolvable:$true] %s96
      %99 = dma.hbm_to_vmem [thread:$0]  %s95, 64, %s97, [#allocation3]
    $region17: #{neural_laplace_forward.1} parent=1 // pred_fallthru
      _
    // Predicated region
    $region18: #{neural_laplace_forward.1} parent=1 // pred_check
      _
    $region19: #{neural_laplace_forward.1} parent=1 // pred_check_branch
      %101 = sbr.rel (0) target = $region21
    $region20: #{neural_laplace_forward.1} parent=1 // pred_region
      _
    $region21: #{neural_laplace_forward.1} parent=1 // pred_fallthru
      _
    // Predicated region
    $region22: #{neural_laplace_forward.1} parent=1 // pred_check
      _
    $region23: #{neural_laplace_forward.1} parent=1 // pred_check_branch
      %103 = sbr.rel (0) target = $region25
    $region24: #{neural_laplace_forward.1} parent=1 // pred_region
      %105 = vsyncadd [#allocation5], 0
      %s106 = sshll.u32 %s11, 4
      %s107 = int_to_ptr.hbm [resolvable:$true] %s106
      %s108 = sshll.u32 [#allocation4], 4
      %s109 = int_to_ptr.vmem [resolvable:$true] %s108
      %114 = dma.hbm_to_vmem [thread:$0]  %s107, 512, %s109, [#allocation5], 128, 128, 8
    $region25: #{neural_laplace_forward.1} parent=1 // pred_fallthru
      _
    // Predicated region
    $region26: #{neural_laplace_forward.1} parent=1 // pred_check
      _
    $region27: #{neural_laplace_forward.1} parent=1 // pred_check_branch
      %116 = sbr.rel (0) target = $region29
    $region28: #{neural_laplace_forward.1} parent=1 // pred_region
      %118 = vsyncadd [#allocation5], 0
      %s119 = sshll.u32 %s13, 4
      %s120 = int_to_ptr.hbm [resolvable:$true] %s119
      %s121 = sshll.u32 [#allocation6], 4
      %s122 = int_to_ptr.vmem [resolvable:$true] %s121
      %127 = dma.hbm_to_vmem [thread:$0]  %s120, 512, %s122, [#allocation5], 128, 128, 8
    $region29: #{neural_laplace_forward.1} parent=1 // pred_fallthru
      _
    // Predicated region
    $region30: #{neural_laplace_forward.1} parent=1 // pred_check
      _
    $region31: #{neural_laplace_forward.1} parent=1 // pred_check_branch
      %129 = sbr.rel (0) target = $region33
    $region32: #{neural_laplace_forward.1} parent=1 // pred_region
      _
    $region33: #{neural_laplace_forward.1} parent=1 // pred_fallthru
      _
    // Predicated region
    $region34: #{neural_laplace_forward.1} parent=1 // pred_check
      _
    $region35: #{neural_laplace_forward.1} parent=1 // pred_check_branch
      %131 = sbr.rel (0) target = $region37
    $region36: #{neural_laplace_forward.1} parent=1 // pred_region
      _
    $region37: #{neural_laplace_forward.1} parent=1 // pred_fallthru
      _
    // Predicated region
    $region38: #{neural_laplace_forward.1} parent=1 // pred_check
      _
    $region39: #{neural_laplace_forward.1} parent=1 // pred_check_branch
      %133 = sbr.rel (0) target = $region41
    $region40: #{neural_laplace_forward.1} parent=1 // pred_region
      %135 = vsyncadd [#allocation8], 0
      %s137 = sshll.u32 %s19, 4
      %s138 = int_to_ptr.hbm [resolvable:$true] %s137
      %s139 = sshll.u32 [#allocation7], 4
      %s140 = int_to_ptr.vmem [resolvable:$true] %s139
      %142 = dma.hbm_to_vmem [thread:$0]  %s138, 16, %s140, [#allocation8]
    $region41: #{neural_laplace_forward.1} parent=1 // pred_fallthru
      _
    // Predicated region
    $region42: #{neural_laplace_forward.1} parent=1 // pred_check
      _
    $region43: #{neural_laplace_forward.1} parent=1 // pred_check_branch
      %144 = sbr.rel (0) target = $region45
    $region44: #{neural_laplace_forward.1} parent=1 // pred_region
      %146 = vsyncadd [#allocation8], 0
      %s148 = sshll.u32 %s21, 4
      %s149 = int_to_ptr.hbm [resolvable:$true] %s148
      %s150 = sshll.u32 [#allocation9], 4
      %s151 = int_to_ptr.vmem [resolvable:$true] %s150
      %153 = dma.hbm_to_vmem [thread:$0]  %s149, 16, %s151, [#allocation8]
    $region45: #{neural_laplace_forward.1} parent=1 // pred_fallthru
      _
    // Predicated region
    $region46: #{neural_laplace_forward.1} parent=1 // pred_check
      _
    $region47: #{neural_laplace_forward.1} parent=1 // pred_check_branch
      %155 = sbr.rel (0) target = $region49
    $region48: #{neural_laplace_forward.1} parent=1 // pred_region
      %157 = vsyncadd [#allocation11], 0
      %s158 = sshll.u32 %s23, 4
      %s159 = int_to_ptr.hbm [resolvable:$true] %s158
      %s160 = sshll.u32 [#allocation10], 4
      %s161 = int_to_ptr.vmem [resolvable:$true] %s160
      %166 = dma.hbm_to_vmem [thread:$0]  %s159, 512, %s161, [#allocation11], 128, 128, 8
    $region49: #{neural_laplace_forward.1} parent=1 // pred_fallthru
      _
    // Predicated region
    $region50: #{neural_laplace_forward.1} parent=1 // pred_check
      _
    $region51: #{neural_laplace_forward.1} parent=1 // pred_check_branch
      %168 = sbr.rel (0) target = $region53
    $region52: #{neural_laplace_forward.1} parent=1 // pred_region
      _
    $region53: #{neural_laplace_forward.1} parent=1 // pred_fallthru
      _
    // Predicated region
    $region54: #{neural_laplace_forward.1} parent=1 // pred_check
      _
    $region55: #{neural_laplace_forward.1} parent=1 // pred_check_branch
      %170 = sbr.rel (0) target = $region57
    $region56: #{neural_laplace_forward.1} parent=1 // pred_region
      %172 = vsyncadd [#allocation11], 0
      %s173 = sshll.u32 %s27, 4
      %s174 = int_to_ptr.hbm [resolvable:$true] %s173
      %s175 = sshll.u32 [#allocation12], 4
      %s176 = int_to_ptr.vmem [resolvable:$true] %s175
      %181 = dma.hbm_to_vmem [thread:$0]  %s174, 512, %s176, [#allocation11], 128, 128, 8
    $region57: #{neural_laplace_forward.1} parent=1 // pred_fallthru
      _
    // Predicated region
    $region58: #{neural_laplace_forward.1} parent=1 // pred_check
      _
    $region59: #{neural_laplace_forward.1} parent=1 // pred_check_branch
      %183 = sbr.rel (0) target = $region61
    $region60: #{neural_laplace_forward.1} parent=1 // pred_region
      %185 = vsyncadd [#allocation14], 0
      %s186 = sshll.u32 %s29, 4
      %s187 = int_to_ptr.hbm [resolvable:$true] %s186
      %s188 = sshll.u32 [#allocation13], 4
      %s189 = int_to_ptr.vmem [resolvable:$true] %s188
      %194 = dma.hbm_to_vmem [thread:$0]  %s187, 512, %s189, [#allocation14], 128, 128, 8
    $region61: #{neural_laplace_forward.1} parent=1 // pred_fallthru
      _
    // Predicated region
    $region62: #{neural_laplace_forward.1} parent=1 // pred_check
      _
    $region63: #{neural_laplace_forward.1} parent=1 // pred_check_branch
      %196 = sbr.rel (0) target = $region65
    $region64: #{neural_laplace_forward.1} parent=1 // pred_region
      %198 = vsyncadd [#allocation14], 0
      %s199 = sshll.u32 %s31, 4
      %s200 = int_to_ptr.hbm [resolvable:$true] %s199
      %s201 = sshll.u32 [#allocation15], 4
      %s202 = int_to_ptr.vmem [resolvable:$true] %s201
      %207 = dma.hbm_to_vmem [thread:$0]  %s200, 512, %s202, [#allocation14], 128, 128, 8
    $region65: #{neural_laplace_forward.1} parent=1 // pred_fallthru
      _
    // Predicated region
    $region66: #{neural_laplace_forward.1} parent=1 // pred_check
      _
    $region67: #{neural_laplace_forward.1} parent=1 // pred_check_branch
      %209 = sbr.rel (0) target = $region69
    $region68: #{neural_laplace_forward.1} parent=1 // pred_region
      %211 = vsyncadd [#allocation17], 0
      %s212 = sshll.u32 %s33, 4
      %s213 = int_to_ptr.hbm [resolvable:$true] %s212
      %s214 = sshll.u32 [#allocation16], 4
      %s215 = int_to_ptr.vmem [resolvable:$true] %s214
      %220 = dma.hbm_to_vmem [thread:$0]  %s213, 512, %s215, [#allocation17], 128, 128, 8
    $region69: #{neural_laplace_forward.1} parent=1 // pred_fallthru
      _
    // Predicated region
    $region70: #{neural_laplace_forward.1} parent=1 // pred_check
      _
    $region71: #{neural_laplace_forward.1} parent=1 // pred_check_branch
      %222 = sbr.rel (0) target = $region73
    $region72: #{neural_laplace_forward.1} parent=1 // pred_region
      %224 = vsyncadd [#allocation17], 0
      %s226 = sshll.u32 %s35, 4
      %s227 = int_to_ptr.hbm [resolvable:$true] %s226
      %s228 = sshll.u32 [#allocation18], 4
      %s229 = int_to_ptr.vmem [resolvable:$true] %s228
      %231 = dma.hbm_to_vmem [thread:$0]  %s227, 16, %s229, [#allocation17]
    $region73: #{neural_laplace_forward.1} parent=1 // pred_fallthru
      _
    // Predicated region
    $region74: #{neural_laplace_forward.1} parent=1 // pred_check
      _
    $region75: #{neural_laplace_forward.1} parent=1 // pred_check_branch
      %233 = sbr.rel (0) target = $region77
    $region76: #{neural_laplace_forward.1} parent=1 // pred_region
      %235 = vsyncadd [#allocation20], 0
      %s237 = sshll.u32 %s37, 4
      %s238 = int_to_ptr.hbm [resolvable:$true] %s237
      %s239 = sshll.u32 [#allocation19], 4
      %s240 = int_to_ptr.vmem [resolvable:$true] %s239
      %242 = dma.hbm_to_vmem [thread:$0]  %s238, 16, %s240, [#allocation20]
    $region77: #{neural_laplace_forward.1} parent=1 // pred_fallthru
      _
    // Predicated region
    $region78: #{neural_laplace_forward.1} parent=1 // pred_check
      _
    $region79: #{neural_laplace_forward.1} parent=1 // pred_check_branch
      %244 = sbr.rel (0) target = $region81
    $region80: #{neural_laplace_forward.1} parent=1 // pred_region
      %246 = vsyncadd [#allocation20], 0
      %s248 = sshll.u32 %s39, 4
      %s249 = int_to_ptr.hbm [resolvable:$true] %s248
      %s250 = sshll.u32 [#allocation21], 4
      %s251 = int_to_ptr.vmem [resolvable:$true] %s250
      %253 = dma.hbm_to_vmem [thread:$0]  %s249, 16, %s251, [#allocation20]
    $region81: #{neural_laplace_forward.1} parent=1 // pred_fallthru
      _
    // Predicated region
    $region82: #{neural_laplace_forward.1} parent=1 // pred_check
      _
    $region83: #{neural_laplace_forward.1} parent=1 // pred_check_branch
      %255 = sbr.rel (0) target = $region85
    $region84: #{neural_laplace_forward.1} parent=1 // pred_region
      %257 = vsyncadd [#allocation23], 0
      %s259 = sshll.u32 %s41, 4
      %s260 = int_to_ptr.hbm [resolvable:$true] %s259
      %s261 = sshll.u32 [#allocation22], 4
      %s262 = int_to_ptr.vmem [resolvable:$true] %s261
      %264 = dma.hbm_to_vmem [thread:$0]  %s260, 16, %s262, [#allocation23]
    $region85: #{neural_laplace_forward.1} parent=1 // pred_fallthru
      _
    // Predicated region
    $region86: #{neural_laplace_forward.1} parent=1 // pred_check
      _
    $region87: #{neural_laplace_forward.1} parent=1 // pred_check_branch
      %266 = sbr.rel (0) target = $region89
    $region88: #{neural_laplace_forward.1} parent=1 // pred_region
      _
    $region89: #{neural_laplace_forward.1} parent=1 // pred_fallthru
      _
    // Predicated region
    $region90: #{neural_laplace_forward.1} parent=1 // pred_check
      _
    $region91: #{neural_laplace_forward.1} parent=1 // pred_check_branch
      %268 = sbr.rel (0) target = $region93
    $region92: #{neural_laplace_forward.1} parent=1 // pred_region
      %270 = vsyncadd [#allocation23], 0
      %s272 = sshll.u32 %s45, 4
      %s273 = int_to_ptr.hbm [resolvable:$true] %s272
      %s274 = sshll.u32 [#allocation24], 4
      %s275 = int_to_ptr.vmem [resolvable:$true] %s274
      %277 = dma.hbm_to_vmem [thread:$0]  %s273, 16, %s275, [#allocation23]
    $region93: #{neural_laplace_forward.1} parent=1 // pred_fallthru
      _
    // Predicated region
    $region94: #{neural_laplace_forward.1} parent=1 // pred_check
      _
    $region95: #{neural_laplace_forward.1} parent=1 // pred_check_branch
      %279 = sbr.rel (0) target = $region97
    $region96: #{neural_laplace_forward.1} parent=1 // pred_region
      _
    $region97: #{neural_laplace_forward.1} parent=1 // pred_fallthru
      _
    // Predicated region
    $region98: #{neural_laplace_forward.1} parent=1 // pred_check
      _
    $region99: #{neural_laplace_forward.1} parent=1 // pred_check_branch
      %281 = sbr.rel (0) target = $region101
    $region100: #{neural_laplace_forward.1} parent=1 // pred_region
      _
    $region101: #{neural_laplace_forward.1} parent=1 // pred_fallthru
      _
    // Predicated region
    $region102: #{neural_laplace_forward.1} parent=1 // pred_check
      _
    $region103: #{neural_laplace_forward.1} parent=1 // pred_check_branch
      %283 = sbr.rel (0) target = $region105
    $region104: #{neural_laplace_forward.1} parent=1 // pred_region
      %285 = vsyncadd [#allocation26], 0
      %s287 = sshll.u32 %s51, 4
      %s288 = int_to_ptr.hbm [resolvable:$true] %s287
      %s289 = sshll.u32 [#allocation25], 4
      %s290 = int_to_ptr.vmem [resolvable:$true] %s289
      %292 = dma.hbm_to_vmem [thread:$0]  %s288, 16, %s290, [#allocation26]
    $region105: #{neural_laplace_forward.1} parent=1 // pred_fallthru
      _
    // Predicated region
    $region106: #{neural_laplace_forward.1} parent=1 // pred_check
      _
    $region107: #{neural_laplace_forward.1} parent=1 // pred_check_branch
      %294 = sbr.rel (0) target = $region109
    $region108: #{neural_laplace_forward.1} parent=1 // pred_region
      _
    $region109: #{neural_laplace_forward.1} parent=1 // pred_fallthru
      _
    // Predicated region
    $region110: #{neural_laplace_forward.1} parent=1 // pred_check
      _
    $region111: #{neural_laplace_forward.1} parent=1 // pred_check_branch
      %296 = sbr.rel (0) target = $region113
    $region112: #{neural_laplace_forward.1} parent=1 // pred_region
      _
    $region113: #{neural_laplace_forward.1} parent=1 // pred_fallthru
      _
    // Predicated region
    $region114: #{neural_laplace_forward.1} parent=1 // pred_check
      _
    $region115: #{neural_laplace_forward.1} parent=1 // pred_check_branch
      %298 = sbr.rel (0) target = $region117
    $region116: #{neural_laplace_forward.1} parent=1 // pred_region
      _
    $region117: #{neural_laplace_forward.1} parent=1 // pred_fallthru
      _
    // Predicated region
    $region118: #{neural_laplace_forward.1} parent=1 // pred_check
      _
    $region119: #{neural_laplace_forward.1} parent=1 // pred_check_branch
      %300 = sbr.rel (0) target = $region121
    $region120: #{neural_laplace_forward.1} parent=1 // pred_region
      _
    $region121: #{neural_laplace_forward.1} parent=1 // pred_fallthru
      _
    // Predicated region
    $region122: #{neural_laplace_forward.1} parent=1 // pred_check
      _
    $region123: #{neural_laplace_forward.1} parent=1 // pred_check_branch
      %302 = sbr.rel (0) target = $region125
    $region124: #{neural_laplace_forward.1} parent=1 // pred_region
      _
    $region125: #{neural_laplace_forward.1} parent=1 // pred_fallthru
      _
    // Predicated region
    $region126: #{neural_laplace_forward.1} parent=1 // pred_check
      _
    $region127: #{neural_laplace_forward.1} parent=1 // pred_check_branch
      %304 = sbr.rel (0) target = $region129
    $region128: #{neural_laplace_forward.1} parent=1 // pred_region
      _
    $region129: #{neural_laplace_forward.1} parent=1 // pred_fallthru
      _
    // Predicated region
    $region130: #{neural_laplace_forward.1} parent=1 // pred_check
      _
    $region131: #{neural_laplace_forward.1} parent=1 // pred_check_branch
      %306 = sbr.rel (0) target = $region133
    $region132: #{neural_laplace_forward.1} parent=1 // pred_region
      _
    $region133: #{neural_laplace_forward.1} parent=1 // pred_fallthru
      _
    // Predicated region
    $region134: #{neural_laplace_forward.1} parent=1 // pred_check
      _
    $region135: #{neural_laplace_forward.1} parent=1 // pred_check_branch
      %308 = sbr.rel (0) target = $region137
    $region136: #{neural_laplace_forward.1} parent=1 // pred_region
      _
    $region137: #{neural_laplace_forward.1} parent=1 // pred_fallthru
      _
    // Predicated region
    $region138: #{neural_laplace_forward.1} parent=1 // pred_check
      _
    $region139: #{neural_laplace_forward.1} parent=1 // pred_check_branch
      %310 = sbr.rel (0) target = $region141
    $region140: #{neural_laplace_forward.1} parent=1 // pred_region
      %312 = dma.done [#allocation3], 64
    $region141: #{neural_laplace_forward.1} parent=1 // pred_fallthru
      _
    // Predicated region
    $region142: #{neural_laplace_forward.1} parent=1 // pred_check
      _
    $region143: #{neural_laplace_forward.1} parent=1 // pred_check_branch
      %314 = sbr.rel (0) target = $region145
    $region144: #{neural_laplace_forward.1} parent=1 // pred_region
      %316 = dma.done [#allocation5], 512
    $region145: #{neural_laplace_forward.1} parent=1 // pred_fallthru
      _
    // Predicated region
    $region146: #{neural_laplace_forward.1} parent=1 // pred_check
      _
    $region147: #{neural_laplace_forward.1} parent=1 // pred_check_branch
      %318 = sbr.rel (0) target = $region149
    $region148: #{neural_laplace_forward.1} parent=1 // pred_region
      %320 = dma.done [#allocation5], 512
    $region149: #{neural_laplace_forward.1} parent=1 // pred_fallthru
      _
    // Predicated region
    $region150: #{neural_laplace_forward.1} parent=1 // pred_check
      _
    $region151: #{neural_laplace_forward.1} parent=1 // pred_check_branch
      %322 = sbr.rel (0) target = $region153
    $region152: #{neural_laplace_forward.1} parent=1 // pred_region
      %324 = dma.done [#allocation8], 16
    $region153: #{neural_laplace_forward.1} parent=1 // pred_fallthru
      _
    // Predicated region
    $region154: #{neural_laplace_forward.1} parent=1 // pred_check
      _
    $region155: #{neural_laplace_forward.1} parent=1 // pred_check_branch
      %326 = sbr.rel (0) target = $region157
    $region156: #{neural_laplace_forward.1} parent=1 // pred_region
      %328 = dma.done [#allocation8], 16
    $region157: #{neural_laplace_forward.1} parent=1 // pred_fallthru
      _
    // Predicated region
    $region158: #{neural_laplace_forward.1} parent=1 // pred_check
      _
    $region159: #{neural_laplace_forward.1} parent=1 // pred_check_branch
      %330 = sbr.rel (0) target = $region161
    $region160: #{neural_laplace_forward.1} parent=1 // pred_region
      %332 = dma.done [#allocation11], 512
    $region161: #{neural_laplace_forward.1} parent=1 // pred_fallthru
      _
    // Predicated region
    $region162: #{neural_laplace_forward.1} parent=1 // pred_check
      _
    $region163: #{neural_laplace_forward.1} parent=1 // pred_check_branch
      %334 = sbr.rel (0) target = $region165
    $region164: #{neural_laplace_forward.1} parent=1 // pred_region
      %336 = dma.done [#allocation11], 512
    $region165: #{neural_laplace_forward.1} parent=1 // pred_fallthru
      _
    // Predicated region
    $region166: #{neural_laplace_forward.1} parent=1 // pred_check
      _
    $region167: #{neural_laplace_forward.1} parent=1 // pred_check_branch
      %338 = sbr.rel (0) target = $region169
    $region168: #{neural_laplace_forward.1} parent=1 // pred_region
      %340 = dma.done [#allocation14], 512
    $region169: #{neural_laplace_forward.1} parent=1 // pred_fallthru
      _
    // Predicated region
    $region170: #{neural_laplace_forward.1} parent=1 // pred_check
      _
    $region171: #{neural_laplace_forward.1} parent=1 // pred_check_branch
      %342 = sbr.rel (0) target = $region173
    $region172: #{neural_laplace_forward.1} parent=1 // pred_region
      %344 = dma.done [#allocation14], 512
    $region173: #{neural_laplace_forward.1} parent=1 // pred_fallthru
      _
    // Predicated region
    $region174: #{neural_laplace_forward.1} parent=1 // pred_check
      _
    $region175: #{neural_laplace_forward.1} parent=1 // pred_check_branch
      %346 = sbr.rel (0) target = $region177
    $region176: #{neural_laplace_forward.1} parent=1 // pred_region
      %348 = dma.done [#allocation17], 512
    $region177: #{neural_laplace_forward.1} parent=1 // pred_fallthru
      _
    // Predicated region
    $region178: #{neural_laplace_forward.1} parent=1 // pred_check
      _
    $region179: #{neural_laplace_forward.1} parent=1 // pred_check_branch
      %350 = sbr.rel (0) target = $region181
    $region180: #{neural_laplace_forward.1} parent=1 // pred_region
      %352 = dma.done [#allocation17], 16
    $region181: #{neural_laplace_forward.1} parent=1 // pred_fallthru
      _
    // Predicated region
    $region182: #{neural_laplace_forward.1} parent=1 // pred_check
      _
    $region183: #{neural_laplace_forward.1} parent=1 // pred_check_branch
      %354 = sbr.rel (0) target = $region185
    $region184: #{neural_laplace_forward.1} parent=1 // pred_region
      %356 = dma.done [#allocation20], 16
    $region185: #{neural_laplace_forward.1} parent=1 // pred_fallthru
      _
    // Predicated region
    $region186: #{neural_laplace_forward.1} parent=1 // pred_check
      _
    $region187: #{neural_laplace_forward.1} parent=1 // pred_check_branch
      %358 = sbr.rel (0) target = $region189
    $region188: #{neural_laplace_forward.1} parent=1 // pred_region
      %360 = dma.done [#allocation20], 16
    $region189: #{neural_laplace_forward.1} parent=1 // pred_fallthru
      _
    // Predicated region
    $region190: #{neural_laplace_forward.1} parent=1 // pred_check
      _
    $region191: #{neural_laplace_forward.1} parent=1 // pred_check_branch
      %362 = sbr.rel (0) target = $region193
    $region192: #{neural_laplace_forward.1} parent=1 // pred_region
      %364 = dma.done [#allocation23], 16
    $region193: #{neural_laplace_forward.1} parent=1 // pred_fallthru
      _
    // Predicated region
    $region194: #{neural_laplace_forward.1} parent=1 // pred_check
      _
    $region195: #{neural_laplace_forward.1} parent=1 // pred_check_branch
      %366 = sbr.rel (0) target = $region197
    $region196: #{neural_laplace_forward.1} parent=1 // pred_region
      %368 = dma.done [#allocation23], 16
    $region197: #{neural_laplace_forward.1} parent=1 // pred_fallthru
      _
    // Predicated region
    $region198: #{neural_laplace_forward.1} parent=1 // pred_check
      _
    $region199: #{neural_laplace_forward.1} parent=1 // pred_check_branch
      %370 = sbr.rel (0) target = $region201
    $region200: #{neural_laplace_forward.1} parent=1 // pred_region
      %372 = dma.done [#allocation26], 16
    $region201: #{neural_laplace_forward.1} parent=1 // pred_fallthru
      _
    %v373 = vld [vmem:[%s1] sm:$0xff]
    %v374 = vld [vmem:[%s1 + $0x8] sm:$0xff]
    %v375 = vld [vmem:[%s3] sm:$0xf]
    %v376 = vld [vmem:[%s15] sm:$0x1]
    %v378 = vperm.slane %v376, 0
    %vm380 = vcmask 31744
    %v382 = vsel %vm380, %v373, 0
    %v385 = vsel %vm380, %v374, 0
    %vm387 = vcmask 1043456
    %v389 = vsel %vm387, %v375, 0
    %391 = vmatpush.msra.mxu0 0.0
    %392 = vmatpush.msra.mxu0 0.0
    %393 = vmatpush.msra.mxu0 0.0
    %394 = vmatpush.msra.mxu0 0.0
    %395 = vmatpush.msra.mxu0 0.0
    %396 = vmatpush.msra.mxu0 0.0
    %397 = vmatpush.msra.mxu0 0.0
    %398 = vmatpush.msra.mxu0 0.0
    %399 = vmatpush.msra.mxu0 0.0
    %400 = vmatpush.msra.mxu0 0.0
    %401 = vmatpush.msra.mxu0 0.0
    %402 = vmatpush.msra.mxu0 0.0
    %403 = vmatpush.msra.mxu0 0.0
    %404 = vmatpush.msra.mxu0 0.0
    %405 = vmatpush.msra.mxu0 0.0
    %406 = vmatpush.msra.mxu0 %v389
    %407 = vmatmul.f32.gmra.mxu0 %v382
    %v408 = vpop.f32.mrf.mxu0
    %v409 = vadd.f32 %v378, %v408
    %410 = vmatmul.f32.gmra.mxu0 %v385
    %v411 = vpop.f32.mrf.mxu0
    %v412 = vadd.f32 %v378, %v411
    %413 = vdwg.mxu0
    %v414 = vld [vmem:[%s5] sm:$0xf]
    %v415 = vld [vmem:[%s17] sm:$0x1]
    %v417 = vperm.slane %v415, 0
    %v420 = vsel %vm387, %v414, 0
    %422 = vmatpush.msra.mxu0 0.0
    %423 = vmatpush.msra.mxu0 0.0
    %424 = vmatpush.msra.mxu0 0.0
    %425 = vmatpush.msra.mxu0 0.0
    %426 = vmatpush.msra.mxu0 0.0
    %427 = vmatpush.msra.mxu0 0.0
    %428 = vmatpush.msra.mxu0 0.0
    %429 = vmatpush.msra.mxu0 0.0
    %430 = vmatpush.msra.mxu0 0.0
    %431 = vmatpush.msra.mxu0 0.0
    %432 = vmatpush.msra.mxu0 0.0
    %433 = vmatpush.msra.mxu0 0.0
    %434 = vmatpush.msra.mxu0 0.0
    %435 = vmatpush.msra.mxu0 0.0
    %436 = vmatpush.msra.mxu0 0.0
    %437 = vmatpush.msra.mxu0 %v420
    %438 = vmatmul.f32.gmra.mxu0 %v382
    %v439 = vpop.f32.mrf.mxu0
    %v440 = vadd.f32 %v417, %v439
    %441 = vmatmul.f32.gmra.mxu0 %v385
    %v442 = vpop.f32.mrf.mxu0
    %v443 = vadd.f32 %v417, %v442
    %444 = vdwg.mxu0
    %v445 = vld [vmem:[#allocation2] sm:$0xf]
    %v446 = vld [vmem:[#allocation7] sm:$0x1]
    %v448 = vperm.slane %v446, 0
    %v451 = vsel %vm387, %v445, 0
    %453 = vmatpush.msra.mxu0 0.0
    %454 = vmatpush.msra.mxu0 0.0
    %455 = vmatpush.msra.mxu0 0.0
    %456 = vmatpush.msra.mxu0 0.0
    %457 = vmatpush.msra.mxu0 0.0
    %458 = vmatpush.msra.mxu0 0.0
    %459 = vmatpush.msra.mxu0 0.0
    %460 = vmatpush.msra.mxu0 0.0
    %461 = vmatpush.msra.mxu0 0.0
    %462 = vmatpush.msra.mxu0 0.0
    %463 = vmatpush.msra.mxu0 0.0
    %464 = vmatpush.msra.mxu0 0.0
    %465 = vmatpush.msra.mxu0 0.0
    %466 = vmatpush.msra.mxu0 0.0
    %467 = vmatpush.msra.mxu0 0.0
    %468 = vmatpush.msra.mxu0 %v451
    %469 = vmatmul.f32.gmra.mxu0 %v382
    %v470 = vpop.f32.mrf.mxu0
    %v471 = vadd.f32 %v448, %v470
    %472 = vmatmul.f32.gmra.mxu0 %v385
    %v473 = vpop.f32.mrf.mxu0
    %v474 = vadd.f32 %v448, %v473
    %475 = vdwg.mxu0
    %v476 = vld [vmem:[%s9] sm:$0xff]
    %v477 = vld [vmem:[%s9 + $0x8] sm:$0xff]
    %v478 = vld [vmem:[%s9 + $0x10] sm:$0xff]
    %v479 = vld [vmem:[%s9 + $0x18] sm:$0xff]
    %v480 = vld [vmem:[#allocation4] sm:$0xff]
    %v481 = vld [vmem:[#allocation4 + $0x8] sm:$0xff]
    %v482 = vld [vmem:[#allocation4 + $0x10] sm:$0xff]
    %v483 = vld [vmem:[#allocation4 + $0x18] sm:$0xff]
    %v484 = vld [vmem:[#allocation6] sm:$0xff]
    %v485 = vld [vmem:[#allocation6 + $0x8] sm:$0xff]
    %v486 = vld [vmem:[#allocation6 + $0x10] sm:$0xff]
    %v487 = vld [vmem:[#allocation6 + $0x18] sm:$0xff]
    %v488 = vld [vmem:[#allocation9] sm:$0x1]
    %v489 = vld [vmem:[#allocation10] sm:$0xff]
    %v490 = vld [vmem:[#allocation10 + $0x8] sm:$0xff]
    %v491 = vld [vmem:[#allocation10 + $0x10] sm:$0xff]
    %v492 = vld [vmem:[#allocation10 + $0x18] sm:$0xff]
    %v493 = vld [vmem:[%s25] sm:$0xff]
    %v494 = vld [vmem:[%s25 + $0x8] sm:$0xff]
    %v495 = vld [vmem:[%s25 + $0x10] sm:$0xff]
    %v496 = vld [vmem:[%s25 + $0x18] sm:$0xff]
    %v497 = vld [vmem:[#allocation12] sm:$0xff]
    %v498 = vld [vmem:[#allocation12 + $0x8] sm:$0xff]
    %v499 = vld [vmem:[#allocation12 + $0x10] sm:$0xff]
    %v500 = vld [vmem:[#allocation12 + $0x18] sm:$0xff]
    %v501 = vld [vmem:[#allocation13] sm:$0xff]
    %v502 = vld [vmem:[#allocation13 + $0x8] sm:$0xff]
    %v503 = vld [vmem:[#allocation13 + $0x10] sm:$0xff]
    %v504 = vld [vmem:[#allocation13 + $0x18] sm:$0xff]
    %v505 = vld [vmem:[#allocation15] sm:$0xff]
    %v506 = vld [vmem:[#allocation15 + $0x8] sm:$0xff]
    %v507 = vld [vmem:[#allocation15 + $0x10] sm:$0xff]
    %v508 = vld [vmem:[#allocation15 + $0x18] sm:$0xff]
    %v509 = vld [vmem:[#allocation16] sm:$0xff]
    %v510 = vld [vmem:[#allocation16 + $0x8] sm:$0xff]
    %v511 = vld [vmem:[#allocation16 + $0x10] sm:$0xff]
    %v512 = vld [vmem:[#allocation16 + $0x18] sm:$0xff]
    %v513 = vld [vmem:[#allocation18] sm:$0x1]
    %v514 = vld [vmem:[#allocation19] sm:$0x1]
    %v515 = vld [vmem:[#allocation21] sm:$0x1]
    %v516 = vld [vmem:[#allocation22] sm:$0x1]
    %v517 = vxor.u32 %v409, 2147483648
    %v518 = vmul.f32 %v517, 1.442695
    %v519 = vpow.pop %v518
    %v520 = vadd.f32 %v519, 1.0
    %v521 = vrcp.pop %v520
    %v522 = vmul.f32 %v520, %v521
    %v523 = vsub.f32 1.0, %v522
    %v524 = vmul.f32 %v521, %v523
    %v525 = vadd.f32 %v521, %v524
    %vm526 = vweird.f32 %v520
    %vm527 = vweird.f32 %v521
    %vm528 = vmor %vm526, %vm527
    %v529 = vsel %vm528, %v521, %v525
    %v530 = vand.u32 2147483647, %v520
    %vm531 = vcmp.eq.f32.partialorder %v530, 8.507059e+37
    %v532 = vand.u32 %v520, 2147483648
    %v533 = vor.u32 1.1754944e-38, %v532
    %v534 = vsel %vm531, %v533, %v529
    %v535 = vmul.f32 1.0, %v534
    %v536 = vxor.u32 %v440, 2147483648
    %v537 = vmul.f32 %v536, 1.442695
    %v538 = vpow.pop %v537
    %v539 = vadd.f32 %v538, 1.0
    %v540 = vrcp.pop %v539
    %v541 = vmul.f32 %v539, %v540
    %v542 = vsub.f32 1.0, %v541
    %v543 = vmul.f32 %v540, %v542
    %v544 = vadd.f32 %v540, %v543
    %vm545 = vweird.f32 %v539
    %vm546 = vweird.f32 %v540
    %vm547 = vmor %vm545, %vm546
    %v548 = vsel %vm547, %v540, %v544
    %v549 = vand.u32 2147483647, %v539
    %vm550 = vcmp.eq.f32.partialorder %v549, 8.507059e+37
    %v551 = vand.u32 %v539, 2147483648
    %v552 = vor.u32 1.1754944e-38, %v551
    %v553 = vsel %vm550, %v552, %v548
    %v554 = vmul.f32 1.0, %v553
    %v556 = vperm.slane %v488, 0
    %v558 = vmul.f32 %v535, %v556
    %v559 = vadd.f32 %v471, %v558
    %v560 = vtanh.pop %v559
    %v561 = vsub.f32 1.0, %v554
    %v562 = vmul.f32 %v561, %v560
    %v564 = vperm.slane %v513, 0
    %vm566 = vcmask 261120
    %v568 = vsel %vm566, %v562, 0
    %570 = vmatpush.msra.mxu0 0.0
    %571 = vmatpush.msra.mxu0 0.0
    %572 = vmatpush.msra.mxu0 0.0
    %573 = vmatpush.msra.mxu0 0.0
    %574 = vmatpush.msra.mxu0 0.0
    %575 = vmatpush.msra.mxu0 0.0
    %576 = vmatpush.msra.mxu0 0.0
    %577 = vmatpush.msra.mxu0 0.0
    %578 = vmatpush.msra.mxu0 0.0
    %579 = vmatpush.msra.mxu0 0.0
    %580 = vmatpush.msra.mxu0 0.0
    %581 = vmatpush.msra.mxu0 0.0
    %582 = vmatpush.msra.mxu0 %v492
    %583 = vmatpush.msra.mxu0 %v491
    %584 = vmatpush.msra.mxu0 %v490
    %585 = vmatpush.msra.mxu0 %v489
    %586 = vmatmul.f32.gmra.mxu0 %v568
    %v587 = vpop.f32.mrf.mxu0
    %v588 = vadd.f32 %v564, %v587
    %589 = vdwg.mxu0
    %v591 = vperm.slane %v514, 0
    %593 = vmatpush.msra.mxu0 0.0
    %594 = vmatpush.msra.mxu0 0.0
    %595 = vmatpush.msra.mxu0 0.0
    %596 = vmatpush.msra.mxu0 0.0
    %597 = vmatpush.msra.mxu0 0.0
    %598 = vmatpush.msra.mxu0 0.0
    %599 = vmatpush.msra.mxu0 0.0
    %600 = vmatpush.msra.mxu0 0.0
    %601 = vmatpush.msra.mxu0 0.0
    %602 = vmatpush.msra.mxu0 0.0
    %603 = vmatpush.msra.mxu0 0.0
    %604 = vmatpush.msra.mxu0 0.0
    %605 = vmatpush.msra.mxu0 %v496
    %606 = vmatpush.msra.mxu0 %v495
    %607 = vmatpush.msra.mxu0 %v494
    %608 = vmatpush.msra.mxu0 %v493
    %609 = vmatmul.f32.gmra.mxu0 %v568
    %v610 = vpop.f32.mrf.mxu0
    %v611 = vadd.f32 %v591, %v610
    %612 = vdwg.mxu0
    %v614 = vperm.slane %v515, 0
    %616 = vmatpush.msra.mxu0 0.0
    %617 = vmatpush.msra.mxu0 0.0
    %618 = vmatpush.msra.mxu0 0.0
    %619 = vmatpush.msra.mxu0 0.0
    %620 = vmatpush.msra.mxu0 0.0
    %621 = vmatpush.msra.mxu0 0.0
    %622 = vmatpush.msra.mxu0 0.0
    %623 = vmatpush.msra.mxu0 0.0
    %624 = vmatpush.msra.mxu0 0.0
    %625 = vmatpush.msra.mxu0 0.0
    %626 = vmatpush.msra.mxu0 0.0
    %627 = vmatpush.msra.mxu0 0.0
    %628 = vmatpush.msra.mxu0 %v500
    %629 = vmatpush.msra.mxu0 %v499
    %630 = vmatpush.msra.mxu0 %v498
    %631 = vmatpush.msra.mxu0 %v497
    %632 = vmatmul.f32.gmra.mxu0 %v568
    %v633 = vpop.f32.mrf.mxu0
    %v634 = vadd.f32 %v614, %v633
    %635 = vdwg.mxu0
    %v636 = vxor.u32 %v588, 2147483648
    %v637 = vmul.f32 %v636, 1.442695
    %v638 = vpow.pop %v637
    %v639 = vadd.f32 %v638, 1.0
    %v640 = vrcp.pop %v639
    %v641 = vmul.f32 %v639, %v640
    %v642 = vsub.f32 1.0, %v641
    %v643 = vmul.f32 %v640, %v642
    %v644 = vadd.f32 %v640, %v643
    %vm645 = vweird.f32 %v639
    %vm646 = vweird.f32 %v640
    %vm647 = vmor %vm645, %vm646
    %v648 = vsel %vm647, %v640, %v644
    %v649 = vand.u32 2147483647, %v639
    %vm650 = vcmp.eq.f32.partialorder %v649, 8.507059e+37
    %v651 = vand.u32 %v639, 2147483648
    %v652 = vor.u32 1.1754944e-38, %v651
    %v653 = vsel %vm650, %v652, %v648
    %v654 = vmul.f32 1.0, %v653
    %v655 = vxor.u32 %v611, 2147483648
    %v656 = vmul.f32 %v655, 1.442695
    %v657 = vpow.pop %v656
    %v658 = vadd.f32 %v657, 1.0
    %v659 = vrcp.pop %v658
    %v660 = vmul.f32 %v658, %v659
    %v661 = vsub.f32 1.0, %v660
    %v662 = vmul.f32 %v659, %v661
    %v663 = vadd.f32 %v659, %v662
    %vm664 = vweird.f32 %v658
    %vm665 = vweird.f32 %v659
    %vm666 = vmor %vm664, %vm665
    %v667 = vsel %vm666, %v659, %v663
    %v668 = vand.u32 2147483647, %v658
    %vm669 = vcmp.eq.f32.partialorder %v668, 8.507059e+37
    %v670 = vand.u32 %v658, 2147483648
    %v671 = vor.u32 1.1754944e-38, %v670
    %v672 = vsel %vm669, %v671, %v667
    %v673 = vmul.f32 1.0, %v672
    %v675 = vperm.slane %v516, 0
    %v677 = vmul.f32 %v654, %v675
    %v678 = vadd.f32 %v634, %v677
    %v679 = vtanh.pop %v678
    %v680 = vsub.f32 1.0, %v673
    %v681 = vmul.f32 %v680, %v679
    %682 = vmatpush.msra.mxu0 0.0
    %683 = vmatpush.msra.mxu0 0.0
    %684 = vmatpush.msra.mxu0 0.0
    %685 = vmatpush.msra.mxu0 0.0
    %686 = vmatpush.msra.mxu0 0.0
    %687 = vmatpush.msra.mxu0 0.0
    %688 = vmatpush.msra.mxu0 0.0
    %689 = vmatpush.msra.mxu0 0.0
    %690 = vmatpush.msra.mxu0 0.0
    %691 = vmatpush.msra.mxu0 0.0
    %692 = vmatpush.msra.mxu0 0.0
    %693 = vmatpush.msra.mxu0 0.0
    %694 = vmatpush.msra.mxu0 %v479
    %695 = vmatpush.msra.mxu0 %v478
    %696 = vmatpush.msra.mxu0 %v477
    %697 = vmatpush.msra.mxu0 %v476
    %698 = vmatmul.f32.gmra.mxu0 %v568
    %v699 = vpop.f32.mrf.mxu0
    %v700 = vadd.f32 0.0, %v699
    %701 = vdwg.mxu0
    %v703 = vrot.slane %v700, 6
    %v705 = vadd.f32 %v409, %v703
    %v706 = vxor.u32 %v705, 2147483648
    %v707 = vmul.f32 %v706, 1.442695
    %v708 = vpow.pop %v707
    %v709 = vadd.f32 %v708, 1.0
    %v710 = vrcp.pop %v709
    %v711 = vmul.f32 %v709, %v710
    %v712 = vsub.f32 1.0, %v711
    %v713 = vmul.f32 %v710, %v712
    %v714 = vadd.f32 %v710, %v713
    %vm715 = vweird.f32 %v709
    %vm716 = vweird.f32 %v710
    %vm717 = vmor %vm715, %vm716
    %v718 = vsel %vm717, %v710, %v714
    %v719 = vand.u32 2147483647, %v709
    %vm720 = vcmp.eq.f32.partialorder %v719, 8.507059e+37
    %v721 = vand.u32 %v709, 2147483648
    %v722 = vor.u32 1.1754944e-38, %v721
    %v723 = vsel %vm720, %v722, %v718
    %v724 = vmul.f32 1.0, %v723
    %725 = vmatpush.msra.mxu0 0.0
    %726 = vmatpush.msra.mxu0 0.0
    %727 = vmatpush.msra.mxu0 0.0
    %728 = vmatpush.msra.mxu0 0.0
    %729 = vmatpush.msra.mxu0 0.0
    %730 = vmatpush.msra.mxu0 0.0
    %731 = vmatpush.msra.mxu0 0.0
    %732 = vmatpush.msra.mxu0 0.0
    %733 = vmatpush.msra.mxu0 0.0
    %734 = vmatpush.msra.mxu0 0.0
    %735 = vmatpush.msra.mxu0 0.0
    %736 = vmatpush.msra.mxu0 0.0
    %737 = vmatpush.msra.mxu0 %v483
    %738 = vmatpush.msra.mxu0 %v482
    %739 = vmatpush.msra.mxu0 %v481
    %740 = vmatpush.msra.mxu0 %v480
    %741 = vmatmul.f32.gmra.mxu0 %v568
    %v742 = vpop.f32.mrf.mxu0
    %v743 = vadd.f32 0.0, %v742
    %744 = vdwg.mxu0
    %v746 = vrot.slane %v743, 6
    %v748 = vadd.f32 %v440, %v746
    %v749 = vxor.u32 %v748, 2147483648
    %v750 = vmul.f32 %v749, 1.442695
    %v751 = vpow.pop %v750
    %v752 = vadd.f32 %v751, 1.0
    %v753 = vrcp.pop %v752
    %v754 = vmul.f32 %v752, %v753
    %v755 = vsub.f32 1.0, %v754
    %v756 = vmul.f32 %v753, %v755
    %v757 = vadd.f32 %v753, %v756
    %vm758 = vweird.f32 %v752
    %vm759 = vweird.f32 %v753
    %vm760 = vmor %vm758, %vm759
    %v761 = vsel %vm760, %v753, %v757
    %v762 = vand.u32 2147483647, %v752
    %vm763 = vcmp.eq.f32.partialorder %v762, 8.507059e+37
    %v764 = vand.u32 %v752, 2147483648
    %v765 = vor.u32 1.1754944e-38, %v764
    %v766 = vsel %vm763, %v765, %v761
    %v767 = vmul.f32 1.0, %v766
    %768 = vmatpush.msra.mxu0 0.0
    %769 = vmatpush.msra.mxu0 0.0
    %770 = vmatpush.msra.mxu0 0.0
    %771 = vmatpush.msra.mxu0 0.0
    %772 = vmatpush.msra.mxu0 0.0
    %773 = vmatpush.msra.mxu0 0.0
    %774 = vmatpush.msra.mxu0 0.0
    %775 = vmatpush.msra.mxu0 0.0
    %776 = vmatpush.msra.mxu0 0.0
    %777 = vmatpush.msra.mxu0 0.0
    %778 = vmatpush.msra.mxu0 0.0
    %779 = vmatpush.msra.mxu0 0.0
    %780 = vmatpush.msra.mxu0 %v487
    %781 = vmatpush.msra.mxu0 %v486
    %782 = vmatpush.msra.mxu0 %v485
    %783 = vmatpush.msra.mxu0 %v484
    %784 = vmatmul.f32.gmra.mxu0 %v568
    %v785 = vpop.f32.mrf.mxu0
    %v786 = vadd.f32 %v556, %v785
    %787 = vdwg.mxu0
    %v789 = vrot.slane %v786, 6
    %v791 = vmul.f32 %v724, %v789
    %v792 = vadd.f32 %v471, %v791
    %v793 = vtanh.pop %v792
    %v794 = vsub.f32 1.0, %v767
    %v795 = vmul.f32 %v794, %v793
    %v796 = vrot.slane %v562, 6
    %v798 = vmul.f32 %v767, %v796
    %v799 = vadd.f32 %v795, %v798
    %v801 = vrot.slane %v799, 2
    %v802 = vsel %vm566, %v801, 0
    %804 = vmatpush.msra.mxu0 0.0
    %805 = vmatpush.msra.mxu0 0.0
    %806 = vmatpush.msra.mxu0 0.0
    %807 = vmatpush.msra.mxu0 0.0
    %808 = vmatpush.msra.mxu0 0.0
    %809 = vmatpush.msra.mxu0 0.0
    %810 = vmatpush.msra.mxu0 0.0
    %811 = vmatpush.msra.mxu0 0.0
    %812 = vmatpush.msra.mxu0 0.0
    %813 = vmatpush.msra.mxu0 0.0
    %814 = vmatpush.msra.mxu0 0.0
    %815 = vmatpush.msra.mxu0 0.0
    %816 = vmatpush.msra.mxu0 %v492
    %817 = vmatpush.msra.mxu0 %v491
    %818 = vmatpush.msra.mxu0 %v490
    %819 = vmatpush.msra.mxu0 %v489
    %820 = vmatmul.f32.gmra.mxu0 %v802
    %v821 = vpop.f32.mrf.mxu0
    %v822 = vadd.f32 %v564, %v821
    %823 = vdwg.mxu0
    %824 = vmatpush.msra.mxu0 0.0
    %825 = vmatpush.msra.mxu0 0.0
    %826 = vmatpush.msra.mxu0 0.0
    %827 = vmatpush.msra.mxu0 0.0
    %828 = vmatpush.msra.mxu0 0.0
    %829 = vmatpush.msra.mxu0 0.0
    %830 = vmatpush.msra.mxu0 0.0
    %831 = vmatpush.msra.mxu0 0.0
    %832 = vmatpush.msra.mxu0 0.0
    %833 = vmatpush.msra.mxu0 0.0
    %834 = vmatpush.msra.mxu0 0.0
    %835 = vmatpush.msra.mxu0 0.0
    %836 = vmatpush.msra.mxu0 %v496
    %837 = vmatpush.msra.mxu0 %v495
    %838 = vmatpush.msra.mxu0 %v494
    %839 = vmatpush.msra.mxu0 %v493
    %840 = vmatmul.f32.gmra.mxu0 %v802
    %v841 = vpop.f32.mrf.mxu0
    %v842 = vadd.f32 %v591, %v841
    %843 = vdwg.mxu0
    %844 = vmatpush.msra.mxu0 0.0
    %845 = vmatpush.msra.mxu0 0.0
    %846 = vmatpush.msra.mxu0 0.0
    %847 = vmatpush.msra.mxu0 0.0
    %848 = vmatpush.msra.mxu0 0.0
    %849 = vmatpush.msra.mxu0 0.0
    %850 = vmatpush.msra.mxu0 0.0
    %851 = vmatpush.msra.mxu0 0.0
    %852 = vmatpush.msra.mxu0 0.0
    %853 = vmatpush.msra.mxu0 0.0
    %854 = vmatpush.msra.mxu0 0.0
    %855 = vmatpush.msra.mxu0 0.0
    %856 = vmatpush.msra.mxu0 %v500
    %857 = vmatpush.msra.mxu0 %v499
    %858 = vmatpush.msra.mxu0 %v498
    %859 = vmatpush.msra.mxu0 %v497
    %860 = vmatmul.f32.gmra.mxu0 %v802
    %v861 = vpop.f32.mrf.mxu0
    %v862 = vadd.f32 %v614, %v861
    %863 = vdwg.mxu0
    %v865 = vsel %vm566, %v681, 0
    %867 = vmatpush.msra.mxu0 0.0
    %868 = vmatpush.msra.mxu0 0.0
    %869 = vmatpush.msra.mxu0 0.0
    %870 = vmatpush.msra.mxu0 0.0
    %871 = vmatpush.msra.mxu0 0.0
    %872 = vmatpush.msra.mxu0 0.0
    %873 = vmatpush.msra.mxu0 0.0
    %874 = vmatpush.msra.mxu0 0.0
    %875 = vmatpush.msra.mxu0 0.0
    %876 = vmatpush.msra.mxu0 0.0
    %877 = vmatpush.msra.mxu0 0.0
    %878 = vmatpush.msra.mxu0 0.0
    %879 = vmatpush.msra.mxu0 %v504
    %880 = vmatpush.msra.mxu0 %v503
    %881 = vmatpush.msra.mxu0 %v502
    %882 = vmatpush.msra.mxu0 %v501
    %883 = vmatmul.f32.gmra.mxu0 %v865
    %v884 = vpop.f32.mrf.mxu0
    %v885 = vadd.f32 0.0, %v884
    %886 = vdwg.mxu0
    %v887 = vadd.f32 %v822, %v885
    %v888 = vxor.u32 %v887, 2147483648
    %v889 = vmul.f32 %v888, 1.442695
    %v890 = vpow.pop %v889
    %v891 = vadd.f32 %v890, 1.0
    %v892 = vrcp.pop %v891
    %v893 = vmul.f32 %v891, %v892
    %v894 = vsub.f32 1.0, %v893
    %v895 = vmul.f32 %v892, %v894
    %v896 = vadd.f32 %v892, %v895
    %vm897 = vweird.f32 %v891
    %vm898 = vweird.f32 %v892
    %vm899 = vmor %vm897, %vm898
    %v900 = vsel %vm899, %v892, %v896
    %v901 = vand.u32 2147483647, %v891
    %vm902 = vcmp.eq.f32.partialorder %v901, 8.507059e+37
    %v903 = vand.u32 %v891, 2147483648
    %v904 = vor.u32 1.1754944e-38, %v903
    %v905 = vsel %vm902, %v904, %v900
    %v906 = vmul.f32 1.0, %v905
    %907 = vmatpush.msra.mxu0 0.0
    %908 = vmatpush.msra.mxu0 0.0
    %909 = vmatpush.msra.mxu0 0.0
    %910 = vmatpush.msra.mxu0 0.0
    %911 = vmatpush.msra.mxu0 0.0
    %912 = vmatpush.msra.mxu0 0.0
    %913 = vmatpush.msra.mxu0 0.0
    %914 = vmatpush.msra.mxu0 0.0
    %915 = vmatpush.msra.mxu0 0.0
    %916 = vmatpush.msra.mxu0 0.0
    %917 = vmatpush.msra.mxu0 0.0
    %918 = vmatpush.msra.mxu0 0.0
    %919 = vmatpush.msra.mxu0 %v508
    %920 = vmatpush.msra.mxu0 %v507
    %921 = vmatpush.msra.mxu0 %v506
    %922 = vmatpush.msra.mxu0 %v505
    %923 = vmatmul.f32.gmra.mxu0 %v865
    %v924 = vpop.f32.mrf.mxu0
    %v925 = vadd.f32 0.0, %v924
    %926 = vdwg.mxu0
    %v927 = vadd.f32 %v842, %v925
    %v928 = vxor.u32 %v927, 2147483648
    %v929 = vmul.f32 %v928, 1.442695
    %v930 = vpow.pop %v929
    %v931 = vadd.f32 %v930, 1.0
    %v932 = vrcp.pop %v931
    %v933 = vmul.f32 %v931, %v932
    %v934 = vsub.f32 1.0, %v933
    %v935 = vmul.f32 %v932, %v934
    %v936 = vadd.f32 %v932, %v935
    %vm937 = vweird.f32 %v931
    %vm938 = vweird.f32 %v932
    %vm939 = vmor %vm937, %vm938
    %v940 = vsel %vm939, %v932, %v936
    %v941 = vand.u32 2147483647, %v931
    %vm942 = vcmp.eq.f32.partialorder %v941, 8.507059e+37
    %v943 = vand.u32 %v931, 2147483648
    %v944 = vor.u32 1.1754944e-38, %v943
    %v945 = vsel %vm942, %v944, %v940
    %v946 = vmul.f32 1.0, %v945
    %947 = vmatpush.msra.mxu0 0.0
    %948 = vmatpush.msra.mxu0 0.0
    %949 = vmatpush.msra.mxu0 0.0
    %950 = vmatpush.msra.mxu0 0.0
    %951 = vmatpush.msra.mxu0 0.0
    %952 = vmatpush.msra.mxu0 0.0
    %953 = vmatpush.msra.mxu0 0.0
    %954 = vmatpush.msra.mxu0 0.0
    %955 = vmatpush.msra.mxu0 0.0
    %956 = vmatpush.msra.mxu0 0.0
    %957 = vmatpush.msra.mxu0 0.0
    %958 = vmatpush.msra.mxu0 0.0
    %959 = vmatpush.msra.mxu0 %v512
    %960 = vmatpush.msra.mxu0 %v511
    %961 = vmatpush.msra.mxu0 %v510
    %962 = vmatpush.msra.mxu0 %v509
    %963 = vmatmul.f32.gmra.mxu0 %v865
    %v964 = vpop.f32.mrf.mxu0
    %v965 = vadd.f32 %v675, %v964
    %966 = vdwg.mxu0
    %v967 = vmul.f32 %v906, %v965
    %v968 = vadd.f32 %v862, %v967
    %v969 = vtanh.pop %v968
    %v970 = vsub.f32 1.0, %v946
    %v971 = vmul.f32 %v970, %v969
    %v972 = vmul.f32 %v946, %v681
    %v973 = vadd.f32 %v971, %v972
    %974 = vmatpush.msra.mxu0 0.0
    %975 = vmatpush.msra.mxu0 0.0
    %976 = vmatpush.msra.mxu0 0.0
    %977 = vmatpush.msra.mxu0 0.0
    %978 = vmatpush.msra.mxu0 0.0
    %979 = vmatpush.msra.mxu0 0.0
    %980 = vmatpush.msra.mxu0 0.0
    %981 = vmatpush.msra.mxu0 0.0
    %982 = vmatpush.msra.mxu0 0.0
    %983 = vmatpush.msra.mxu0 0.0
    %984 = vmatpush.msra.mxu0 0.0
    %985 = vmatpush.msra.mxu0 0.0
    %986 = vmatpush.msra.mxu0 %v479
    %987 = vmatpush.msra.mxu0 %v478
    %988 = vmatpush.msra.mxu0 %v477
    %989 = vmatpush.msra.mxu0 %v476
    %990 = vmatmul.f32.gmra.mxu0 %v802
    %v991 = vpop.f32.mrf.mxu0
    %v992 = vadd.f32 0.0, %v991
    %993 = vdwg.mxu0
    %v995 = vrot.slane %v992, 4
    %v997 = vadd.f32 %v409, %v995
    %v998 = vxor.u32 %v997, 2147483648
    %v999 = vmul.f32 %v998, 1.442695
    %v1000 = vpow.pop %v999
    %v1001 = vadd.f32 %v1000, 1.0
    %v1002 = vrcp.pop %v1001
    %v1003 = vmul.f32 %v1001, %v1002
    %v1004 = vsub.f32 1.0, %v1003
    %v1005 = vmul.f32 %v1002, %v1004
    %v1006 = vadd.f32 %v1002, %v1005
    %vm1007 = vweird.f32 %v1001
    %vm1008 = vweird.f32 %v1002
    %vm1009 = vmor %vm1007, %vm1008
    %v1010 = vsel %vm1009, %v1002, %v1006
    %v1011 = vand.u32 2147483647, %v1001
    %vm1012 = vcmp.eq.f32.partialorder %v1011, 8.507059e+37
    %v1013 = vand.u32 %v1001, 2147483648
    %v1014 = vor.u32 1.1754944e-38, %v1013
    %v1015 = vsel %vm1012, %v1014, %v1010
    %v1016 = vmul.f32 1.0, %v1015
    %1017 = vmatpush.msra.mxu0 0.0
    %1018 = vmatpush.msra.mxu0 0.0
    %1019 = vmatpush.msra.mxu0 0.0
    %1020 = vmatpush.msra.mxu0 0.0
    %1021 = vmatpush.msra.mxu0 0.0
    %1022 = vmatpush.msra.mxu0 0.0
    %1023 = vmatpush.msra.mxu0 0.0
    %1024 = vmatpush.msra.mxu0 0.0
    %1025 = vmatpush.msra.mxu0 0.0
    %1026 = vmatpush.msra.mxu0 0.0
    %1027 = vmatpush.msra.mxu0 0.0
    %1028 = vmatpush.msra.mxu0 0.0
    %1029 = vmatpush.msra.mxu0 %v483
    %1030 = vmatpush.msra.mxu0 %v482
    %1031 = vmatpush.msra.mxu0 %v481
    %1032 = vmatpush.msra.mxu0 %v480
    %1033 = vmatmul.f32.gmra.mxu0 %v802
    %v1034 = vpop.f32.mrf.mxu0
    %v1035 = vadd.f32 0.0, %v1034
    %1036 = vdwg.mxu0
    %v1038 = vrot.slane %v1035, 4
    %v1040 = vadd.f32 %v440, %v1038
    %v1041 = vxor.u32 %v1040, 2147483648
    %v1042 = vmul.f32 %v1041, 1.442695
    %v1043 = vpow.pop %v1042
    %v1044 = vadd.f32 %v1043, 1.0
    %v1045 = vrcp.pop %v1044
    %v1046 = vmul.f32 %v1044, %v1045
    %v1047 = vsub.f32 1.0, %v1046
    %v1048 = vmul.f32 %v1045, %v1047
    %v1049 = vadd.f32 %v1045, %v1048
    %vm1050 = vweird.f32 %v1044
    %vm1051 = vweird.f32 %v1045
    %vm1052 = vmor %vm1050, %vm1051
    %v1053 = vsel %vm1052, %v1045, %v1049
    %v1054 = vand.u32 2147483647, %v1044
    %vm1055 = vcmp.eq.f32.partialorder %v1054, 8.507059e+37
    %v1056 = vand.u32 %v1044, 2147483648
    %v1057 = vor.u32 1.1754944e-38, %v1056
    %v1058 = vsel %vm1055, %v1057, %v1053
    %v1059 = vmul.f32 1.0, %v1058
    %1060 = vmatpush.msra.mxu0 0.0
    %1061 = vmatpush.msra.mxu0 0.0
    %1062 = vmatpush.msra.mxu0 0.0
    %1063 = vmatpush.msra.mxu0 0.0
    %1064 = vmatpush.msra.mxu0 0.0
    %1065 = vmatpush.msra.mxu0 0.0
    %1066 = vmatpush.msra.mxu0 0.0
    %1067 = vmatpush.msra.mxu0 0.0
    %1068 = vmatpush.msra.mxu0 0.0
    %1069 = vmatpush.msra.mxu0 0.0
    %1070 = vmatpush.msra.mxu0 0.0
    %1071 = vmatpush.msra.mxu0 0.0
    %1072 = vmatpush.msra.mxu0 %v487
    %1073 = vmatpush.msra.mxu0 %v486
    %1074 = vmatpush.msra.mxu0 %v485
    %1075 = vmatpush.msra.mxu0 %v484
    %1076 = vmatmul.f32.gmra.mxu0 %v802
    %v1077 = vpop.f32.mrf.mxu0
    %v1078 = vadd.f32 %v556, %v1077
    %1079 = vdwg.mxu0
    %v1081 = vrot.slane %v1078, 4
    %v1083 = vmul.f32 %v1016, %v1081
    %v1084 = vadd.f32 %v471, %v1083
    %v1085 = vtanh.pop %v1084
    %v1086 = vsub.f32 1.0, %v1059
    %v1087 = vmul.f32 %v1086, %v1085
    %v1088 = vrot.slane %v799, 6
    %v1090 = vmul.f32 %v1059, %v1088
    %v1091 = vadd.f32 %v1087, %v1090
    %v1093 = vrot.slane %v1091, 4
    %v1094 = vsel %vm566, %v1093, 0
    %1096 = vmatpush.msra.mxu0 0.0
    %1097 = vmatpush.msra.mxu0 0.0
    %1098 = vmatpush.msra.mxu0 0.0
    %1099 = vmatpush.msra.mxu0 0.0
    %1100 = vmatpush.msra.mxu0 0.0
    %1101 = vmatpush.msra.mxu0 0.0
    %1102 = vmatpush.msra.mxu0 0.0
    %1103 = vmatpush.msra.mxu0 0.0
    %1104 = vmatpush.msra.mxu0 0.0
    %1105 = vmatpush.msra.mxu0 0.0
    %1106 = vmatpush.msra.mxu0 0.0
    %1107 = vmatpush.msra.mxu0 0.0
    %1108 = vmatpush.msra.mxu0 %v492
    %1109 = vmatpush.msra.mxu0 %v491
    %1110 = vmatpush.msra.mxu0 %v490
    %1111 = vmatpush.msra.mxu0 %v489
    %1112 = vmatmul.f32.gmra.mxu0 %v1094
    %v1113 = vpop.f32.mrf.mxu0
    %v1114 = vadd.f32 %v564, %v1113
    %1115 = vdwg.mxu0
    %1116 = vmatpush.msra.mxu0 0.0
    %1117 = vmatpush.msra.mxu0 0.0
    %1118 = vmatpush.msra.mxu0 0.0
    %1119 = vmatpush.msra.mxu0 0.0
    %1120 = vmatpush.msra.mxu0 0.0
    %1121 = vmatpush.msra.mxu0 0.0
    %1122 = vmatpush.msra.mxu0 0.0
    %1123 = vmatpush.msra.mxu0 0.0
    %1124 = vmatpush.msra.mxu0 0.0
    %1125 = vmatpush.msra.mxu0 0.0
    %1126 = vmatpush.msra.mxu0 0.0
    %1127 = vmatpush.msra.mxu0 0.0
    %1128 = vmatpush.msra.mxu0 %v496
    %1129 = vmatpush.msra.mxu0 %v495
    %1130 = vmatpush.msra.mxu0 %v494
    %1131 = vmatpush.msra.mxu0 %v493
    %1132 = vmatmul.f32.gmra.mxu0 %v1094
    %v1133 = vpop.f32.mrf.mxu0
    %v1134 = vadd.f32 %v591, %v1133
    %1135 = vdwg.mxu0
    %1136 = vmatpush.msra.mxu0 0.0
    %1137 = vmatpush.msra.mxu0 0.0
    %1138 = vmatpush.msra.mxu0 0.0
    %1139 = vmatpush.msra.mxu0 0.0
    %1140 = vmatpush.msra.mxu0 0.0
    %1141 = vmatpush.msra.mxu0 0.0
    %1142 = vmatpush.msra.mxu0 0.0
    %1143 = vmatpush.msra.mxu0 0.0
    %1144 = vmatpush.msra.mxu0 0.0
    %1145 = vmatpush.msra.mxu0 0.0
    %1146 = vmatpush.msra.mxu0 0.0
    %1147 = vmatpush.msra.mxu0 0.0
    %1148 = vmatpush.msra.mxu0 %v500
    %1149 = vmatpush.msra.mxu0 %v499
    %1150 = vmatpush.msra.mxu0 %v498
    %1151 = vmatpush.msra.mxu0 %v497
    %1152 = vmatmul.f32.gmra.mxu0 %v1094
    %v1153 = vpop.f32.mrf.mxu0
    %v1154 = vadd.f32 %v614, %v1153
    %1155 = vdwg.mxu0
    %v1157 = vsel %vm566, %v973, 0
    %1159 = vmatpush.msra.mxu0 0.0
    %1160 = vmatpush.msra.mxu0 0.0
    %1161 = vmatpush.msra.mxu0 0.0
    %1162 = vmatpush.msra.mxu0 0.0
    %1163 = vmatpush.msra.mxu0 0.0
    %1164 = vmatpush.msra.mxu0 0.0
    %1165 = vmatpush.msra.mxu0 0.0
    %1166 = vmatpush.msra.mxu0 0.0
    %1167 = vmatpush.msra.mxu0 0.0
    %1168 = vmatpush.msra.mxu0 0.0
    %1169 = vmatpush.msra.mxu0 0.0
    %1170 = vmatpush.msra.mxu0 0.0
    %1171 = vmatpush.msra.mxu0 %v504
    %1172 = vmatpush.msra.mxu0 %v503
    %1173 = vmatpush.msra.mxu0 %v502
    %1174 = vmatpush.msra.mxu0 %v501
    %1175 = vmatmul.f32.gmra.mxu0 %v1157
    %v1176 = vpop.f32.mrf.mxu0
    %v1177 = vadd.f32 0.0, %v1176
    %1178 = vdwg.mxu0
    %v1179 = vadd.f32 %v1114, %v1177
    %v1180 = vxor.u32 %v1179, 2147483648
    %v1181 = vmul.f32 %v1180, 1.442695
    %v1182 = vpow.pop %v1181
    %v1183 = vadd.f32 %v1182, 1.0
    %v1184 = vrcp.pop %v1183
    %v1185 = vmul.f32 %v1183, %v1184
    %v1186 = vsub.f32 1.0, %v1185
    %v1187 = vmul.f32 %v1184, %v1186
    %v1188 = vadd.f32 %v1184, %v1187
    %vm1189 = vweird.f32 %v1183
    %vm1190 = vweird.f32 %v1184
    %vm1191 = vmor %vm1189, %vm1190
    %v1192 = vsel %vm1191, %v1184, %v1188
    %v1193 = vand.u32 2147483647, %v1183
    %vm1194 = vcmp.eq.f32.partialorder %v1193, 8.507059e+37
    %v1195 = vand.u32 %v1183, 2147483648
    %v1196 = vor.u32 1.1754944e-38, %v1195
    %v1197 = vsel %vm1194, %v1196, %v1192
    %v1198 = vmul.f32 1.0, %v1197
    %1199 = vmatpush.msra.mxu0 0.0
    %1200 = vmatpush.msra.mxu0 0.0
    %1201 = vmatpush.msra.mxu0 0.0
    %1202 = vmatpush.msra.mxu0 0.0
    %1203 = vmatpush.msra.mxu0 0.0
    %1204 = vmatpush.msra.mxu0 0.0
    %1205 = vmatpush.msra.mxu0 0.0
    %1206 = vmatpush.msra.mxu0 0.0
    %1207 = vmatpush.msra.mxu0 0.0
    %1208 = vmatpush.msra.mxu0 0.0
    %1209 = vmatpush.msra.mxu0 0.0
    %1210 = vmatpush.msra.mxu0 0.0
    %1211 = vmatpush.msra.mxu0 %v508
    %1212 = vmatpush.msra.mxu0 %v507
    %1213 = vmatpush.msra.mxu0 %v506
    %1214 = vmatpush.msra.mxu0 %v505
    %1215 = vmatmul.f32.gmra.mxu0 %v1157
    %v1216 = vpop.f32.mrf.mxu0
    %v1217 = vadd.f32 0.0, %v1216
    %1218 = vdwg.mxu0
    %v1219 = vadd.f32 %v1134, %v1217
    %v1220 = vxor.u32 %v1219, 2147483648
    %v1221 = vmul.f32 %v1220, 1.442695
    %v1222 = vpow.pop %v1221
    %v1223 = vadd.f32 %v1222, 1.0
    %v1224 = vrcp.pop %v1223
    %v1225 = vmul.f32 %v1223, %v1224
    %v1226 = vsub.f32 1.0, %v1225
    %v1227 = vmul.f32 %v1224, %v1226
    %v1228 = vadd.f32 %v1224, %v1227
    %vm1229 = vweird.f32 %v1223
    %vm1230 = vweird.f32 %v1224
    %vm1231 = vmor %vm1229, %vm1230
    %v1232 = vsel %vm1231, %v1224, %v1228
    %v1233 = vand.u32 2147483647, %v1223
    %vm1234 = vcmp.eq.f32.partialorder %v1233, 8.507059e+37
    %v1235 = vand.u32 %v1223, 2147483648
    %v1236 = vor.u32 1.1754944e-38, %v1235
    %v1237 = vsel %vm1234, %v1236, %v1232
    %v1238 = vmul.f32 1.0, %v1237
    %1239 = vmatpush.msra.mxu0 0.0
    %1240 = vmatpush.msra.mxu0 0.0
    %1241 = vmatpush.msra.mxu0 0.0
    %1242 = vmatpush.msra.mxu0 0.0
    %1243 = vmatpush.msra.mxu0 0.0
    %1244 = vmatpush.msra.mxu0 0.0
    %1245 = vmatpush.msra.mxu0 0.0
    %1246 = vmatpush.msra.mxu0 0.0
    %1247 = vmatpush.msra.mxu0 0.0
    %1248 = vmatpush.msra.mxu0 0.0
    %1249 = vmatpush.msra.mxu0 0.0
    %1250 = vmatpush.msra.mxu0 0.0
    %1251 = vmatpush.msra.mxu0 %v512
    %1252 = vmatpush.msra.mxu0 %v511
    %1253 = vmatpush.msra.mxu0 %v510
    %1254 = vmatpush.msra.mxu0 %v509
    %1255 = vmatmul.f32.gmra.mxu0 %v1157
    %v1256 = vpop.f32.mrf.mxu0
    %v1257 = vadd.f32 %v675, %v1256
    %1258 = vdwg.mxu0
    %v1259 = vmul.f32 %v1198, %v1257
    %v1260 = vadd.f32 %v1154, %v1259
    %v1261 = vtanh.pop %v1260
    %v1262 = vsub.f32 1.0, %v1238
    %v1263 = vmul.f32 %v1262, %v1261
    %v1264 = vmul.f32 %v1238, %v973
    %v1265 = vadd.f32 %v1263, %v1264
    %1266 = vmatpush.msra.mxu0 0.0
    %1267 = vmatpush.msra.mxu0 0.0
    %1268 = vmatpush.msra.mxu0 0.0
    %1269 = vmatpush.msra.mxu0 0.0
    %1270 = vmatpush.msra.mxu0 0.0
    %1271 = vmatpush.msra.mxu0 0.0
    %1272 = vmatpush.msra.mxu0 0.0
    %1273 = vmatpush.msra.mxu0 0.0
    %1274 = vmatpush.msra.mxu0 0.0
    %1275 = vmatpush.msra.mxu0 0.0
    %1276 = vmatpush.msra.mxu0 0.0
    %1277 = vmatpush.msra.mxu0 0.0
    %1278 = vmatpush.msra.mxu0 %v479
    %1279 = vmatpush.msra.mxu0 %v478
    %1280 = vmatpush.msra.mxu0 %v477
    %1281 = vmatpush.msra.mxu0 %v476
    %1282 = vmatmul.f32.gmra.mxu0 %v1094
    %v1283 = vpop.f32.mrf.mxu0
    %v1284 = vadd.f32 0.0, %v1283
    %1285 = vdwg.mxu0
    %v1287 = vrot.slane %v1284, 2
    %v1289 = vadd.f32 %v409, %v1287
    %v1290 = vxor.u32 %v1289, 2147483648
    %v1291 = vmul.f32 %v1290, 1.442695
    %v1292 = vpow.pop %v1291
    %v1293 = vadd.f32 %v1292, 1.0
    %v1294 = vrcp.pop %v1293
    %v1295 = vmul.f32 %v1293, %v1294
    %v1296 = vsub.f32 1.0, %v1295
    %v1297 = vmul.f32 %v1294, %v1296
    %v1298 = vadd.f32 %v1294, %v1297
    %vm1299 = vweird.f32 %v1293
    %vm1300 = vweird.f32 %v1294
    %vm1301 = vmor %vm1299, %vm1300
    %v1302 = vsel %vm1301, %v1294, %v1298
    %v1303 = vand.u32 2147483647, %v1293
    %vm1304 = vcmp.eq.f32.partialorder %v1303, 8.507059e+37
    %v1305 = vand.u32 %v1293, 2147483648
    %v1306 = vor.u32 1.1754944e-38, %v1305
    %v1307 = vsel %vm1304, %v1306, %v1302
    %v1308 = vmul.f32 1.0, %v1307
    %1309 = vmatpush.msra.mxu0 0.0
    %1310 = vmatpush.msra.mxu0 0.0
    %1311 = vmatpush.msra.mxu0 0.0
    %1312 = vmatpush.msra.mxu0 0.0
    %1313 = vmatpush.msra.mxu0 0.0
    %1314 = vmatpush.msra.mxu0 0.0
    %1315 = vmatpush.msra.mxu0 0.0
    %1316 = vmatpush.msra.mxu0 0.0
    %1317 = vmatpush.msra.mxu0 0.0
    %1318 = vmatpush.msra.mxu0 0.0
    %1319 = vmatpush.msra.mxu0 0.0
    %1320 = vmatpush.msra.mxu0 0.0
    %1321 = vmatpush.msra.mxu0 %v483
    %1322 = vmatpush.msra.mxu0 %v482
    %1323 = vmatpush.msra.mxu0 %v481
    %1324 = vmatpush.msra.mxu0 %v480
    %1325 = vmatmul.f32.gmra.mxu0 %v1094
    %v1326 = vpop.f32.mrf.mxu0
    %v1327 = vadd.f32 0.0, %v1326
    %1328 = vdwg.mxu0
    %v1330 = vrot.slane %v1327, 2
    %v1332 = vadd.f32 %v440, %v1330
    %v1333 = vxor.u32 %v1332, 2147483648
    %v1334 = vmul.f32 %v1333, 1.442695
    %v1335 = vpow.pop %v1334
    %v1336 = vadd.f32 %v1335, 1.0
    %v1337 = vrcp.pop %v1336
    %v1338 = vmul.f32 %v1336, %v1337
    %v1339 = vsub.f32 1.0, %v1338
    %v1340 = vmul.f32 %v1337, %v1339
    %v1341 = vadd.f32 %v1337, %v1340
    %vm1342 = vweird.f32 %v1336
    %vm1343 = vweird.f32 %v1337
    %vm1344 = vmor %vm1342, %vm1343
    %v1345 = vsel %vm1344, %v1337, %v1341
    %v1346 = vand.u32 2147483647, %v1336
    %vm1347 = vcmp.eq.f32.partialorder %v1346, 8.507059e+37
    %v1348 = vand.u32 %v1336, 2147483648
    %v1349 = vor.u32 1.1754944e-38, %v1348
    %v1350 = vsel %vm1347, %v1349, %v1345
    %v1351 = vmul.f32 1.0, %v1350
    %1352 = vmatpush.msra.mxu0 0.0
    %1353 = vmatpush.msra.mxu0 0.0
    %1354 = vmatpush.msra.mxu0 0.0
    %1355 = vmatpush.msra.mxu0 0.0
    %1356 = vmatpush.msra.mxu0 0.0
    %1357 = vmatpush.msra.mxu0 0.0
    %1358 = vmatpush.msra.mxu0 0.0
    %1359 = vmatpush.msra.mxu0 0.0
    %1360 = vmatpush.msra.mxu0 0.0
    %1361 = vmatpush.msra.mxu0 0.0
    %1362 = vmatpush.msra.mxu0 0.0
    %1363 = vmatpush.msra.mxu0 0.0
    %1364 = vmatpush.msra.mxu0 %v487
    %1365 = vmatpush.msra.mxu0 %v486
    %1366 = vmatpush.msra.mxu0 %v485
    %1367 = vmatpush.msra.mxu0 %v484
    %1368 = vmatmul.f32.gmra.mxu0 %v1094
    %v1369 = vpop.f32.mrf.mxu0
    %v1370 = vadd.f32 %v556, %v1369
    %1371 = vdwg.mxu0
    %v1373 = vrot.slane %v1370, 2
    %v1375 = vmul.f32 %v1308, %v1373
    %v1376 = vadd.f32 %v471, %v1375
    %v1377 = vtanh.pop %v1376
    %v1378 = vsub.f32 1.0, %v1351
    %v1379 = vmul.f32 %v1378, %v1377
    %v1380 = vrot.slane %v1091, 6
    %v1382 = vmul.f32 %v1351, %v1380
    %v1383 = vadd.f32 %v1379, %v1382
    %v1385 = vrot.slane %v1383, 6
    %v1386 = vsel %vm566, %v1385, 0
    %1388 = vmatpush.msra.mxu0 0.0
    %1389 = vmatpush.msra.mxu0 0.0
    %1390 = vmatpush.msra.mxu0 0.0
    %1391 = vmatpush.msra.mxu0 0.0
    %1392 = vmatpush.msra.mxu0 0.0
    %1393 = vmatpush.msra.mxu0 0.0
    %1394 = vmatpush.msra.mxu0 0.0
    %1395 = vmatpush.msra.mxu0 0.0
    %1396 = vmatpush.msra.mxu0 0.0
    %1397 = vmatpush.msra.mxu0 0.0
    %1398 = vmatpush.msra.mxu0 0.0
    %1399 = vmatpush.msra.mxu0 0.0
    %1400 = vmatpush.msra.mxu0 %v492
    %1401 = vmatpush.msra.mxu0 %v491
    %1402 = vmatpush.msra.mxu0 %v490
    %1403 = vmatpush.msra.mxu0 %v489
    %1404 = vmatmul.f32.gmra.mxu0 %v1386
    %v1405 = vpop.f32.mrf.mxu0
    %v1406 = vadd.f32 %v564, %v1405
    %1407 = vdwg.mxu0
    %1408 = vmatpush.msra.mxu0 0.0
    %1409 = vmatpush.msra.mxu0 0.0
    %1410 = vmatpush.msra.mxu0 0.0
    %1411 = vmatpush.msra.mxu0 0.0
    %1412 = vmatpush.msra.mxu0 0.0
    %1413 = vmatpush.msra.mxu0 0.0
    %1414 = vmatpush.msra.mxu0 0.0
    %1415 = vmatpush.msra.mxu0 0.0
    %1416 = vmatpush.msra.mxu0 0.0
    %1417 = vmatpush.msra.mxu0 0.0
    %1418 = vmatpush.msra.mxu0 0.0
    %1419 = vmatpush.msra.mxu0 0.0
    %1420 = vmatpush.msra.mxu0 %v496
    %1421 = vmatpush.msra.mxu0 %v495
    %1422 = vmatpush.msra.mxu0 %v494
    %1423 = vmatpush.msra.mxu0 %v493
    %1424 = vmatmul.f32.gmra.mxu0 %v1386
    %v1425 = vpop.f32.mrf.mxu0
    %v1426 = vadd.f32 %v591, %v1425
    %1427 = vdwg.mxu0
    %1428 = vmatpush.msra.mxu0 0.0
    %1429 = vmatpush.msra.mxu0 0.0
    %1430 = vmatpush.msra.mxu0 0.0
    %1431 = vmatpush.msra.mxu0 0.0
    %1432 = vmatpush.msra.mxu0 0.0
    %1433 = vmatpush.msra.mxu0 0.0
    %1434 = vmatpush.msra.mxu0 0.0
    %1435 = vmatpush.msra.mxu0 0.0
    %1436 = vmatpush.msra.mxu0 0.0
    %1437 = vmatpush.msra.mxu0 0.0
    %1438 = vmatpush.msra.mxu0 0.0
    %1439 = vmatpush.msra.mxu0 0.0
    %1440 = vmatpush.msra.mxu0 %v500
    %1441 = vmatpush.msra.mxu0 %v499
    %1442 = vmatpush.msra.mxu0 %v498
    %1443 = vmatpush.msra.mxu0 %v497
    %1444 = vmatmul.f32.gmra.mxu0 %v1386
    %v1445 = vpop.f32.mrf.mxu0
    %v1446 = vadd.f32 %v614, %v1445
    %1447 = vdwg.mxu0
    %v1449 = vsel %vm566, %v1265, 0
    %1451 = vmatpush.msra.mxu0 0.0
    %1452 = vmatpush.msra.mxu0 0.0
    %1453 = vmatpush.msra.mxu0 0.0
    %1454 = vmatpush.msra.mxu0 0.0
    %1455 = vmatpush.msra.mxu0 0.0
    %1456 = vmatpush.msra.mxu0 0.0
    %1457 = vmatpush.msra.mxu0 0.0
    %1458 = vmatpush.msra.mxu0 0.0
    %1459 = vmatpush.msra.mxu0 0.0
    %1460 = vmatpush.msra.mxu0 0.0
    %1461 = vmatpush.msra.mxu0 0.0
    %1462 = vmatpush.msra.mxu0 0.0
    %1463 = vmatpush.msra.mxu0 %v504
    %1464 = vmatpush.msra.mxu0 %v503
    %1465 = vmatpush.msra.mxu0 %v502
    %1466 = vmatpush.msra.mxu0 %v501
    %1467 = vmatmul.f32.gmra.mxu0 %v1449
    %v1468 = vpop.f32.mrf.mxu0
    %v1469 = vadd.f32 0.0, %v1468
    %1470 = vdwg.mxu0
    %v1471 = vadd.f32 %v1406, %v1469
    %v1472 = vxor.u32 %v1471, 2147483648
    %v1473 = vmul.f32 %v1472, 1.442695
    %v1474 = vpow.pop %v1473
    %v1475 = vadd.f32 %v1474, 1.0
    %v1476 = vrcp.pop %v1475
    %v1477 = vmul.f32 %v1475, %v1476
    %v1478 = vsub.f32 1.0, %v1477
    %v1479 = vmul.f32 %v1476, %v1478
    %v1480 = vadd.f32 %v1476, %v1479
    %vm1481 = vweird.f32 %v1475
    %vm1482 = vweird.f32 %v1476
    %vm1483 = vmor %vm1481, %vm1482
    %v1484 = vsel %vm1483, %v1476, %v1480
    %v1485 = vand.u32 2147483647, %v1475
    %vm1486 = vcmp.eq.f32.partialorder %v1485, 8.507059e+37
    %v1487 = vand.u32 %v1475, 2147483648
    %v1488 = vor.u32 1.1754944e-38, %v1487
    %v1489 = vsel %vm1486, %v1488, %v1484
    %v1490 = vmul.f32 1.0, %v1489
    %1491 = vmatpush.msra.mxu0 0.0
    %1492 = vmatpush.msra.mxu0 0.0
    %1493 = vmatpush.msra.mxu0 0.0
    %1494 = vmatpush.msra.mxu0 0.0
    %1495 = vmatpush.msra.mxu0 0.0
    %1496 = vmatpush.msra.mxu0 0.0
    %1497 = vmatpush.msra.mxu0 0.0
    %1498 = vmatpush.msra.mxu0 0.0
    %1499 = vmatpush.msra.mxu0 0.0
    %1500 = vmatpush.msra.mxu0 0.0
    %1501 = vmatpush.msra.mxu0 0.0
    %1502 = vmatpush.msra.mxu0 0.0
    %1503 = vmatpush.msra.mxu0 %v508
    %1504 = vmatpush.msra.mxu0 %v507
    %1505 = vmatpush.msra.mxu0 %v506
    %1506 = vmatpush.msra.mxu0 %v505
    %1507 = vmatmul.f32.gmra.mxu0 %v1449
    %v1508 = vpop.f32.mrf.mxu0
    %v1509 = vadd.f32 0.0, %v1508
    %1510 = vdwg.mxu0
    %v1511 = vadd.f32 %v1426, %v1509
    %v1512 = vxor.u32 %v1511, 2147483648
    %v1513 = vmul.f32 %v1512, 1.442695
    %v1514 = vpow.pop %v1513
    %v1515 = vadd.f32 %v1514, 1.0
    %v1516 = vrcp.pop %v1515
    %v1517 = vmul.f32 %v1515, %v1516
    %v1518 = vsub.f32 1.0, %v1517
    %v1519 = vmul.f32 %v1516, %v1518
    %v1520 = vadd.f32 %v1516, %v1519
    %vm1521 = vweird.f32 %v1515
    %vm1522 = vweird.f32 %v1516
    %vm1523 = vmor %vm1521, %vm1522
    %v1524 = vsel %vm1523, %v1516, %v1520
    %v1525 = vand.u32 2147483647, %v1515
    %vm1526 = vcmp.eq.f32.partialorder %v1525, 8.507059e+37
    %v1527 = vand.u32 %v1515, 2147483648
    %v1528 = vor.u32 1.1754944e-38, %v1527
    %v1529 = vsel %vm1526, %v1528, %v1524
    %v1530 = vmul.f32 1.0, %v1529
    %1531 = vmatpush.msra.mxu0 0.0
    %1532 = vmatpush.msra.mxu0 0.0
    %1533 = vmatpush.msra.mxu0 0.0
    %1534 = vmatpush.msra.mxu0 0.0
    %1535 = vmatpush.msra.mxu0 0.0
    %1536 = vmatpush.msra.mxu0 0.0
    %1537 = vmatpush.msra.mxu0 0.0
    %1538 = vmatpush.msra.mxu0 0.0
    %1539 = vmatpush.msra.mxu0 0.0
    %1540 = vmatpush.msra.mxu0 0.0
    %1541 = vmatpush.msra.mxu0 0.0
    %1542 = vmatpush.msra.mxu0 0.0
    %1543 = vmatpush.msra.mxu0 %v512
    %1544 = vmatpush.msra.mxu0 %v511
    %1545 = vmatpush.msra.mxu0 %v510
    %1546 = vmatpush.msra.mxu0 %v509
    %1547 = vmatmul.f32.gmra.mxu0 %v1449
    %v1548 = vpop.f32.mrf.mxu0
    %v1549 = vadd.f32 %v675, %v1548
    %1550 = vdwg.mxu0
    %v1551 = vmul.f32 %v1490, %v1549
    %v1552 = vadd.f32 %v1446, %v1551
    %v1553 = vtanh.pop %v1552
    %v1554 = vsub.f32 1.0, %v1530
    %v1555 = vmul.f32 %v1554, %v1553
    %v1556 = vmul.f32 %v1530, %v1265
    %v1557 = vadd.f32 %v1555, %v1556
    %1558 = vmatpush.msra.mxu0 0.0
    %1559 = vmatpush.msra.mxu0 0.0
    %1560 = vmatpush.msra.mxu0 0.0
    %1561 = vmatpush.msra.mxu0 0.0
    %1562 = vmatpush.msra.mxu0 0.0
    %1563 = vmatpush.msra.mxu0 0.0
    %1564 = vmatpush.msra.mxu0 0.0
    %1565 = vmatpush.msra.mxu0 0.0
    %1566 = vmatpush.msra.mxu0 0.0
    %1567 = vmatpush.msra.mxu0 0.0
    %1568 = vmatpush.msra.mxu0 0.0
    %1569 = vmatpush.msra.mxu0 0.0
    %1570 = vmatpush.msra.mxu0 %v479
    %1571 = vmatpush.msra.mxu0 %v478
    %1572 = vmatpush.msra.mxu0 %v477
    %1573 = vmatpush.msra.mxu0 %v476
    %1574 = vmatmul.f32.gmra.mxu0 %v1386
    %v1575 = vpop.f32.mrf.mxu0
    %v1576 = vadd.f32 0.0, %v1575
    %1577 = vdwg.mxu0
    %v1578 = vadd.f32 %v412, %v1576
    %v1579 = vxor.u32 %v1578, 2147483648
    %v1580 = vmul.f32 %v1579, 1.442695
    %v1581 = vpow.pop %v1580
    %v1582 = vadd.f32 %v1581, 1.0
    %v1583 = vrcp.pop %v1582
    %v1584 = vmul.f32 %v1582, %v1583
    %v1585 = vsub.f32 1.0, %v1584
    %v1586 = vmul.f32 %v1583, %v1585
    %v1587 = vadd.f32 %v1583, %v1586
    %vm1588 = vweird.f32 %v1582
    %vm1589 = vweird.f32 %v1583
    %vm1590 = vmor %vm1588, %vm1589
    %v1591 = vsel %vm1590, %v1583, %v1587
    %v1592 = vand.u32 2147483647, %v1582
    %vm1593 = vcmp.eq.f32.partialorder %v1592, 8.507059e+37
    %v1594 = vand.u32 %v1582, 2147483648
    %v1595 = vor.u32 1.1754944e-38, %v1594
    %v1596 = vsel %vm1593, %v1595, %v1591
    %v1597 = vmul.f32 1.0, %v1596
    %1598 = vmatpush.msra.mxu0 0.0
    %1599 = vmatpush.msra.mxu0 0.0
    %1600 = vmatpush.msra.mxu0 0.0
    %1601 = vmatpush.msra.mxu0 0.0
    %1602 = vmatpush.msra.mxu0 0.0
    %1603 = vmatpush.msra.mxu0 0.0
    %1604 = vmatpush.msra.mxu0 0.0
    %1605 = vmatpush.msra.mxu0 0.0
    %1606 = vmatpush.msra.mxu0 0.0
    %1607 = vmatpush.msra.mxu0 0.0
    %1608 = vmatpush.msra.mxu0 0.0
    %1609 = vmatpush.msra.mxu0 0.0
    %1610 = vmatpush.msra.mxu0 %v483
    %1611 = vmatpush.msra.mxu0 %v482
    %1612 = vmatpush.msra.mxu0 %v481
    %1613 = vmatpush.msra.mxu0 %v480
    %1614 = vmatmul.f32.gmra.mxu0 %v1386
    %v1615 = vpop.f32.mrf.mxu0
    %v1616 = vadd.f32 0.0, %v1615
    %1617 = vdwg.mxu0
    %v1618 = vadd.f32 %v443, %v1616
    %v1619 = vxor.u32 %v1618, 2147483648
    %v1620 = vmul.f32 %v1619, 1.442695
    %v1621 = vpow.pop %v1620
    %v1622 = vadd.f32 %v1621, 1.0
    %v1623 = vrcp.pop %v1622
    %v1624 = vmul.f32 %v1622, %v1623
    %v1625 = vsub.f32 1.0, %v1624
    %v1626 = vmul.f32 %v1623, %v1625
    %v1627 = vadd.f32 %v1623, %v1626
    %vm1628 = vweird.f32 %v1622
    %vm1629 = vweird.f32 %v1623
    %vm1630 = vmor %vm1628, %vm1629
    %v1631 = vsel %vm1630, %v1623, %v1627
    %v1632 = vand.u32 2147483647, %v1622
    %vm1633 = vcmp.eq.f32.partialorder %v1632, 8.507059e+37
    %v1634 = vand.u32 %v1622, 2147483648
    %v1635 = vor.u32 1.1754944e-38, %v1634
    %v1636 = vsel %vm1633, %v1635, %v1631
    %v1637 = vmul.f32 1.0, %v1636
    %1638 = vmatpush.msra.mxu0 0.0
    %1639 = vmatpush.msra.mxu0 0.0
    %1640 = vmatpush.msra.mxu0 0.0
    %1641 = vmatpush.msra.mxu0 0.0
    %1642 = vmatpush.msra.mxu0 0.0
    %1643 = vmatpush.msra.mxu0 0.0
    %1644 = vmatpush.msra.mxu0 0.0
    %1645 = vmatpush.msra.mxu0 0.0
    %1646 = vmatpush.msra.mxu0 0.0
    %1647 = vmatpush.msra.mxu0 0.0
    %1648 = vmatpush.msra.mxu0 0.0
    %1649 = vmatpush.msra.mxu0 0.0
    %1650 = vmatpush.msra.mxu0 %v487
    %1651 = vmatpush.msra.mxu0 %v486
    %1652 = vmatpush.msra.mxu0 %v485
    %1653 = vmatpush.msra.mxu0 %v484
    %1654 = vmatmul.f32.gmra.mxu0 %v1386
    %v1655 = vpop.f32.mrf.mxu0
    %v1656 = vadd.f32 %v556, %v1655
    %1657 = vdwg.mxu0
    %v1658 = vmul.f32 %v1597, %v1656
    %v1659 = vadd.f32 %v474, %v1658
    %v1660 = vtanh.pop %v1659
    %v1661 = vsub.f32 1.0, %v1637
    %v1662 = vmul.f32 %v1661, %v1660
    %v1664 = vmul.f32 %v1637, %v1385
    %v1665 = vadd.f32 %v1662, %v1664
    %v1667 = vsel %vm566, %v1665, 0
    %1669 = vmatpush.msra.mxu0 0.0
    %1670 = vmatpush.msra.mxu0 0.0
    %1671 = vmatpush.msra.mxu0 0.0
    %1672 = vmatpush.msra.mxu0 0.0
    %1673 = vmatpush.msra.mxu0 0.0
    %1674 = vmatpush.msra.mxu0 0.0
    %1675 = vmatpush.msra.mxu0 0.0
    %1676 = vmatpush.msra.mxu0 0.0
    %1677 = vmatpush.msra.mxu0 0.0
    %1678 = vmatpush.msra.mxu0 0.0
    %1679 = vmatpush.msra.mxu0 0.0
    %1680 = vmatpush.msra.mxu0 0.0
    %1681 = vmatpush.msra.mxu0 %v492
    %1682 = vmatpush.msra.mxu0 %v491
    %1683 = vmatpush.msra.mxu0 %v490
    %1684 = vmatpush.msra.mxu0 %v489
    %1685 = vmatmul.f32.gmra.mxu0 %v1667
    %v1686 = vpop.f32.mrf.mxu0
    %v1687 = vadd.f32 %v564, %v1686
    %1688 = vdwg.mxu0
    %1689 = vmatpush.msra.mxu0 0.0
    %1690 = vmatpush.msra.mxu0 0.0
    %1691 = vmatpush.msra.mxu0 0.0
    %1692 = vmatpush.msra.mxu0 0.0
    %1693 = vmatpush.msra.mxu0 0.0
    %1694 = vmatpush.msra.mxu0 0.0
    %1695 = vmatpush.msra.mxu0 0.0
    %1696 = vmatpush.msra.mxu0 0.0
    %1697 = vmatpush.msra.mxu0 0.0
    %1698 = vmatpush.msra.mxu0 0.0
    %1699 = vmatpush.msra.mxu0 0.0
    %1700 = vmatpush.msra.mxu0 0.0
    %1701 = vmatpush.msra.mxu0 %v496
    %1702 = vmatpush.msra.mxu0 %v495
    %1703 = vmatpush.msra.mxu0 %v494
    %1704 = vmatpush.msra.mxu0 %v493
    %1705 = vmatmul.f32.gmra.mxu0 %v1667
    %v1706 = vpop.f32.mrf.mxu0
    %v1707 = vadd.f32 %v591, %v1706
    %1708 = vdwg.mxu0
    %1709 = vmatpush.msra.mxu0 0.0
    %1710 = vmatpush.msra.mxu0 0.0
    %1711 = vmatpush.msra.mxu0 0.0
    %1712 = vmatpush.msra.mxu0 0.0
    %1713 = vmatpush.msra.mxu0 0.0
    %1714 = vmatpush.msra.mxu0 0.0
    %1715 = vmatpush.msra.mxu0 0.0
    %1716 = vmatpush.msra.mxu0 0.0
    %1717 = vmatpush.msra.mxu0 0.0
    %1718 = vmatpush.msra.mxu0 0.0
    %1719 = vmatpush.msra.mxu0 0.0
    %1720 = vmatpush.msra.mxu0 0.0
    %1721 = vmatpush.msra.mxu0 %v500
    %1722 = vmatpush.msra.mxu0 %v499
    %1723 = vmatpush.msra.mxu0 %v498
    %1724 = vmatpush.msra.mxu0 %v497
    %1725 = vmatmul.f32.gmra.mxu0 %v1667
    %v1726 = vpop.f32.mrf.mxu0
    %v1727 = vadd.f32 %v614, %v1726
    %1728 = vdwg.mxu0
    %v1730 = vsel %vm566, %v1557, 0
    %1732 = vmatpush.msra.mxu0 0.0
    %1733 = vmatpush.msra.mxu0 0.0
    %1734 = vmatpush.msra.mxu0 0.0
    %1735 = vmatpush.msra.mxu0 0.0
    %1736 = vmatpush.msra.mxu0 0.0
    %1737 = vmatpush.msra.mxu0 0.0
    %1738 = vmatpush.msra.mxu0 0.0
    %1739 = vmatpush.msra.mxu0 0.0
    %1740 = vmatpush.msra.mxu0 0.0
    %1741 = vmatpush.msra.mxu0 0.0
    %1742 = vmatpush.msra.mxu0 0.0
    %1743 = vmatpush.msra.mxu0 0.0
    %1744 = vmatpush.msra.mxu0 %v504
    %1745 = vmatpush.msra.mxu0 %v503
    %1746 = vmatpush.msra.mxu0 %v502
    %1747 = vmatpush.msra.mxu0 %v501
    %1748 = vmatmul.f32.gmra.mxu0 %v1730
    %v1749 = vpop.f32.mrf.mxu0
    %v1750 = vadd.f32 0.0, %v1749
    %1751 = vdwg.mxu0
    %v1752 = vadd.f32 %v1687, %v1750
    %v1753 = vxor.u32 %v1752, 2147483648
    %v1754 = vmul.f32 %v1753, 1.442695
    %v1755 = vpow.pop %v1754
    %v1756 = vadd.f32 %v1755, 1.0
    %v1757 = vrcp.pop %v1756
    %v1758 = vmul.f32 %v1756, %v1757
    %v1759 = vsub.f32 1.0, %v1758
    %v1760 = vmul.f32 %v1757, %v1759
    %v1761 = vadd.f32 %v1757, %v1760
    %vm1762 = vweird.f32 %v1756
    %vm1763 = vweird.f32 %v1757
    %vm1764 = vmor %vm1762, %vm1763
    %v1765 = vsel %vm1764, %v1757, %v1761
    %v1766 = vand.u32 2147483647, %v1756
    %vm1767 = vcmp.eq.f32.partialorder %v1766, 8.507059e+37
    %v1768 = vand.u32 %v1756, 2147483648
    %v1769 = vor.u32 1.1754944e-38, %v1768
    %v1770 = vsel %vm1767, %v1769, %v1765
    %v1771 = vmul.f32 1.0, %v1770
    %1772 = vmatpush.msra.mxu0 0.0
    %1773 = vmatpush.msra.mxu0 0.0
    %1774 = vmatpush.msra.mxu0 0.0
    %1775 = vmatpush.msra.mxu0 0.0
    %1776 = vmatpush.msra.mxu0 0.0
    %1777 = vmatpush.msra.mxu0 0.0
    %1778 = vmatpush.msra.mxu0 0.0
    %1779 = vmatpush.msra.mxu0 0.0
    %1780 = vmatpush.msra.mxu0 0.0
    %1781 = vmatpush.msra.mxu0 0.0
    %1782 = vmatpush.msra.mxu0 0.0
    %1783 = vmatpush.msra.mxu0 0.0
    %1784 = vmatpush.msra.mxu0 %v508
    %1785 = vmatpush.msra.mxu0 %v507
    %1786 = vmatpush.msra.mxu0 %v506
    %1787 = vmatpush.msra.mxu0 %v505
    %1788 = vmatmul.f32.gmra.mxu0 %v1730
    %v1789 = vpop.f32.mrf.mxu0
    %v1790 = vadd.f32 0.0, %v1789
    %1791 = vdwg.mxu0
    %v1792 = vadd.f32 %v1707, %v1790
    %v1793 = vxor.u32 %v1792, 2147483648
    %v1794 = vmul.f32 %v1793, 1.442695
    %v1795 = vpow.pop %v1794
    %v1796 = vadd.f32 %v1795, 1.0
    %v1797 = vrcp.pop %v1796
    %v1798 = vmul.f32 %v1796, %v1797
    %v1799 = vsub.f32 1.0, %v1798
    %v1800 = vmul.f32 %v1797, %v1799
    %v1801 = vadd.f32 %v1797, %v1800
    %vm1802 = vweird.f32 %v1796
    %vm1803 = vweird.f32 %v1797
    %vm1804 = vmor %vm1802, %vm1803
    %v1805 = vsel %vm1804, %v1797, %v1801
    %v1806 = vand.u32 2147483647, %v1796
    %vm1807 = vcmp.eq.f32.partialorder %v1806, 8.507059e+37
    %v1808 = vand.u32 %v1796, 2147483648
    %v1809 = vor.u32 1.1754944e-38, %v1808
    %v1810 = vsel %vm1807, %v1809, %v1805
    %v1811 = vmul.f32 1.0, %v1810
    %1812 = vmatpush.msra.mxu0 0.0
    %1813 = vmatpush.msra.mxu0 0.0
    %1814 = vmatpush.msra.mxu0 0.0
    %1815 = vmatpush.msra.mxu0 0.0
    %1816 = vmatpush.msra.mxu0 0.0
    %1817 = vmatpush.msra.mxu0 0.0
    %1818 = vmatpush.msra.mxu0 0.0
    %1819 = vmatpush.msra.mxu0 0.0
    %1820 = vmatpush.msra.mxu0 0.0
    %1821 = vmatpush.msra.mxu0 0.0
    %1822 = vmatpush.msra.mxu0 0.0
    %1823 = vmatpush.msra.mxu0 0.0
    %1824 = vmatpush.msra.mxu0 %v512
    %1825 = vmatpush.msra.mxu0 %v511
    %1826 = vmatpush.msra.mxu0 %v510
    %1827 = vmatpush.msra.mxu0 %v509
    %1828 = vmatmul.f32.gmra.mxu0 %v1730
    %v1829 = vpop.f32.mrf.mxu0
    %v1830 = vadd.f32 %v675, %v1829
    %1831 = vdwg.mxu0
    %v1832 = vmul.f32 %v1771, %v1830
    %v1833 = vadd.f32 %v1727, %v1832
    %v1834 = vtanh.pop %v1833
    %v1835 = vsub.f32 1.0, %v1811
    %v1836 = vmul.f32 %v1835, %v1834
    %v1837 = vmul.f32 %v1811, %v1557
    %v1838 = vadd.f32 %v1836, %v1837
    %1839 = vmatpush.msra.mxu0 0.0
    %1840 = vmatpush.msra.mxu0 0.0
    %1841 = vmatpush.msra.mxu0 0.0
    %1842 = vmatpush.msra.mxu0 0.0
    %1843 = vmatpush.msra.mxu0 0.0
    %1844 = vmatpush.msra.mxu0 0.0
    %1845 = vmatpush.msra.mxu0 0.0
    %1846 = vmatpush.msra.mxu0 0.0
    %1847 = vmatpush.msra.mxu0 0.0
    %1848 = vmatpush.msra.mxu0 0.0
    %1849 = vmatpush.msra.mxu0 0.0
    %1850 = vmatpush.msra.mxu0 0.0
    %1851 = vmatpush.msra.mxu0 %v479
    %1852 = vmatpush.msra.mxu0 %v478
    %1853 = vmatpush.msra.mxu0 %v477
    %1854 = vmatpush.msra.mxu0 %v476
    %1855 = vmatmul.f32.gmra.mxu0 %v1667
    %v1856 = vpop.f32.mrf.mxu0
    %v1857 = vadd.f32 0.0, %v1856
    %1858 = vdwg.mxu0
    %v1860 = vrot.slane %v1857, 6
    %v1862 = vadd.f32 %v412, %v1860
    %v1863 = vxor.u32 %v1862, 2147483648
    %v1864 = vmul.f32 %v1863, 1.442695
    %v1865 = vpow.pop %v1864
    %v1866 = vadd.f32 %v1865, 1.0
    %v1867 = vrcp.pop %v1866
    %v1868 = vmul.f32 %v1866, %v1867
    %v1869 = vsub.f32 1.0, %v1868
    %v1870 = vmul.f32 %v1867, %v1869
    %v1871 = vadd.f32 %v1867, %v1870
    %vm1872 = vweird.f32 %v1866
    %vm1873 = vweird.f32 %v1867
    %vm1874 = vmor %vm1872, %vm1873
    %v1875 = vsel %vm1874, %v1867, %v1871
    %v1876 = vand.u32 2147483647, %v1866
    %vm1877 = vcmp.eq.f32.partialorder %v1876, 8.507059e+37
    %v1878 = vand.u32 %v1866, 2147483648
    %v1879 = vor.u32 1.1754944e-38, %v1878
    %v1880 = vsel %vm1877, %v1879, %v1875
    %v1881 = vmul.f32 1.0, %v1880
    %1882 = vmatpush.msra.mxu0 0.0
    %1883 = vmatpush.msra.mxu0 0.0
    %1884 = vmatpush.msra.mxu0 0.0
    %1885 = vmatpush.msra.mxu0 0.0
    %1886 = vmatpush.msra.mxu0 0.0
    %1887 = vmatpush.msra.mxu0 0.0
    %1888 = vmatpush.msra.mxu0 0.0
    %1889 = vmatpush.msra.mxu0 0.0
    %1890 = vmatpush.msra.mxu0 0.0
    %1891 = vmatpush.msra.mxu0 0.0
    %1892 = vmatpush.msra.mxu0 0.0
    %1893 = vmatpush.msra.mxu0 0.0
    %1894 = vmatpush.msra.mxu0 %v483
    %1895 = vmatpush.msra.mxu0 %v482
    %1896 = vmatpush.msra.mxu0 %v481
    %1897 = vmatpush.msra.mxu0 %v480
    %1898 = vmatmul.f32.gmra.mxu0 %v1667
    %v1899 = vpop.f32.mrf.mxu0
    %v1900 = vadd.f32 0.0, %v1899
    %1901 = vdwg.mxu0
    %v1903 = vrot.slane %v1900, 6
    %v1905 = vadd.f32 %v443, %v1903
    %v1906 = vxor.u32 %v1905, 2147483648
    %v1907 = vmul.f32 %v1906, 1.442695
    %v1908 = vpow.pop %v1907
    %v1909 = vadd.f32 %v1908, 1.0
    %v1910 = vrcp.pop %v1909
    %v1911 = vmul.f32 %v1909, %v1910
    %v1912 = vsub.f32 1.0, %v1911
    %v1913 = vmul.f32 %v1910, %v1912
    %v1914 = vadd.f32 %v1910, %v1913
    %vm1915 = vweird.f32 %v1909
    %vm1916 = vweird.f32 %v1910
    %vm1917 = vmor %vm1915, %vm1916
    %v1918 = vsel %vm1917, %v1910, %v1914
    %v1919 = vand.u32 2147483647, %v1909
    %vm1920 = vcmp.eq.f32.partialorder %v1919, 8.507059e+37
    %v1921 = vand.u32 %v1909, 2147483648
    %v1922 = vor.u32 1.1754944e-38, %v1921
    %v1923 = vsel %vm1920, %v1922, %v1918
    %v1924 = vmul.f32 1.0, %v1923
    %1925 = vmatpush.msra.mxu0 0.0
    %1926 = vmatpush.msra.mxu0 0.0
    %1927 = vmatpush.msra.mxu0 0.0
    %1928 = vmatpush.msra.mxu0 0.0
    %1929 = vmatpush.msra.mxu0 0.0
    %1930 = vmatpush.msra.mxu0 0.0
    %1931 = vmatpush.msra.mxu0 0.0
    %1932 = vmatpush.msra.mxu0 0.0
    %1933 = vmatpush.msra.mxu0 0.0
    %1934 = vmatpush.msra.mxu0 0.0
    %1935 = vmatpush.msra.mxu0 0.0
    %1936 = vmatpush.msra.mxu0 0.0
    %1937 = vmatpush.msra.mxu0 %v487
    %1938 = vmatpush.msra.mxu0 %v486
    %1939 = vmatpush.msra.mxu0 %v485
    %1940 = vmatpush.msra.mxu0 %v484
    %1941 = vmatmul.f32.gmra.mxu0 %v1667
    %v1942 = vpop.f32.mrf.mxu0
    %v1943 = vadd.f32 %v556, %v1942
    %1944 = vdwg.mxu0
    %v1946 = vrot.slane %v1943, 6
    %v1948 = vmul.f32 %v1881, %v1946
    %v1949 = vadd.f32 %v474, %v1948
    %v1950 = vtanh.pop %v1949
    %v1951 = vsub.f32 1.0, %v1924
    %v1952 = vmul.f32 %v1951, %v1950
    %v1953 = vrot.slane %v1665, 6
    %v1955 = vmul.f32 %v1924, %v1953
    %v1956 = vadd.f32 %v1952, %v1955
    %v1958 = vrot.slane %v1956, 2
    %v1959 = vsel %vm566, %v1958, 0
    %1961 = vmatpush.msra.mxu0 0.0
    %1962 = vmatpush.msra.mxu0 0.0
    %1963 = vmatpush.msra.mxu0 0.0
    %1964 = vmatpush.msra.mxu0 0.0
    %1965 = vmatpush.msra.mxu0 0.0
    %1966 = vmatpush.msra.mxu0 0.0
    %1967 = vmatpush.msra.mxu0 0.0
    %1968 = vmatpush.msra.mxu0 0.0
    %1969 = vmatpush.msra.mxu0 0.0
    %1970 = vmatpush.msra.mxu0 0.0
    %1971 = vmatpush.msra.mxu0 0.0
    %1972 = vmatpush.msra.mxu0 0.0
    %1973 = vmatpush.msra.mxu0 %v492
    %1974 = vmatpush.msra.mxu0 %v491
    %1975 = vmatpush.msra.mxu0 %v490
    %1976 = vmatpush.msra.mxu0 %v489
    %1977 = vmatmul.f32.gmra.mxu0 %v1959
    %v1978 = vpop.f32.mrf.mxu0
    %v1979 = vadd.f32 %v564, %v1978
    %1980 = vdwg.mxu0
    %1981 = vmatpush.msra.mxu0 0.0
    %1982 = vmatpush.msra.mxu0 0.0
    %1983 = vmatpush.msra.mxu0 0.0
    %1984 = vmatpush.msra.mxu0 0.0
    %1985 = vmatpush.msra.mxu0 0.0
    %1986 = vmatpush.msra.mxu0 0.0
    %1987 = vmatpush.msra.mxu0 0.0
    %1988 = vmatpush.msra.mxu0 0.0
    %1989 = vmatpush.msra.mxu0 0.0
    %1990 = vmatpush.msra.mxu0 0.0
    %1991 = vmatpush.msra.mxu0 0.0
    %1992 = vmatpush.msra.mxu0 0.0
    %1993 = vmatpush.msra.mxu0 %v496
    %1994 = vmatpush.msra.mxu0 %v495
    %1995 = vmatpush.msra.mxu0 %v494
    %1996 = vmatpush.msra.mxu0 %v493
    %1997 = vmatmul.f32.gmra.mxu0 %v1959
    %v1998 = vpop.f32.mrf.mxu0
    %v1999 = vadd.f32 %v591, %v1998
    %2000 = vdwg.mxu0
    %2001 = vmatpush.msra.mxu0 0.0
    %2002 = vmatpush.msra.mxu0 0.0
    %2003 = vmatpush.msra.mxu0 0.0
    %2004 = vmatpush.msra.mxu0 0.0
    %2005 = vmatpush.msra.mxu0 0.0
    %2006 = vmatpush.msra.mxu0 0.0
    %2007 = vmatpush.msra.mxu0 0.0
    %2008 = vmatpush.msra.mxu0 0.0
    %2009 = vmatpush.msra.mxu0 0.0
    %2010 = vmatpush.msra.mxu0 0.0
    %2011 = vmatpush.msra.mxu0 0.0
    %2012 = vmatpush.msra.mxu0 0.0
    %2013 = vmatpush.msra.mxu0 %v500
    %2014 = vmatpush.msra.mxu0 %v499
    %2015 = vmatpush.msra.mxu0 %v498
    %2016 = vmatpush.msra.mxu0 %v497
    %2017 = vmatmul.f32.gmra.mxu0 %v1959
    %v2018 = vpop.f32.mrf.mxu0
    %v2019 = vadd.f32 %v614, %v2018
    %2020 = vdwg.mxu0
    %v2022 = vsel %vm566, %v1838, 0
    %2024 = vmatpush.msra.mxu0 0.0
    %2025 = vmatpush.msra.mxu0 0.0
    %2026 = vmatpush.msra.mxu0 0.0
    %2027 = vmatpush.msra.mxu0 0.0
    %2028 = vmatpush.msra.mxu0 0.0
    %2029 = vmatpush.msra.mxu0 0.0
    %2030 = vmatpush.msra.mxu0 0.0
    %2031 = vmatpush.msra.mxu0 0.0
    %2032 = vmatpush.msra.mxu0 0.0
    %2033 = vmatpush.msra.mxu0 0.0
    %2034 = vmatpush.msra.mxu0 0.0
    %2035 = vmatpush.msra.mxu0 0.0
    %2036 = vmatpush.msra.mxu0 %v504
    %2037 = vmatpush.msra.mxu0 %v503
    %2038 = vmatpush.msra.mxu0 %v502
    %2039 = vmatpush.msra.mxu0 %v501
    %2040 = vmatmul.f32.gmra.mxu0 %v2022
    %v2041 = vpop.f32.mrf.mxu0
    %v2042 = vadd.f32 0.0, %v2041
    %2043 = vdwg.mxu0
    %v2044 = vadd.f32 %v1979, %v2042
    %v2045 = vxor.u32 %v2044, 2147483648
    %v2046 = vmul.f32 %v2045, 1.442695
    %v2047 = vpow.pop %v2046
    %v2048 = vadd.f32 %v2047, 1.0
    %v2049 = vrcp.pop %v2048
    %v2050 = vmul.f32 %v2048, %v2049
    %v2051 = vsub.f32 1.0, %v2050
    %v2052 = vmul.f32 %v2049, %v2051
    %v2053 = vadd.f32 %v2049, %v2052
    %vm2054 = vweird.f32 %v2048
    %vm2055 = vweird.f32 %v2049
    %vm2056 = vmor %vm2054, %vm2055
    %v2057 = vsel %vm2056, %v2049, %v2053
    %v2058 = vand.u32 2147483647, %v2048
    %vm2059 = vcmp.eq.f32.partialorder %v2058, 8.507059e+37
    %v2060 = vand.u32 %v2048, 2147483648
    %v2061 = vor.u32 1.1754944e-38, %v2060
    %v2062 = vsel %vm2059, %v2061, %v2057
    %v2063 = vmul.f32 1.0, %v2062
    %2064 = vmatpush.msra.mxu0 0.0
    %2065 = vmatpush.msra.mxu0 0.0
    %2066 = vmatpush.msra.mxu0 0.0
    %2067 = vmatpush.msra.mxu0 0.0
    %2068 = vmatpush.msra.mxu0 0.0
    %2069 = vmatpush.msra.mxu0 0.0
    %2070 = vmatpush.msra.mxu0 0.0
    %2071 = vmatpush.msra.mxu0 0.0
    %2072 = vmatpush.msra.mxu0 0.0
    %2073 = vmatpush.msra.mxu0 0.0
    %2074 = vmatpush.msra.mxu0 0.0
    %2075 = vmatpush.msra.mxu0 0.0
    %2076 = vmatpush.msra.mxu0 %v508
    %2077 = vmatpush.msra.mxu0 %v507
    %2078 = vmatpush.msra.mxu0 %v506
    %2079 = vmatpush.msra.mxu0 %v505
    %2080 = vmatmul.f32.gmra.mxu0 %v2022
    %v2081 = vpop.f32.mrf.mxu0
    %v2082 = vadd.f32 0.0, %v2081
    %2083 = vdwg.mxu0
    %v2084 = vadd.f32 %v1999, %v2082
    %v2085 = vxor.u32 %v2084, 2147483648
    %v2086 = vmul.f32 %v2085, 1.442695
    %v2087 = vpow.pop %v2086
    %v2088 = vadd.f32 %v2087, 1.0
    %v2089 = vrcp.pop %v2088
    %v2090 = vmul.f32 %v2088, %v2089
    %v2091 = vsub.f32 1.0, %v2090
    %v2092 = vmul.f32 %v2089, %v2091
    %v2093 = vadd.f32 %v2089, %v2092
    %vm2094 = vweird.f32 %v2088
    %vm2095 = vweird.f32 %v2089
    %vm2096 = vmor %vm2094, %vm2095
    %v2097 = vsel %vm2096, %v2089, %v2093
    %v2098 = vand.u32 2147483647, %v2088
    %vm2099 = vcmp.eq.f32.partialorder %v2098, 8.507059e+37
    %v2100 = vand.u32 %v2088, 2147483648
    %v2101 = vor.u32 1.1754944e-38, %v2100
    %v2102 = vsel %vm2099, %v2101, %v2097
    %v2103 = vmul.f32 1.0, %v2102
    %2104 = vmatpush.msra.mxu0 0.0
    %2105 = vmatpush.msra.mxu0 0.0
    %2106 = vmatpush.msra.mxu0 0.0
    %2107 = vmatpush.msra.mxu0 0.0
    %2108 = vmatpush.msra.mxu0 0.0
    %2109 = vmatpush.msra.mxu0 0.0
    %2110 = vmatpush.msra.mxu0 0.0
    %2111 = vmatpush.msra.mxu0 0.0
    %2112 = vmatpush.msra.mxu0 0.0
    %2113 = vmatpush.msra.mxu0 0.0
    %2114 = vmatpush.msra.mxu0 0.0
    %2115 = vmatpush.msra.mxu0 0.0
    %2116 = vmatpush.msra.mxu0 %v512
    %2117 = vmatpush.msra.mxu0 %v511
    %2118 = vmatpush.msra.mxu0 %v510
    %2119 = vmatpush.msra.mxu0 %v509
    %2120 = vmatmul.f32.gmra.mxu0 %v2022
    %v2121 = vpop.f32.mrf.mxu0
    %v2122 = vadd.f32 %v675, %v2121
    %2123 = vdwg.mxu0
    %v2124 = vmul.f32 %v2063, %v2122
    %v2125 = vadd.f32 %v2019, %v2124
    %v2126 = vtanh.pop %v2125
    %v2127 = vsub.f32 1.0, %v2103
    %v2128 = vmul.f32 %v2127, %v2126
    %v2129 = vmul.f32 %v2103, %v1838
    %v2130 = vadd.f32 %v2128, %v2129
    %2131 = vmatpush.msra.mxu0 0.0
    %2132 = vmatpush.msra.mxu0 0.0
    %2133 = vmatpush.msra.mxu0 0.0
    %2134 = vmatpush.msra.mxu0 0.0
    %2135 = vmatpush.msra.mxu0 0.0
    %2136 = vmatpush.msra.mxu0 0.0
    %2137 = vmatpush.msra.mxu0 0.0
    %2138 = vmatpush.msra.mxu0 0.0
    %2139 = vmatpush.msra.mxu0 0.0
    %2140 = vmatpush.msra.mxu0 0.0
    %2141 = vmatpush.msra.mxu0 0.0
    %2142 = vmatpush.msra.mxu0 0.0
    %2143 = vmatpush.msra.mxu0 %v479
    %2144 = vmatpush.msra.mxu0 %v478
    %2145 = vmatpush.msra.mxu0 %v477
    %2146 = vmatpush.msra.mxu0 %v476
    %2147 = vmatmul.f32.gmra.mxu0 %v1959
    %v2148 = vpop.f32.mrf.mxu0
    %v2149 = vadd.f32 0.0, %v2148
    %2150 = vdwg.mxu0
    %v2152 = vrot.slane %v2149, 4
    %v2154 = vadd.f32 %v412, %v2152
    %v2155 = vxor.u32 %v2154, 2147483648
    %v2156 = vmul.f32 %v2155, 1.442695
    %v2157 = vpow.pop %v2156
    %v2158 = vadd.f32 %v2157, 1.0
    %v2159 = vrcp.pop %v2158
    %v2160 = vmul.f32 %v2158, %v2159
    %v2161 = vsub.f32 1.0, %v2160
    %v2162 = vmul.f32 %v2159, %v2161
    %v2163 = vadd.f32 %v2159, %v2162
    %vm2164 = vweird.f32 %v2158
    %vm2165 = vweird.f32 %v2159
    %vm2166 = vmor %vm2164, %vm2165
    %v2167 = vsel %vm2166, %v2159, %v2163
    %v2168 = vand.u32 2147483647, %v2158
    %vm2169 = vcmp.eq.f32.partialorder %v2168, 8.507059e+37
    %v2170 = vand.u32 %v2158, 2147483648
    %v2171 = vor.u32 1.1754944e-38, %v2170
    %v2172 = vsel %vm2169, %v2171, %v2167
    %v2173 = vmul.f32 1.0, %v2172
    %2174 = vmatpush.msra.mxu0 0.0
    %2175 = vmatpush.msra.mxu0 0.0
    %2176 = vmatpush.msra.mxu0 0.0
    %2177 = vmatpush.msra.mxu0 0.0
    %2178 = vmatpush.msra.mxu0 0.0
    %2179 = vmatpush.msra.mxu0 0.0
    %2180 = vmatpush.msra.mxu0 0.0
    %2181 = vmatpush.msra.mxu0 0.0
    %2182 = vmatpush.msra.mxu0 0.0
    %2183 = vmatpush.msra.mxu0 0.0
    %2184 = vmatpush.msra.mxu0 0.0
    %2185 = vmatpush.msra.mxu0 0.0
    %2186 = vmatpush.msra.mxu0 %v483
    %2187 = vmatpush.msra.mxu0 %v482
    %2188 = vmatpush.msra.mxu0 %v481
    %2189 = vmatpush.msra.mxu0 %v480
    %2190 = vmatmul.f32.gmra.mxu0 %v1959
    %v2191 = vpop.f32.mrf.mxu0
    %v2192 = vadd.f32 0.0, %v2191
    %2193 = vdwg.mxu0
    %v2195 = vrot.slane %v2192, 4
    %v2197 = vadd.f32 %v443, %v2195
    %v2198 = vxor.u32 %v2197, 2147483648
    %v2199 = vmul.f32 %v2198, 1.442695
    %v2200 = vpow.pop %v2199
    %v2201 = vadd.f32 %v2200, 1.0
    %v2202 = vrcp.pop %v2201
    %v2203 = vmul.f32 %v2201, %v2202
    %v2204 = vsub.f32 1.0, %v2203
    %v2205 = vmul.f32 %v2202, %v2204
    %v2206 = vadd.f32 %v2202, %v2205
    %vm2207 = vweird.f32 %v2201
    %vm2208 = vweird.f32 %v2202
    %vm2209 = vmor %vm2207, %vm2208
    %v2210 = vsel %vm2209, %v2202, %v2206
    %v2211 = vand.u32 2147483647, %v2201
    %vm2212 = vcmp.eq.f32.partialorder %v2211, 8.507059e+37
    %v2213 = vand.u32 %v2201, 2147483648
    %v2214 = vor.u32 1.1754944e-38, %v2213
    %v2215 = vsel %vm2212, %v2214, %v2210
    %v2216 = vmul.f32 1.0, %v2215
    %2217 = vmatpush.msra.mxu0 0.0
    %2218 = vmatpush.msra.mxu0 0.0
    %2219 = vmatpush.msra.mxu0 0.0
    %2220 = vmatpush.msra.mxu0 0.0
    %2221 = vmatpush.msra.mxu0 0.0
    %2222 = vmatpush.msra.mxu0 0.0
    %2223 = vmatpush.msra.mxu0 0.0
    %2224 = vmatpush.msra.mxu0 0.0
    %2225 = vmatpush.msra.mxu0 0.0
    %2226 = vmatpush.msra.mxu0 0.0
    %2227 = vmatpush.msra.mxu0 0.0
    %2228 = vmatpush.msra.mxu0 0.0
    %2229 = vmatpush.msra.mxu0 %v487
    %2230 = vmatpush.msra.mxu0 %v486
    %2231 = vmatpush.msra.mxu0 %v485
    %2232 = vmatpush.msra.mxu0 %v484
    %2233 = vmatmul.f32.gmra.mxu0 %v1959
    %v2234 = vpop.f32.mrf.mxu0
    %v2235 = vadd.f32 %v556, %v2234
    %2236 = vdwg.mxu0
    %v2238 = vrot.slane %v2235, 4
    %v2240 = vmul.f32 %v2173, %v2238
    %v2241 = vadd.f32 %v474, %v2240
    %v2242 = vtanh.pop %v2241
    %v2243 = vsub.f32 1.0, %v2216
    %v2244 = vmul.f32 %v2243, %v2242
    %v2245 = vrot.slane %v1956, 6
    %v2247 = vmul.f32 %v2216, %v2245
    %v2248 = vadd.f32 %v2244, %v2247
    %v2250 = vrot.slane %v2248, 4
    %v2251 = vsel %vm566, %v2250, 0
    %2253 = vmatpush.msra.mxu0 0.0
    %2254 = vmatpush.msra.mxu0 0.0
    %2255 = vmatpush.msra.mxu0 0.0
    %2256 = vmatpush.msra.mxu0 0.0
    %2257 = vmatpush.msra.mxu0 0.0
    %2258 = vmatpush.msra.mxu0 0.0
    %2259 = vmatpush.msra.mxu0 0.0
    %2260 = vmatpush.msra.mxu0 0.0
    %2261 = vmatpush.msra.mxu0 0.0
    %2262 = vmatpush.msra.mxu0 0.0
    %2263 = vmatpush.msra.mxu0 0.0
    %2264 = vmatpush.msra.mxu0 0.0
    %2265 = vmatpush.msra.mxu0 %v492
    %2266 = vmatpush.msra.mxu0 %v491
    %2267 = vmatpush.msra.mxu0 %v490
    %2268 = vmatpush.msra.mxu0 %v489
    %2269 = vmatmul.f32.gmra.mxu0 %v2251
    %v2270 = vpop.f32.mrf.mxu0
    %v2271 = vadd.f32 %v564, %v2270
    %2272 = vdwg.mxu0
    %2273 = vmatpush.msra.mxu0 0.0
    %2274 = vmatpush.msra.mxu0 0.0
    %2275 = vmatpush.msra.mxu0 0.0
    %2276 = vmatpush.msra.mxu0 0.0
    %2277 = vmatpush.msra.mxu0 0.0
    %2278 = vmatpush.msra.mxu0 0.0
    %2279 = vmatpush.msra.mxu0 0.0
    %2280 = vmatpush.msra.mxu0 0.0
    %2281 = vmatpush.msra.mxu0 0.0
    %2282 = vmatpush.msra.mxu0 0.0
    %2283 = vmatpush.msra.mxu0 0.0
    %2284 = vmatpush.msra.mxu0 0.0
    %2285 = vmatpush.msra.mxu0 %v496
    %2286 = vmatpush.msra.mxu0 %v495
    %2287 = vmatpush.msra.mxu0 %v494
    %2288 = vmatpush.msra.mxu0 %v493
    %2289 = vmatmul.f32.gmra.mxu0 %v2251
    %v2290 = vpop.f32.mrf.mxu0
    %v2291 = vadd.f32 %v591, %v2290
    %2292 = vdwg.mxu0
    %2293 = vmatpush.msra.mxu0 0.0
    %2294 = vmatpush.msra.mxu0 0.0
    %2295 = vmatpush.msra.mxu0 0.0
    %2296 = vmatpush.msra.mxu0 0.0
    %2297 = vmatpush.msra.mxu0 0.0
    %2298 = vmatpush.msra.mxu0 0.0
    %2299 = vmatpush.msra.mxu0 0.0
    %2300 = vmatpush.msra.mxu0 0.0
    %2301 = vmatpush.msra.mxu0 0.0
    %2302 = vmatpush.msra.mxu0 0.0
    %2303 = vmatpush.msra.mxu0 0.0
    %2304 = vmatpush.msra.mxu0 0.0
    %2305 = vmatpush.msra.mxu0 %v500
    %2306 = vmatpush.msra.mxu0 %v499
    %2307 = vmatpush.msra.mxu0 %v498
    %2308 = vmatpush.msra.mxu0 %v497
    %2309 = vmatmul.f32.gmra.mxu0 %v2251
    %v2310 = vpop.f32.mrf.mxu0
    %v2311 = vadd.f32 %v614, %v2310
    %2312 = vdwg.mxu0
    %v2314 = vsel %vm566, %v2130, 0
    %2316 = vmatpush.msra.mxu0 0.0
    %2317 = vmatpush.msra.mxu0 0.0
    %2318 = vmatpush.msra.mxu0 0.0
    %2319 = vmatpush.msra.mxu0 0.0
    %2320 = vmatpush.msra.mxu0 0.0
    %2321 = vmatpush.msra.mxu0 0.0
    %2322 = vmatpush.msra.mxu0 0.0
    %2323 = vmatpush.msra.mxu0 0.0
    %2324 = vmatpush.msra.mxu0 0.0
    %2325 = vmatpush.msra.mxu0 0.0
    %2326 = vmatpush.msra.mxu0 0.0
    %2327 = vmatpush.msra.mxu0 0.0
    %2328 = vmatpush.msra.mxu0 %v504
    %2329 = vmatpush.msra.mxu0 %v503
    %2330 = vmatpush.msra.mxu0 %v502
    %2331 = vmatpush.msra.mxu0 %v501
    %2332 = vmatmul.f32.gmra.mxu0 %v2314
    %v2333 = vpop.f32.mrf.mxu0
    %v2334 = vadd.f32 0.0, %v2333
    %2335 = vdwg.mxu0
    %v2336 = vadd.f32 %v2271, %v2334
    %v2337 = vxor.u32 %v2336, 2147483648
    %v2338 = vmul.f32 %v2337, 1.442695
    %v2339 = vpow.pop %v2338
    %v2340 = vadd.f32 %v2339, 1.0
    %v2341 = vrcp.pop %v2340
    %v2342 = vmul.f32 %v2340, %v2341
    %v2343 = vsub.f32 1.0, %v2342
    %v2344 = vmul.f32 %v2341, %v2343
    %v2345 = vadd.f32 %v2341, %v2344
    %vm2346 = vweird.f32 %v2340
    %vm2347 = vweird.f32 %v2341
    %vm2348 = vmor %vm2346, %vm2347
    %v2349 = vsel %vm2348, %v2341, %v2345
    %v2350 = vand.u32 2147483647, %v2340
    %vm2351 = vcmp.eq.f32.partialorder %v2350, 8.507059e+37
    %v2352 = vand.u32 %v2340, 2147483648
    %v2353 = vor.u32 1.1754944e-38, %v2352
    %v2354 = vsel %vm2351, %v2353, %v2349
    %v2355 = vmul.f32 1.0, %v2354
    %2356 = vmatpush.msra.mxu0 0.0
    %2357 = vmatpush.msra.mxu0 0.0
    %2358 = vmatpush.msra.mxu0 0.0
    %2359 = vmatpush.msra.mxu0 0.0
    %2360 = vmatpush.msra.mxu0 0.0
    %2361 = vmatpush.msra.mxu0 0.0
    %2362 = vmatpush.msra.mxu0 0.0
    %2363 = vmatpush.msra.mxu0 0.0
    %2364 = vmatpush.msra.mxu0 0.0
    %2365 = vmatpush.msra.mxu0 0.0
    %2366 = vmatpush.msra.mxu0 0.0
    %2367 = vmatpush.msra.mxu0 0.0
    %2368 = vmatpush.msra.mxu0 %v508
    %2369 = vmatpush.msra.mxu0 %v507
    %2370 = vmatpush.msra.mxu0 %v506
    %2371 = vmatpush.msra.mxu0 %v505
    %2372 = vmatmul.f32.gmra.mxu0 %v2314
    %v2373 = vpop.f32.mrf.mxu0
    %v2374 = vadd.f32 0.0, %v2373
    %2375 = vdwg.mxu0
    %v2376 = vadd.f32 %v2291, %v2374
    %v2377 = vxor.u32 %v2376, 2147483648
    %v2378 = vmul.f32 %v2377, 1.442695
    %v2379 = vpow.pop %v2378
    %v2380 = vadd.f32 %v2379, 1.0
    %v2381 = vrcp.pop %v2380
    %v2382 = vmul.f32 %v2380, %v2381
    %v2383 = vsub.f32 1.0, %v2382
    %v2384 = vmul.f32 %v2381, %v2383
    %v2385 = vadd.f32 %v2381, %v2384
    %vm2386 = vweird.f32 %v2380
    %vm2387 = vweird.f32 %v2381
    %vm2388 = vmor %vm2386, %vm2387
    %v2389 = vsel %vm2388, %v2381, %v2385
    %v2390 = vand.u32 2147483647, %v2380
    %vm2391 = vcmp.eq.f32.partialorder %v2390, 8.507059e+37
    %v2392 = vand.u32 %v2380, 2147483648
    %v2393 = vor.u32 1.1754944e-38, %v2392
    %v2394 = vsel %vm2391, %v2393, %v2389
    %v2395 = vmul.f32 1.0, %v2394
    %2396 = vmatpush.msra.mxu0 0.0
    %2397 = vmatpush.msra.mxu0 0.0
    %2398 = vmatpush.msra.mxu0 0.0
    %2399 = vmatpush.msra.mxu0 0.0
    %2400 = vmatpush.msra.mxu0 0.0
    %2401 = vmatpush.msra.mxu0 0.0
    %2402 = vmatpush.msra.mxu0 0.0
    %2403 = vmatpush.msra.mxu0 0.0
    %2404 = vmatpush.msra.mxu0 0.0
    %2405 = vmatpush.msra.mxu0 0.0
    %2406 = vmatpush.msra.mxu0 0.0
    %2407 = vmatpush.msra.mxu0 0.0
    %2408 = vmatpush.msra.mxu0 %v512
    %2409 = vmatpush.msra.mxu0 %v511
    %2410 = vmatpush.msra.mxu0 %v510
    %2411 = vmatpush.msra.mxu0 %v509
    %2412 = vmatmul.f32.gmra.mxu0 %v2314
    %v2413 = vpop.f32.mrf.mxu0
    %v2414 = vadd.f32 %v675, %v2413
    %2415 = vdwg.mxu0
    %v2416 = vmul.f32 %v2355, %v2414
    %v2417 = vadd.f32 %v2311, %v2416
    %v2418 = vtanh.pop %v2417
    %v2419 = vsub.f32 1.0, %v2395
    %v2420 = vmul.f32 %v2419, %v2418
    %v2421 = vmul.f32 %v2395, %v2130
    %v2422 = vadd.f32 %v2420, %v2421
    %2423 = vmatpush.msra.mxu0 0.0
    %2424 = vmatpush.msra.mxu0 0.0
    %2425 = vmatpush.msra.mxu0 0.0
    %2426 = vmatpush.msra.mxu0 0.0
    %2427 = vmatpush.msra.mxu0 0.0
    %2428 = vmatpush.msra.mxu0 0.0
    %2429 = vmatpush.msra.mxu0 0.0
    %2430 = vmatpush.msra.mxu0 0.0
    %2431 = vmatpush.msra.mxu0 0.0
    %2432 = vmatpush.msra.mxu0 0.0
    %2433 = vmatpush.msra.mxu0 0.0
    %2434 = vmatpush.msra.mxu0 0.0
    %2435 = vmatpush.msra.mxu0 %v479
    %2436 = vmatpush.msra.mxu0 %v478
    %2437 = vmatpush.msra.mxu0 %v477
    %2438 = vmatpush.msra.mxu0 %v476
    %2439 = vmatmul.f32.gmra.mxu0 %v2251
    %v2440 = vpop.f32.mrf.mxu0
    %v2441 = vadd.f32 0.0, %v2440
    %2442 = vdwg.mxu0
    %v2444 = vrot.slane %v2441, 2
    %v2446 = vadd.f32 %v412, %v2444
    %v2447 = vxor.u32 %v2446, 2147483648
    %v2448 = vmul.f32 %v2447, 1.442695
    %v2449 = vpow.pop %v2448
    %v2450 = vadd.f32 %v2449, 1.0
    %v2451 = vrcp.pop %v2450
    %v2452 = vmul.f32 %v2450, %v2451
    %v2453 = vsub.f32 1.0, %v2452
    %v2454 = vmul.f32 %v2451, %v2453
    %v2455 = vadd.f32 %v2451, %v2454
    %vm2456 = vweird.f32 %v2450
    %vm2457 = vweird.f32 %v2451
    %vm2458 = vmor %vm2456, %vm2457
    %v2459 = vsel %vm2458, %v2451, %v2455
    %v2460 = vand.u32 2147483647, %v2450
    %vm2461 = vcmp.eq.f32.partialorder %v2460, 8.507059e+37
    %v2462 = vand.u32 %v2450, 2147483648
    %v2463 = vor.u32 1.1754944e-38, %v2462
    %v2464 = vsel %vm2461, %v2463, %v2459
    %v2465 = vmul.f32 1.0, %v2464
    %2466 = vmatpush.msra.mxu0 0.0
    %2467 = vmatpush.msra.mxu0 0.0
    %2468 = vmatpush.msra.mxu0 0.0
    %2469 = vmatpush.msra.mxu0 0.0
    %2470 = vmatpush.msra.mxu0 0.0
    %2471 = vmatpush.msra.mxu0 0.0
    %2472 = vmatpush.msra.mxu0 0.0
    %2473 = vmatpush.msra.mxu0 0.0
    %2474 = vmatpush.msra.mxu0 0.0
    %2475 = vmatpush.msra.mxu0 0.0
    %2476 = vmatpush.msra.mxu0 0.0
    %2477 = vmatpush.msra.mxu0 0.0
    %2478 = vmatpush.msra.mxu0 %v483
    %2479 = vmatpush.msra.mxu0 %v482
    %2480 = vmatpush.msra.mxu0 %v481
    %2481 = vmatpush.msra.mxu0 %v480
    %2482 = vmatmul.f32.gmra.mxu0 %v2251
    %v2483 = vpop.f32.mrf.mxu0
    %v2484 = vadd.f32 0.0, %v2483
    %2485 = vdwg.mxu0
    %v2487 = vrot.slane %v2484, 2
    %v2489 = vadd.f32 %v443, %v2487
    %v2490 = vxor.u32 %v2489, 2147483648
    %v2491 = vmul.f32 %v2490, 1.442695
    %v2492 = vpow.pop %v2491
    %v2493 = vadd.f32 %v2492, 1.0
    %v2494 = vrcp.pop %v2493
    %v2495 = vmul.f32 %v2493, %v2494
    %v2496 = vsub.f32 1.0, %v2495
    %v2497 = vmul.f32 %v2494, %v2496
    %v2498 = vadd.f32 %v2494, %v2497
    %vm2499 = vweird.f32 %v2493
    %vm2500 = vweird.f32 %v2494
    %vm2501 = vmor %vm2499, %vm2500
    %v2502 = vsel %vm2501, %v2494, %v2498
    %v2503 = vand.u32 2147483647, %v2493
    %vm2504 = vcmp.eq.f32.partialorder %v2503, 8.507059e+37
    %v2505 = vand.u32 %v2493, 2147483648
    %v2506 = vor.u32 1.1754944e-38, %v2505
    %v2507 = vsel %vm2504, %v2506, %v2502
    %v2508 = vmul.f32 1.0, %v2507
    %2509 = vmatpush.msra.mxu0 0.0
    %2510 = vmatpush.msra.mxu0 0.0
    %2511 = vmatpush.msra.mxu0 0.0
    %2512 = vmatpush.msra.mxu0 0.0
    %2513 = vmatpush.msra.mxu0 0.0
    %2514 = vmatpush.msra.mxu0 0.0
    %2515 = vmatpush.msra.mxu0 0.0
    %2516 = vmatpush.msra.mxu0 0.0
    %2517 = vmatpush.msra.mxu0 0.0
    %2518 = vmatpush.msra.mxu0 0.0
    %2519 = vmatpush.msra.mxu0 0.0
    %2520 = vmatpush.msra.mxu0 0.0
    %2521 = vmatpush.msra.mxu0 %v487
    %2522 = vmatpush.msra.mxu0 %v486
    %2523 = vmatpush.msra.mxu0 %v485
    %2524 = vmatpush.msra.mxu0 %v484
    %2525 = vmatmul.f32.gmra.mxu0 %v2251
    %v2526 = vpop.f32.mrf.mxu0
    %v2527 = vadd.f32 %v556, %v2526
    %2528 = vdwg.mxu0
    %v2530 = vrot.slane %v2527, 2
    %v2532 = vmul.f32 %v2465, %v2530
    %v2533 = vadd.f32 %v474, %v2532
    %v2534 = vtanh.pop %v2533
    %v2535 = vsub.f32 1.0, %v2508
    %v2536 = vmul.f32 %v2535, %v2534
    %v2537 = vrot.slane %v2248, 6
    %v2539 = vmul.f32 %v2508, %v2537
    %v2540 = vadd.f32 %v2536, %v2539
    %v2542 = vrot.slane %v2540, 6
    %v2543 = vsel %vm566, %v2542, 0
    %2545 = vmatpush.msra.mxu0 0.0
    %2546 = vmatpush.msra.mxu0 0.0
    %2547 = vmatpush.msra.mxu0 0.0
    %2548 = vmatpush.msra.mxu0 0.0
    %2549 = vmatpush.msra.mxu0 0.0
    %2550 = vmatpush.msra.mxu0 0.0
    %2551 = vmatpush.msra.mxu0 0.0
    %2552 = vmatpush.msra.mxu0 0.0
    %2553 = vmatpush.msra.mxu0 0.0
    %2554 = vmatpush.msra.mxu0 0.0
    %2555 = vmatpush.msra.mxu0 0.0
    %2556 = vmatpush.msra.mxu0 0.0
    %2557 = vmatpush.msra.mxu0 %v492
    %2558 = vmatpush.msra.mxu0 %v491
    %2559 = vmatpush.msra.mxu0 %v490
    %2560 = vmatpush.msra.mxu0 %v489
    %2561 = vmatmul.f32.gmra.mxu0 %v2543
    %v2562 = vpop.f32.mrf.mxu0
    %v2563 = vadd.f32 %v564, %v2562
    %2564 = vdwg.mxu0
    %2565 = vmatpush.msra.mxu0 0.0
    %2566 = vmatpush.msra.mxu0 0.0
    %2567 = vmatpush.msra.mxu0 0.0
    %2568 = vmatpush.msra.mxu0 0.0
    %2569 = vmatpush.msra.mxu0 0.0
    %2570 = vmatpush.msra.mxu0 0.0
    %2571 = vmatpush.msra.mxu0 0.0
    %2572 = vmatpush.msra.mxu0 0.0
    %2573 = vmatpush.msra.mxu0 0.0
    %2574 = vmatpush.msra.mxu0 0.0
    %2575 = vmatpush.msra.mxu0 0.0
    %2576 = vmatpush.msra.mxu0 0.0
    %2577 = vmatpush.msra.mxu0 %v496
    %2578 = vmatpush.msra.mxu0 %v495
    %2579 = vmatpush.msra.mxu0 %v494
    %2580 = vmatpush.msra.mxu0 %v493
    %2581 = vmatmul.f32.gmra.mxu0 %v2543
    %v2582 = vpop.f32.mrf.mxu0
    %v2583 = vadd.f32 %v591, %v2582
    %2584 = vdwg.mxu0
    %2585 = vmatpush.msra.mxu0 0.0
    %2586 = vmatpush.msra.mxu0 0.0
    %2587 = vmatpush.msra.mxu0 0.0
    %2588 = vmatpush.msra.mxu0 0.0
    %2589 = vmatpush.msra.mxu0 0.0
    %2590 = vmatpush.msra.mxu0 0.0
    %2591 = vmatpush.msra.mxu0 0.0
    %2592 = vmatpush.msra.mxu0 0.0
    %2593 = vmatpush.msra.mxu0 0.0
    %2594 = vmatpush.msra.mxu0 0.0
    %2595 = vmatpush.msra.mxu0 0.0
    %2596 = vmatpush.msra.mxu0 0.0
    %2597 = vmatpush.msra.mxu0 %v500
    %2598 = vmatpush.msra.mxu0 %v499
    %2599 = vmatpush.msra.mxu0 %v498
    %2600 = vmatpush.msra.mxu0 %v497
    %2601 = vmatmul.f32.gmra.mxu0 %v2543
    %v2602 = vpop.f32.mrf.mxu0
    %v2603 = vadd.f32 %v614, %v2602
    %2604 = vdwg.mxu0
    %v2606 = vsel %vm566, %v2422, 0
    %2608 = vmatpush.msra.mxu0 0.0
    %2609 = vmatpush.msra.mxu0 0.0
    %2610 = vmatpush.msra.mxu0 0.0
    %2611 = vmatpush.msra.mxu0 0.0
    %2612 = vmatpush.msra.mxu0 0.0
    %2613 = vmatpush.msra.mxu0 0.0
    %2614 = vmatpush.msra.mxu0 0.0
    %2615 = vmatpush.msra.mxu0 0.0
    %2616 = vmatpush.msra.mxu0 0.0
    %2617 = vmatpush.msra.mxu0 0.0
    %2618 = vmatpush.msra.mxu0 0.0
    %2619 = vmatpush.msra.mxu0 0.0
    %2620 = vmatpush.msra.mxu0 %v504
    %2621 = vmatpush.msra.mxu0 %v503
    %2622 = vmatpush.msra.mxu0 %v502
    %2623 = vmatpush.msra.mxu0 %v501
    %2624 = vmatmul.f32.gmra.mxu0 %v2606
    %v2625 = vpop.f32.mrf.mxu0
    %v2626 = vadd.f32 0.0, %v2625
    %2627 = vdwg.mxu0
    %v2628 = vadd.f32 %v2563, %v2626
    %v2629 = vxor.u32 %v2628, 2147483648
    %v2630 = vmul.f32 %v2629, 1.442695
    %v2631 = vpow.pop %v2630
    %v2632 = vadd.f32 %v2631, 1.0
    %v2633 = vrcp.pop %v2632
    %v2634 = vmul.f32 %v2632, %v2633
    %v2635 = vsub.f32 1.0, %v2634
    %v2636 = vmul.f32 %v2633, %v2635
    %v2637 = vadd.f32 %v2633, %v2636
    %vm2638 = vweird.f32 %v2632
    %vm2639 = vweird.f32 %v2633
    %vm2640 = vmor %vm2638, %vm2639
    %v2641 = vsel %vm2640, %v2633, %v2637
    %v2642 = vand.u32 2147483647, %v2632
    %vm2643 = vcmp.eq.f32.partialorder %v2642, 8.507059e+37
    %v2644 = vand.u32 %v2632, 2147483648
    %v2645 = vor.u32 1.1754944e-38, %v2644
    %v2646 = vsel %vm2643, %v2645, %v2641
    %v2647 = vmul.f32 1.0, %v2646
    %2648 = vmatpush.msra.mxu0 0.0
    %2649 = vmatpush.msra.mxu0 0.0
    %2650 = vmatpush.msra.mxu0 0.0
    %2651 = vmatpush.msra.mxu0 0.0
    %2652 = vmatpush.msra.mxu0 0.0
    %2653 = vmatpush.msra.mxu0 0.0
    %2654 = vmatpush.msra.mxu0 0.0
    %2655 = vmatpush.msra.mxu0 0.0
    %2656 = vmatpush.msra.mxu0 0.0
    %2657 = vmatpush.msra.mxu0 0.0
    %2658 = vmatpush.msra.mxu0 0.0
    %2659 = vmatpush.msra.mxu0 0.0
    %2660 = vmatpush.msra.mxu0 %v508
    %2661 = vmatpush.msra.mxu0 %v507
    %2662 = vmatpush.msra.mxu0 %v506
    %2663 = vmatpush.msra.mxu0 %v505
    %2664 = vmatmul.f32.gmra.mxu0 %v2606
    %v2665 = vpop.f32.mrf.mxu0
    %v2666 = vadd.f32 0.0, %v2665
    %2667 = vdwg.mxu0
    %v2668 = vadd.f32 %v2583, %v2666
    %v2669 = vxor.u32 %v2668, 2147483648
    %v2670 = vmul.f32 %v2669, 1.442695
    %v2671 = vpow.pop %v2670
    %v2672 = vadd.f32 %v2671, 1.0
    %v2673 = vrcp.pop %v2672
    %v2674 = vmul.f32 %v2672, %v2673
    %v2675 = vsub.f32 1.0, %v2674
    %v2676 = vmul.f32 %v2673, %v2675
    %v2677 = vadd.f32 %v2673, %v2676
    %vm2678 = vweird.f32 %v2672
    %vm2679 = vweird.f32 %v2673
    %vm2680 = vmor %vm2678, %vm2679
    %v2681 = vsel %vm2680, %v2673, %v2677
    %v2682 = vand.u32 2147483647, %v2672
    %vm2683 = vcmp.eq.f32.partialorder %v2682, 8.507059e+37
    %v2684 = vand.u32 %v2672, 2147483648
    %v2685 = vor.u32 1.1754944e-38, %v2684
    %v2686 = vsel %vm2683, %v2685, %v2681
    %v2687 = vmul.f32 1.0, %v2686
    %2688 = vmatpush.msra.mxu0 0.0
    %2689 = vmatpush.msra.mxu0 0.0
    %2690 = vmatpush.msra.mxu0 0.0
    %2691 = vmatpush.msra.mxu0 0.0
    %2692 = vmatpush.msra.mxu0 0.0
    %2693 = vmatpush.msra.mxu0 0.0
    %2694 = vmatpush.msra.mxu0 0.0
    %2695 = vmatpush.msra.mxu0 0.0
    %2696 = vmatpush.msra.mxu0 0.0
    %2697 = vmatpush.msra.mxu0 0.0
    %2698 = vmatpush.msra.mxu0 0.0
    %2699 = vmatpush.msra.mxu0 0.0
    %2700 = vmatpush.msra.mxu0 %v512
    %2701 = vmatpush.msra.mxu0 %v511
    %2702 = vmatpush.msra.mxu0 %v510
    %2703 = vmatpush.msra.mxu0 %v509
    %2704 = vmatmul.f32.gmra.mxu0 %v2606
    %v2705 = vpop.f32.mrf.mxu0
    %v2706 = vadd.f32 %v675, %v2705
    %2707 = vdwg.mxu0
    %v2708 = vmul.f32 %v2647, %v2706
    %v2709 = vadd.f32 %v2603, %v2708
    %v2710 = vtanh.pop %v2709
    %v2711 = vsub.f32 1.0, %v2687
    %v2712 = vmul.f32 %v2711, %v2710
    %v2713 = vmul.f32 %v2687, %v2422
    %v2714 = vadd.f32 %v2712, %v2713
    %v2715 = vld [vmem:[%s43] sm:$0xff]
    %v2716 = vld [vmem:[%s43 + $0x8] sm:$0xff]
    %v2717 = vld [vmem:[%s43 + $0x10] sm:$0xff]
    %v2718 = vld [vmem:[%s43 + $0x18] sm:$0xff]
    %v2719 = vld [vmem:[#allocation24] sm:$0x1]
    %v2721 = vperm.slane %v2719, 0
    %v2724 = vsel %vm566, %v2714, 0
    %2726 = vmatpush.msra.mxu0 0.0
    %2727 = vmatpush.msra.mxu0 0.0
    %2728 = vmatpush.msra.mxu0 0.0
    %2729 = vmatpush.msra.mxu0 0.0
    %2730 = vmatpush.msra.mxu0 0.0
    %2731 = vmatpush.msra.mxu0 0.0
    %2732 = vmatpush.msra.mxu0 0.0
    %2733 = vmatpush.msra.mxu0 0.0
    %2734 = vmatpush.msra.mxu0 0.0
    %2735 = vmatpush.msra.mxu0 0.0
    %2736 = vmatpush.msra.mxu0 0.0
    %2737 = vmatpush.msra.mxu0 0.0
    %2738 = vmatpush.msra.mxu0 %v2718
    %2739 = vmatpush.msra.mxu0 %v2717
    %2740 = vmatpush.msra.mxu0 %v2716
    %2741 = vmatpush.msra.mxu0 %v2715
    %2742 = vmatmul.f32.gmra.mxu0 %v2724
    %v2743 = vpop.f32.mrf.mxu0
    %v2744 = vadd.f32 %v2721, %v2743
    %2745 = vdwg.mxu0
    %v2746 = vld [vmem:[%s61] sm:$0xff]
    %v2747 = vld [vmem:[%s47] sm:$0xff]
    %v2748 = vld [vmem:[%s47 + $0x8] sm:$0xff]
    %v2749 = vld [vmem:[%s47 + $0x10] sm:$0xff]
    %v2750 = vld [vmem:[%s47 + $0x18] sm:$0xff]
    %v2751 = vld [vmem:[%s47 + $0x20] sm:$0xff]
    %v2752 = vld [vmem:[%s47 + $0x28] sm:$0xff]
    %v2753 = vld [vmem:[%s47 + $0x30] sm:$0xff]
    %v2754 = vld [vmem:[%s47 + $0x38] sm:$0xff]
    %v2755 = vld [vmem:[%s47 + $0x40] sm:$0x3]
    %v2756 = vld [vmem:[#allocation25] sm:$0x1]
    %v2758 = vperm.slane %v2756, 0
    %vm2760 = vcmask 539648
    %v2762 = vsel %vm2760, %v2746, 0
    %vm2764 = vcmask 1041408
    %v2766 = vsel %vm2764, %v2755, 0
    %2768 = vmatpush.msra.mxu0 0.0
    %2769 = vmatpush.msra.mxu0 0.0
    %2770 = vmatpush.msra.mxu0 0.0
    %2771 = vmatpush.msra.mxu0 0.0
    %2772 = vmatpush.msra.mxu0 0.0
    %2773 = vmatpush.msra.mxu0 0.0
    %2774 = vmatpush.msra.mxu0 0.0
    %2775 = vmatpush.msra.mxu0 %v2766
    %2776 = vmatpush.msra.mxu0 %v2754
    %2777 = vmatpush.msra.mxu0 %v2753
    %2778 = vmatpush.msra.mxu0 %v2752
    %2779 = vmatpush.msra.mxu0 %v2751
    %2780 = vmatpush.msra.mxu0 %v2750
    %2781 = vmatpush.msra.mxu0 %v2749
    %2782 = vmatpush.msra.mxu0 %v2748
    %2783 = vmatpush.msra.mxu0 %v2747
    %2784 = vmatmul.f32.gmra.mxu0 %v2762
    %v2785 = vpop.f32.mrf.mxu0
    %v2786 = vadd.f32 %v2758, %v2785
    %2787 = vdwg.mxu0
    %v2788 = vld [vmem:[%s49] sm:$0x3]
    %vm2789 = vcmask 15360
    %v2791 = vsel %vm2789, %v2744, 0
    %v2794 = vsel %vm2764, %v2788, 0
    %2796 = vmatpush.msra.mxu0 0.0
    %2797 = vmatpush.msra.mxu0 0.0
    %2798 = vmatpush.msra.mxu0 0.0
    %2799 = vmatpush.msra.mxu0 0.0
    %2800 = vmatpush.msra.mxu0 0.0
    %2801 = vmatpush.msra.mxu0 0.0
    %2802 = vmatpush.msra.mxu0 0.0
    %2803 = vmatpush.msra.mxu0 0.0
    %2804 = vmatpush.msra.mxu0 0.0
    %2805 = vmatpush.msra.mxu0 0.0
    %2806 = vmatpush.msra.mxu0 0.0
    %2807 = vmatpush.msra.mxu0 0.0
    %2808 = vmatpush.msra.mxu0 0.0
    %2809 = vmatpush.msra.mxu0 0.0
    %2810 = vmatpush.msra.mxu0 0.0
    %2811 = vmatpush.msra.mxu0 %v2794
    %2812 = vmatmul.f32.gmra.mxu0 %v2791
    %v2813 = vpop.f32.mrf.mxu0
    %v2814 = vadd.f32 0.0, %v2813
    %2815 = vdwg.mxu0
    %v2816 = vperm.slane %v2814, 0
    %v2817 = vadd.f32 %v2786, %v2816
    %v2818 = vperm.slane %v2814, 1
    %v2819 = vadd.f32 %v2786, %v2818
    %v2820 = vtanh.pop %v2817
    %v2821 = vtanh.pop %v2819
    %v2822 = vld [vmem:[%s53] sm:$0xff]
    %v2823 = vld [vmem:[%s53 + $0x8] sm:$0xff]
    %v2824 = vld [vmem:[%s53 + $0x10] sm:$0xff]
    %v2825 = vld [vmem:[%s53 + $0x18] sm:$0xff]
    %v2826 = vld [vmem:[%s53 + $0x20] sm:$0xff]
    %v2827 = vld [vmem:[%s53 + $0x28] sm:$0xff]
    %v2828 = vld [vmem:[%s53 + $0x30] sm:$0xff]
    %v2829 = vld [vmem:[%s53 + $0x38] sm:$0xff]
    %v2830 = vld [vmem:[%s55] sm:$0x1]
    %v2832 = vperm.slane %v2830, 0
    %vm2834 = vcmask 523264
    %v2836 = vsel %vm2834, %v2820, 0
    %v2839 = vsel %vm2834, %v2821, 0
    %2841 = vmatpush.msra.mxu0 0.0
    %2842 = vmatpush.msra.mxu0 0.0
    %2843 = vmatpush.msra.mxu0 0.0
    %2844 = vmatpush.msra.mxu0 0.0
    %2845 = vmatpush.msra.mxu0 0.0
    %2846 = vmatpush.msra.mxu0 0.0
    %2847 = vmatpush.msra.mxu0 0.0
    %2848 = vmatpush.msra.mxu0 0.0
    %2849 = vmatpush.msra.mxu0 %v2829
    %2850 = vmatpush.msra.mxu0 %v2828
    %2851 = vmatpush.msra.mxu0 %v2827
    %2852 = vmatpush.msra.mxu0 %v2826
    %2853 = vmatpush.msra.mxu0 %v2825
    %2854 = vmatpush.msra.mxu0 %v2824
    %2855 = vmatpush.msra.mxu0 %v2823
    %2856 = vmatpush.msra.mxu0 %v2822
    %2857 = vmatmul.f32.gmra.mxu0 %v2836
    %v2858 = vpop.f32.mrf.mxu0
    %v2859 = vadd.f32 %v2832, %v2858
    %2860 = vmatmul.f32.gmra.mxu0 %v2839
    %v2861 = vpop.f32.mrf.mxu0
    %v2862 = vadd.f32 %v2832, %v2861
    %2863 = vdwg.mxu0
    %v2864 = vtanh.pop %v2859
    %v2865 = vtanh.pop %v2862
    %v2866 = vld [vmem:[%s57] sm:$0xff]
    %v2867 = vld [vmem:[%s57 + $0x8] sm:$0xff]
    %v2868 = vld [vmem:[%s57 + $0x10] sm:$0xff]
    %v2869 = vld [vmem:[%s57 + $0x18] sm:$0xff]
    %v2870 = vld [vmem:[%s57 + $0x20] sm:$0xff]
    %v2871 = vld [vmem:[%s57 + $0x28] sm:$0xff]
    %v2872 = vld [vmem:[%s57 + $0x30] sm:$0xff]
    %v2873 = vld [vmem:[%s57 + $0x38] sm:$0xff]
    %v2874 = vld [vmem:[%s57 + $0x40] sm:$0xff]
    %v2875 = vld [vmem:[%s57 + $0x48] sm:$0xff]
    %v2876 = vld [vmem:[%s57 + $0x50] sm:$0xff]
    %v2877 = vld [vmem:[%s57 + $0x58] sm:$0xff]
    %v2878 = vld [vmem:[%s57 + $0x60] sm:$0xff]
    %v2879 = vld [vmem:[%s57 + $0x68] sm:$0xff]
    %v2880 = vld [vmem:[%s57 + $0x70] sm:$0xff]
    %v2881 = vld [vmem:[%s57 + $0x78] sm:$0xff]
    %v2882 = vld [vmem:[%s59] sm:$0x3]
    %v2884 = vperm.slane %v2882, 0
    %v2885 = vperm.slane %v2882, 1
    %v2889 = vsel %vm2834, %v2864, 0
    %v2892 = vsel %vm2834, %v2865, 0
    %2894 = vmatpush.msra.mxu0 0.0
    %2895 = vmatpush.msra.mxu0 0.0
    %2896 = vmatpush.msra.mxu0 0.0
    %2897 = vmatpush.msra.mxu0 0.0
    %2898 = vmatpush.msra.mxu0 0.0
    %2899 = vmatpush.msra.mxu0 0.0
    %2900 = vmatpush.msra.mxu0 0.0
    %2901 = vmatpush.msra.mxu0 0.0
    %2902 = vmatpush.msra.mxu0 %v2880
    %2903 = vmatpush.msra.mxu0 %v2878
    %2904 = vmatpush.msra.mxu0 %v2876
    %2905 = vmatpush.msra.mxu0 %v2874
    %2906 = vmatpush.msra.mxu0 %v2872
    %2907 = vmatpush.msra.mxu0 %v2870
    %2908 = vmatpush.msra.mxu0 %v2868
    %2909 = vmatpush.msra.mxu0 %v2866
    %2910 = vmatmul.f32.gmra.mxu0 %v2889
    %v2911 = vpop.f32.mrf.mxu0
    %v2912 = vadd.f32 %v2884, %v2911
    %2913 = vmatmul.f32.gmra.mxu0 %v2892
    %v2914 = vpop.f32.mrf.mxu0
    %v2915 = vadd.f32 %v2884, %v2914
    %2916 = vdwg.mxu0
    %2917 = vmatpush.msra.mxu0 0.0
    %2918 = vmatpush.msra.mxu0 0.0
    %2919 = vmatpush.msra.mxu0 0.0
    %2920 = vmatpush.msra.mxu0 0.0
    %2921 = vmatpush.msra.mxu0 0.0
    %2922 = vmatpush.msra.mxu0 0.0
    %2923 = vmatpush.msra.mxu0 0.0
    %2924 = vmatpush.msra.mxu0 0.0
    %2925 = vmatpush.msra.mxu0 %v2881
    %2926 = vmatpush.msra.mxu0 %v2879
    %2927 = vmatpush.msra.mxu0 %v2877
    %2928 = vmatpush.msra.mxu0 %v2875
    %2929 = vmatpush.msra.mxu0 %v2873
    %2930 = vmatpush.msra.mxu0 %v2871
    %2931 = vmatpush.msra.mxu0 %v2869
    %2932 = vmatpush.msra.mxu0 %v2867
    %2933 = vmatmul.f32.gmra.mxu0 %v2889
    %v2934 = vpop.f32.mrf.mxu0
    %v2935 = vadd.f32 %v2885, %v2934
    %2936 = vmatmul.f32.gmra.mxu0 %v2892
    %v2937 = vpop.f32.mrf.mxu0
    %v2938 = vadd.f32 %v2885, %v2937
    %2939 = vdwg.mxu0
    %v2940 = vtanh.pop %v2912
    %v2941 = vtanh.pop %v2915
    %v2942 = vmul.f32 %v2940, 3.1415927
    %v2943 = vmul.f32 %v2941, 3.1415927
    %v2944 = vtanh.pop %v2935
    %v2945 = vtanh.pop %v2938
    %v2946 = vmul.f32 %v2940, 1.5707964
    %v2947 = vmul.f32 %v2944, 1.5707964
    %v2948 = vmul.f32 %v2941, 1.5707964
    %v2949 = vmul.f32 %v2945, 1.5707964
    %v2950 = vsub.f32 %v2946, 1.5707964
    %v2951 = vsub.f32 %v2947, 1.5707964
    %v2952 = vsub.f32 %v2948, 1.5707964
    %v2953 = vsub.f32 %v2949, 1.5707964
    %v2954 = vadd.f32 %v2950, 1.5707964
    %v2955 = vadd.f32 %v2951, 1.5707964
    %v2956 = vadd.f32 %v2952, 1.5707964
    %v2957 = vadd.f32 %v2953, 1.5707964
    %v2958 = vmax.f32 %v2954, -1.5707953
    %v2959 = vmax.f32 %v2955, -1.5707953
    %v2960 = vmax.f32 %v2956, -1.5707953
    %v2961 = vmax.f32 %v2957, -1.5707953
    %v2962 = vmin.f32 %v2958, 1.5707953
    %v2963 = vmin.f32 %v2959, 1.5707953
    %v2964 = vmin.f32 %v2960, 1.5707953
    %v2965 = vmin.f32 %v2961, 1.5707953
    %v2966 = vmul.f32 %v2962, 0.5
    %v2967 = vmul.f32 %v2963, 0.5
    %v2968 = vmul.f32 %v2964, 0.5
    %v2969 = vmul.f32 %v2965, 0.5
    %v2970 = vadd.f32 %v2966, 0.7853982
    %v2971 = vadd.f32 %v2967, 0.7853982
    %v2972 = vadd.f32 %v2968, 0.7853982
    %v2973 = vadd.f32 %v2969, 0.7853982
    %v2974 = vand.u32 2147483647, %v2970
    %vm2975 = vcmp.le.f32.partialorder %v2974, 0.7853982
    %vm2976 = vcmp.lt.s32.totalorder %v2970, 0
    %v2977 = vand.u32 %v2970, 2139095040
    %v2978 = vshrl.u32 %v2977, 23
    %v2979 = vsub.s32 %v2978, 127
    %v2980 = vand.u32 2147483647, %v2970
    %v2981 = vand.u32 %v2980, 8388607
    %v2982 = vor.u32 %v2981, 8388608
    %v2983 = vsub.s32 0, %v2982
    %v2984 = vadd.s32 %v2979, 1
    %vm2985 = vcmp.gt.s32.totalorder %v2984, 0
    %v2986 = vsel %vm2985, %v2984, 0
    %v2987 = vshrl.u32 %v2986, 5
    %v2988 = vand.u32 %v2986, 31
    %v2989 = vsub.s32 32, %v2988
    %v2990 = vshrl.u32 683565275, %v2989
    %v2991 = vshll.u32 683565275, %v2988
    %v2992 = vshrl.u32 2475754826, %v2989
    %v2993 = vor.u32 %v2991, %v2992
    %v2994 = vshll.u32 2475754826, %v2988
    %v2995 = vshrl.u32 2131351028, %v2989
    %v2996 = vor.u32 %v2994, %v2995
    %v2997 = vshll.u32 2131351028, %v2988
    %v2998 = vshrl.u32 2102212464, %v2989
    %v2999 = vor.u32 %v2997, %v2998
    %v3000 = vshll.u32 2102212464, %v2988
    %v3001 = vshrl.u32 920167782, %v2989
    %v3002 = vor.u32 %v3000, %v3001
    %v3003 = vshll.u32 920167782, %v2988
    %v3004 = vshrl.u32 1326507024, %v2989
    %v3005 = vor.u32 %v3003, %v3004
    %vm3006 = vcmp.lt.s32.totalorder %v2987, 1
    %vm3007 = vcmp.lt.s32.totalorder %v2987, 2
    %vm3008 = vcmp.lt.s32.totalorder %v2987, 3
    %vm3009 = vcmp.lt.s32.totalorder %v2987, 4
    %v3010 = vsel %vm3006, %v2990, %v2993
    %v3011 = vsel %vm3009, %v2999, 2102212464
    %v3012 = vsel %vm3008, %v2996, %v3011
    %v3013 = vsel %vm3007, %v3010, %v3012
    %v3014 = vsel %vm3006, %v2993, %v2996
    %v3015 = vsel %vm3009, %v3002, 920167782
    %v3016 = vsel %vm3008, %v2999, %v3015
    %v3017 = vsel %vm3007, %v3014, %v3016
    %v3018 = vsel %vm3006, %v2996, %v2999
    %v3019 = vsel %vm3009, %v3005, 1326507024
    %v3020 = vsel %vm3008, %v3002, %v3019
    %v3021 = vsel %vm3007, %v3018, %v3020
    %v3022 = vshll.u32 %v2982, 8
    %v3023 = vand.u32 %v3022, 65535
    %v3024 = vshrl.u32 %v3022, 16
    %v3025 = vand.u32 %v3021, 65535
    %v3026 = vshrl.u32 %v3021, 16
    %v3027 = vmul.u32 %v3023, %v3025
    %v3028 = vmul.u32 %v3023, %v3026
    %v3029 = vmul.u32 %v3024, %v3025
    %v3030 = vmul.u32 %v3024, %v3026
    %v3031 = vshll.u32 %v3028, 16
    %v3032 = vshrl.u32 %v3028, 16
    %v3033 = vshll.u32 %v3029, 16
    %v3034 = vshrl.u32 %v3029, 16
    %vm3035 = vc.u32 %v3027, %v3031
    %v3036 = vsel %vm3035, 1, 0
    %v3037 = vadd.s32 %v3027, %v3031
    %v3038 = vadd.s32 %v3030, %v3036
    %vm3039 = vc.u32 %v3037, %v3033
    %v3040 = vsel %vm3039, 1, 0
    %v3041 = vadd.s32 %v3037, %v3033
    %v3042 = vadd.s32 %v3038, %v3040
    %v3043 = vadd.s32 %v3042, %v3032
    %v3044 = vadd.s32 %v3043, %v3034
    %v3045 = vand.u32 %v3022, 65535
    %v3046 = vshrl.u32 %v3022, 16
    %v3047 = vand.u32 %v3017, 65535
    %v3048 = vshrl.u32 %v3017, 16
    %v3049 = vmul.u32 %v3045, %v3047
    %v3050 = vmul.u32 %v3045, %v3048
    %v3051 = vmul.u32 %v3046, %v3047
    %v3052 = vmul.u32 %v3046, %v3048
    %v3053 = vshll.u32 %v3050, 16
    %v3054 = vshrl.u32 %v3050, 16
    %v3055 = vshll.u32 %v3051, 16
    %v3056 = vshrl.u32 %v3051, 16
    %vm3057 = vc.u32 %v3049, %v3053
    %v3058 = vsel %vm3057, 1, 0
    %v3059 = vadd.s32 %v3049, %v3053
    %v3060 = vadd.s32 %v3052, %v3058
    %vm3061 = vc.u32 %v3059, %v3055
    %v3062 = vsel %vm3061, 1, 0
    %v3063 = vadd.s32 %v3059, %v3055
    %v3064 = vadd.s32 %v3060, %v3062
    %v3065 = vadd.s32 %v3064, %v3054
    %v3066 = vadd.s32 %v3065, %v3056
    %v3067 = vmul.u32 %v3022, %v3013
    %v3068 = vadd.s32 %v3044, %v3063
    %vm3069 = vc.u32 %v3044, %v3063
    %v3070 = vadd.s32 %v3066, 1
    %v3071 = vsel %vm3069, %v3070, %v3066
    %v3072 = vadd.s32 %v3067, %v3071
    %v3073 = vadd.s32 %v3072, 536870912
    %v3074 = vshrl.u32 %v3073, 30
    %v3075 = vshll.u32 %v3074, 30
    %v3076 = vsub.s32 %v3072, %v3075
    %vm3077 = vcmp.lt.s32.totalorder %v3076, 0
    %v3078 = vsub.s32 0, %v3076
    %v3079 = vsel %vm3077, %v3078, %v3076
    %v3080 = vclz %v3079
    %v3081 = vsub.s32 %v3080, 2
    %vm3082 = vcmp.gt.s32.totalorder 0, %v3081
    %v3083 = vsel %vm3082, 0, %v3081
    %v3084 = vsub.s32 32, %v3083
    %v3085 = vshll.u32 %v3076, %v3083
    %v3086 = vshrl.u32 %v3068, %v3084
    %v3087 = vor.u32 %v3085, %v3086
    %v3088 = vsub.s32 4294967266, %v3083
    %v3089 = vadd.s32 %v3088, 127
    %v3090 = vshll.u32 %v3089, 23
    %v3091 = vor.u32 4788187, %v3090
    %v3092 = vand.u32 2147483647, %v3091
    %v3094 = vcvt.s32.f32 %v3087
    %v3095 = vmul.f32 %v3094, %v3092
    %v3096 = vxor.u32 %v3095, 2147483648
    %v3097 = vsel %vm2976, %v3096, %v3095
    %v3098 = vsub.s32 4, %v3074
    %v3099 = vsel %vm2976, %v3098, %v3074
    %v3100 = vsel %vm2975, %v2970, %v3097
    %v3101 = vsel %vm2975, 0, %v3099
    %v3102 = vmul.f32 %v3100, %v3100
    %v3103 = vmul.f32 %v3102, -0.001358992
    %v3104 = vadd.f32 %v3103, 0.041655596
    %v3105 = vmul.f32 %v3102, %v3104
    %v3106 = vadd.f32 %v3105, -0.4999988
    %v3107 = vmul.f32 %v3102, %v3106
    %v3108 = vadd.f32 1.0, %v3107
    %v3109 = vmul.f32 %v3100, %v3100
    %v3110 = vmul.f32 %v3109, -0.00019511016
    %v3111 = vadd.f32 %v3110, 0.008332121
    %v3112 = vmul.f32 %v3109, %v3111
    %v3113 = vadd.f32 %v3112, -0.16666654
    %v3114 = vmul.f32 %v3109, %v3113
    %v3115 = vadd.f32 %v3114, 1.0
    %v3116 = vmul.f32 %v3115, %v3100
    %vm3117 = vweird.f32 %v2970
    %v3118 = vadd.s32 %v3101, 3
    %v3119 = vand.u32 %v3118, 3
    %vm3120 = vcmp.lt.s32.totalorder %v3119, 2
    %vm3121 = vcmp.eq.s32.totalorder %v3119, 0
    %v3122 = vxor.u32 %v3116, 2147483648
    %v3123 = vsel %vm3121, %v3108, %v3122
    %vm3124 = vcmp.eq.s32.totalorder %v3119, 2
    %v3125 = vxor.u32 %v3108, 2147483648
    %v3126 = vsel %vm3124, %v3125, %v3116
    %v3127 = vsel %vm3120, %v3123, %v3126
    %v3128 = vsel %vm3117, nan, %v3127
    %v3129 = vand.u32 2147483647, %v2971
    %vm3130 = vcmp.le.f32.partialorder %v3129, 0.7853982
    %vm3131 = vcmp.lt.s32.totalorder %v2971, 0
    %v3132 = vand.u32 %v2971, 2139095040
    %v3133 = vshrl.u32 %v3132, 23
    %v3134 = vsub.s32 %v3133, 127
    %v3135 = vand.u32 2147483647, %v2971
    %v3136 = vand.u32 %v3135, 8388607
    %v3137 = vor.u32 %v3136, 8388608
    %v3138 = vsub.s32 0, %v3137
    %v3139 = vadd.s32 %v3134, 1
    %vm3140 = vcmp.gt.s32.totalorder %v3139, 0
    %v3141 = vsel %vm3140, %v3139, 0
    %v3142 = vshrl.u32 %v3141, 5
    %v3143 = vand.u32 %v3141, 31
    %v3144 = vsub.s32 32, %v3143
    %v3145 = vshrl.u32 683565275, %v3144
    %v3146 = vshll.u32 683565275, %v3143
    %v3147 = vshrl.u32 2475754826, %v3144
    %v3148 = vor.u32 %v3146, %v3147
    %v3149 = vshll.u32 2475754826, %v3143
    %v3150 = vshrl.u32 2131351028, %v3144
    %v3151 = vor.u32 %v3149, %v3150
    %v3152 = vshll.u32 2131351028, %v3143
    %v3153 = vshrl.u32 2102212464, %v3144
    %v3154 = vor.u32 %v3152, %v3153
    %v3155 = vshll.u32 2102212464, %v3143
    %v3156 = vshrl.u32 920167782, %v3144
    %v3157 = vor.u32 %v3155, %v3156
    %v3158 = vshll.u32 920167782, %v3143
    %v3159 = vshrl.u32 1326507024, %v3144
    %v3160 = vor.u32 %v3158, %v3159
    %vm3161 = vcmp.lt.s32.totalorder %v3142, 1
    %vm3162 = vcmp.lt.s32.totalorder %v3142, 2
    %vm3163 = vcmp.lt.s32.totalorder %v3142, 3
    %vm3164 = vcmp.lt.s32.totalorder %v3142, 4
    %v3165 = vsel %vm3161, %v3145, %v3148
    %v3166 = vsel %vm3164, %v3154, 2102212464
    %v3167 = vsel %vm3163, %v3151, %v3166
    %v3168 = vsel %vm3162, %v3165, %v3167
    %v3169 = vsel %vm3161, %v3148, %v3151
    %v3170 = vsel %vm3164, %v3157, 920167782
    %v3171 = vsel %vm3163, %v3154, %v3170
    %v3172 = vsel %vm3162, %v3169, %v3171
    %v3173 = vsel %vm3161, %v3151, %v3154
    %v3174 = vsel %vm3164, %v3160, 1326507024
    %v3175 = vsel %vm3163, %v3157, %v3174
    %v3176 = vsel %vm3162, %v3173, %v3175
    %v3177 = vshll.u32 %v3137, 8
    %v3178 = vand.u32 %v3177, 65535
    %v3179 = vshrl.u32 %v3177, 16
    %v3180 = vand.u32 %v3176, 65535
    %v3181 = vshrl.u32 %v3176, 16
    %v3182 = vmul.u32 %v3178, %v3180
    %v3183 = vmul.u32 %v3178, %v3181
    %v3184 = vmul.u32 %v3179, %v3180
    %v3185 = vmul.u32 %v3179, %v3181
    %v3186 = vshll.u32 %v3183, 16
    %v3187 = vshrl.u32 %v3183, 16
    %v3188 = vshll.u32 %v3184, 16
    %v3189 = vshrl.u32 %v3184, 16
    %vm3190 = vc.u32 %v3182, %v3186
    %v3191 = vsel %vm3190, 1, 0
    %v3192 = vadd.s32 %v3182, %v3186
    %v3193 = vadd.s32 %v3185, %v3191
    %vm3194 = vc.u32 %v3192, %v3188
    %v3195 = vsel %vm3194, 1, 0
    %v3196 = vadd.s32 %v3192, %v3188
    %v3197 = vadd.s32 %v3193, %v3195
    %v3198 = vadd.s32 %v3197, %v3187
    %v3199 = vadd.s32 %v3198, %v3189
    %v3200 = vand.u32 %v3177, 65535
    %v3201 = vshrl.u32 %v3177, 16
    %v3202 = vand.u32 %v3172, 65535
    %v3203 = vshrl.u32 %v3172, 16
    %v3204 = vmul.u32 %v3200, %v3202
    %v3205 = vmul.u32 %v3200, %v3203
    %v3206 = vmul.u32 %v3201, %v3202
    %v3207 = vmul.u32 %v3201, %v3203
    %v3208 = vshll.u32 %v3205, 16
    %v3209 = vshrl.u32 %v3205, 16
    %v3210 = vshll.u32 %v3206, 16
    %v3211 = vshrl.u32 %v3206, 16
    %vm3212 = vc.u32 %v3204, %v3208
    %v3213 = vsel %vm3212, 1, 0
    %v3214 = vadd.s32 %v3204, %v3208
    %v3215 = vadd.s32 %v3207, %v3213
    %vm3216 = vc.u32 %v3214, %v3210
    %v3217 = vsel %vm3216, 1, 0
    %v3218 = vadd.s32 %v3214, %v3210
    %v3219 = vadd.s32 %v3215, %v3217
    %v3220 = vadd.s32 %v3219, %v3209
    %v3221 = vadd.s32 %v3220, %v3211
    %v3222 = vmul.u32 %v3177, %v3168
    %v3223 = vadd.s32 %v3199, %v3218
    %vm3224 = vc.u32 %v3199, %v3218
    %v3225 = vadd.s32 %v3221, 1
    %v3226 = vsel %vm3224, %v3225, %v3221
    %v3227 = vadd.s32 %v3222, %v3226
    %v3228 = vadd.s32 %v3227, 536870912
    %v3229 = vshrl.u32 %v3228, 30
    %v3230 = vshll.u32 %v3229, 30
    %v3231 = vsub.s32 %v3227, %v3230
    %vm3232 = vcmp.lt.s32.totalorder %v3231, 0
    %v3233 = vsub.s32 0, %v3231
    %v3234 = vsel %vm3232, %v3233, %v3231
    %v3235 = vclz %v3234
    %v3236 = vsub.s32 %v3235, 2
    %vm3237 = vcmp.gt.s32.totalorder 0, %v3236
    %v3238 = vsel %vm3237, 0, %v3236
    %v3239 = vsub.s32 32, %v3238
    %v3240 = vshll.u32 %v3231, %v3238
    %v3241 = vshrl.u32 %v3223, %v3239
    %v3242 = vor.u32 %v3240, %v3241
    %v3243 = vsub.s32 4294967266, %v3238
    %v3244 = vadd.s32 %v3243, 127
    %v3245 = vshll.u32 %v3244, 23
    %v3246 = vor.u32 4788187, %v3245
    %v3247 = vand.u32 2147483647, %v3246
    %v3249 = vcvt.s32.f32 %v3242
    %v3250 = vmul.f32 %v3249, %v3247
    %v3251 = vxor.u32 %v3250, 2147483648
    %v3252 = vsel %vm3131, %v3251, %v3250
    %v3253 = vsub.s32 4, %v3229
    %v3254 = vsel %vm3131, %v3253, %v3229
    %v3255 = vsel %vm3130, %v2971, %v3252
    %v3256 = vsel %vm3130, 0, %v3254
    %v3257 = vmul.f32 %v3255, %v3255
    %v3258 = vmul.f32 %v3257, -0.001358992
    %v3259 = vadd.f32 %v3258, 0.041655596
    %v3260 = vmul.f32 %v3257, %v3259
    %v3261 = vadd.f32 %v3260, -0.4999988
    %v3262 = vmul.f32 %v3257, %v3261
    %v3263 = vadd.f32 1.0, %v3262
    %v3264 = vmul.f32 %v3255, %v3255
    %v3265 = vmul.f32 %v3264, -0.00019511016
    %v3266 = vadd.f32 %v3265, 0.008332121
    %v3267 = vmul.f32 %v3264, %v3266
    %v3268 = vadd.f32 %v3267, -0.16666654
    %v3269 = vmul.f32 %v3264, %v3268
    %v3270 = vadd.f32 %v3269, 1.0
    %v3271 = vmul.f32 %v3270, %v3255
    %vm3272 = vweird.f32 %v2971
    %v3273 = vadd.s32 %v3256, 3
    %v3274 = vand.u32 %v3273, 3
    %vm3275 = vcmp.lt.s32.totalorder %v3274, 2
    %vm3276 = vcmp.eq.s32.totalorder %v3274, 0
    %v3277 = vxor.u32 %v3271, 2147483648
    %v3278 = vsel %vm3276, %v3263, %v3277
    %vm3279 = vcmp.eq.s32.totalorder %v3274, 2
    %v3280 = vxor.u32 %v3263, 2147483648
    %v3281 = vsel %vm3279, %v3280, %v3271
    %v3282 = vsel %vm3275, %v3278, %v3281
    %v3283 = vsel %vm3272, nan, %v3282
    %v3284 = vand.u32 2147483647, %v2972
    %vm3285 = vcmp.le.f32.partialorder %v3284, 0.7853982
    %vm3286 = vcmp.lt.s32.totalorder %v2972, 0
    %v3287 = vand.u32 %v2972, 2139095040
    %v3288 = vshrl.u32 %v3287, 23
    %v3289 = vsub.s32 %v3288, 127
    %v3290 = vand.u32 2147483647, %v2972
    %v3291 = vand.u32 %v3290, 8388607
    %v3292 = vor.u32 %v3291, 8388608
    %v3293 = vsub.s32 0, %v3292
    %v3294 = vadd.s32 %v3289, 1
    %vm3295 = vcmp.gt.s32.totalorder %v3294, 0
    %v3296 = vsel %vm3295, %v3294, 0
    %v3297 = vshrl.u32 %v3296, 5
    %v3298 = vand.u32 %v3296, 31
    %v3299 = vsub.s32 32, %v3298
    %v3300 = vshrl.u32 683565275, %v3299
    %v3301 = vshll.u32 683565275, %v3298
    %v3302 = vshrl.u32 2475754826, %v3299
    %v3303 = vor.u32 %v3301, %v3302
    %v3304 = vshll.u32 2475754826, %v3298
    %v3305 = vshrl.u32 2131351028, %v3299
    %v3306 = vor.u32 %v3304, %v3305
    %v3307 = vshll.u32 2131351028, %v3298
    %v3308 = vshrl.u32 2102212464, %v3299
    %v3309 = vor.u32 %v3307, %v3308
    %v3310 = vshll.u32 2102212464, %v3298
    %v3311 = vshrl.u32 920167782, %v3299
    %v3312 = vor.u32 %v3310, %v3311
    %v3313 = vshll.u32 920167782, %v3298
    %v3314 = vshrl.u32 1326507024, %v3299
    %v3315 = vor.u32 %v3313, %v3314
    %vm3316 = vcmp.lt.s32.totalorder %v3297, 1
    %vm3317 = vcmp.lt.s32.totalorder %v3297, 2
    %vm3318 = vcmp.lt.s32.totalorder %v3297, 3
    %vm3319 = vcmp.lt.s32.totalorder %v3297, 4
    %v3320 = vsel %vm3316, %v3300, %v3303
    %v3321 = vsel %vm3319, %v3309, 2102212464
    %v3322 = vsel %vm3318, %v3306, %v3321
    %v3323 = vsel %vm3317, %v3320, %v3322
    %v3324 = vsel %vm3316, %v3303, %v3306
    %v3325 = vsel %vm3319, %v3312, 920167782
    %v3326 = vsel %vm3318, %v3309, %v3325
    %v3327 = vsel %vm3317, %v3324, %v3326
    %v3328 = vsel %vm3316, %v3306, %v3309
    %v3329 = vsel %vm3319, %v3315, 1326507024
    %v3330 = vsel %vm3318, %v3312, %v3329
    %v3331 = vsel %vm3317, %v3328, %v3330
    %v3332 = vshll.u32 %v3292, 8
    %v3333 = vand.u32 %v3332, 65535
    %v3334 = vshrl.u32 %v3332, 16
    %v3335 = vand.u32 %v3331, 65535
    %v3336 = vshrl.u32 %v3331, 16
    %v3337 = vmul.u32 %v3333, %v3335
    %v3338 = vmul.u32 %v3333, %v3336
    %v3339 = vmul.u32 %v3334, %v3335
    %v3340 = vmul.u32 %v3334, %v3336
    %v3341 = vshll.u32 %v3338, 16
    %v3342 = vshrl.u32 %v3338, 16
    %v3343 = vshll.u32 %v3339, 16
    %v3344 = vshrl.u32 %v3339, 16
    %vm3345 = vc.u32 %v3337, %v3341
    %v3346 = vsel %vm3345, 1, 0
    %v3347 = vadd.s32 %v3337, %v3341
    %v3348 = vadd.s32 %v3340, %v3346
    %vm3349 = vc.u32 %v3347, %v3343
    %v3350 = vsel %vm3349, 1, 0
    %v3351 = vadd.s32 %v3347, %v3343
    %v3352 = vadd.s32 %v3348, %v3350
    %v3353 = vadd.s32 %v3352, %v3342
    %v3354 = vadd.s32 %v3353, %v3344
    %v3355 = vand.u32 %v3332, 65535
    %v3356 = vshrl.u32 %v3332, 16
    %v3357 = vand.u32 %v3327, 65535
    %v3358 = vshrl.u32 %v3327, 16
    %v3359 = vmul.u32 %v3355, %v3357
    %v3360 = vmul.u32 %v3355, %v3358
    %v3361 = vmul.u32 %v3356, %v3357
    %v3362 = vmul.u32 %v3356, %v3358
    %v3363 = vshll.u32 %v3360, 16
    %v3364 = vshrl.u32 %v3360, 16
    %v3365 = vshll.u32 %v3361, 16
    %v3366 = vshrl.u32 %v3361, 16
    %vm3367 = vc.u32 %v3359, %v3363
    %v3368 = vsel %vm3367, 1, 0
    %v3369 = vadd.s32 %v3359, %v3363
    %v3370 = vadd.s32 %v3362, %v3368
    %vm3371 = vc.u32 %v3369, %v3365
    %v3372 = vsel %vm3371, 1, 0
    %v3373 = vadd.s32 %v3369, %v3365
    %v3374 = vadd.s32 %v3370, %v3372
    %v3375 = vadd.s32 %v3374, %v3364
    %v3376 = vadd.s32 %v3375, %v3366
    %v3377 = vmul.u32 %v3332, %v3323
    %v3378 = vadd.s32 %v3354, %v3373
    %vm3379 = vc.u32 %v3354, %v3373
    %v3380 = vadd.s32 %v3376, 1
    %v3381 = vsel %vm3379, %v3380, %v3376
    %v3382 = vadd.s32 %v3377, %v3381
    %v3383 = vadd.s32 %v3382, 536870912
    %v3384 = vshrl.u32 %v3383, 30
    %v3385 = vshll.u32 %v3384, 30
    %v3386 = vsub.s32 %v3382, %v3385
    %vm3387 = vcmp.lt.s32.totalorder %v3386, 0
    %v3388 = vsub.s32 0, %v3386
    %v3389 = vsel %vm3387, %v3388, %v3386
    %v3390 = vclz %v3389
    %v3391 = vsub.s32 %v3390, 2
    %vm3392 = vcmp.gt.s32.totalorder 0, %v3391
    %v3393 = vsel %vm3392, 0, %v3391
    %v3394 = vsub.s32 32, %v3393
    %v3395 = vshll.u32 %v3386, %v3393
    %v3396 = vshrl.u32 %v3378, %v3394
    %v3397 = vor.u32 %v3395, %v3396
    %v3398 = vsub.s32 4294967266, %v3393
    %v3399 = vadd.s32 %v3398, 127
    %v3400 = vshll.u32 %v3399, 23
    %v3401 = vor.u32 4788187, %v3400
    %v3402 = vand.u32 2147483647, %v3401
    %v3404 = vcvt.s32.f32 %v3397
    %v3405 = vmul.f32 %v3404, %v3402
    %v3406 = vxor.u32 %v3405, 2147483648
    %v3407 = vsel %vm3286, %v3406, %v3405
    %v3408 = vsub.s32 4, %v3384
    %v3409 = vsel %vm3286, %v3408, %v3384
    %v3410 = vsel %vm3285, %v2972, %v3407
    %v3411 = vsel %vm3285, 0, %v3409
    %v3412 = vmul.f32 %v3410, %v3410
    %v3413 = vmul.f32 %v3412, -0.001358992
    %v3414 = vadd.f32 %v3413, 0.041655596
    %v3415 = vmul.f32 %v3412, %v3414
    %v3416 = vadd.f32 %v3415, -0.4999988
    %v3417 = vmul.f32 %v3412, %v3416
    %v3418 = vadd.f32 1.0, %v3417
    %v3419 = vmul.f32 %v3410, %v3410
    %v3420 = vmul.f32 %v3419, -0.00019511016
    %v3421 = vadd.f32 %v3420, 0.008332121
    %v3422 = vmul.f32 %v3419, %v3421
    %v3423 = vadd.f32 %v3422, -0.16666654
    %v3424 = vmul.f32 %v3419, %v3423
    %v3425 = vadd.f32 %v3424, 1.0
    %v3426 = vmul.f32 %v3425, %v3410
    %vm3427 = vweird.f32 %v2972
    %v3428 = vadd.s32 %v3411, 3
    %v3429 = vand.u32 %v3428, 3
    %vm3430 = vcmp.lt.s32.totalorder %v3429, 2
    %vm3431 = vcmp.eq.s32.totalorder %v3429, 0
    %v3432 = vxor.u32 %v3426, 2147483648
    %v3433 = vsel %vm3431, %v3418, %v3432
    %vm3434 = vcmp.eq.s32.totalorder %v3429, 2
    %v3435 = vxor.u32 %v3418, 2147483648
    %v3436 = vsel %vm3434, %v3435, %v3426
    %v3437 = vsel %vm3430, %v3433, %v3436
    %v3438 = vsel %vm3427, nan, %v3437
    %v3439 = vand.u32 2147483647, %v2973
    %vm3440 = vcmp.le.f32.partialorder %v3439, 0.7853982
    %vm3441 = vcmp.lt.s32.totalorder %v2973, 0
    %v3442 = vand.u32 %v2973, 2139095040
    %v3443 = vshrl.u32 %v3442, 23
    %v3444 = vsub.s32 %v3443, 127
    %v3445 = vand.u32 2147483647, %v2973
    %v3446 = vand.u32 %v3445, 8388607
    %v3447 = vor.u32 %v3446, 8388608
    %v3448 = vsub.s32 0, %v3447
    %v3449 = vadd.s32 %v3444, 1
    %vm3450 = vcmp.gt.s32.totalorder %v3449, 0
    %v3451 = vsel %vm3450, %v3449, 0
    %v3452 = vshrl.u32 %v3451, 5
    %v3453 = vand.u32 %v3451, 31
    %v3454 = vsub.s32 32, %v3453
    %v3455 = vshrl.u32 683565275, %v3454
    %v3456 = vshll.u32 683565275, %v3453
    %v3457 = vshrl.u32 2475754826, %v3454
    %v3458 = vor.u32 %v3456, %v3457
    %v3459 = vshll.u32 2475754826, %v3453
    %v3460 = vshrl.u32 2131351028, %v3454
    %v3461 = vor.u32 %v3459, %v3460
    %v3462 = vshll.u32 2131351028, %v3453
    %v3463 = vshrl.u32 2102212464, %v3454
    %v3464 = vor.u32 %v3462, %v3463
    %v3465 = vshll.u32 2102212464, %v3453
    %v3466 = vshrl.u32 920167782, %v3454
    %v3467 = vor.u32 %v3465, %v3466
    %v3468 = vshll.u32 920167782, %v3453
    %v3469 = vshrl.u32 1326507024, %v3454
    %v3470 = vor.u32 %v3468, %v3469
    %vm3471 = vcmp.lt.s32.totalorder %v3452, 1
    %vm3472 = vcmp.lt.s32.totalorder %v3452, 2
    %vm3473 = vcmp.lt.s32.totalorder %v3452, 3
    %vm3474 = vcmp.lt.s32.totalorder %v3452, 4
    %v3475 = vsel %vm3471, %v3455, %v3458
    %v3476 = vsel %vm3474, %v3464, 2102212464
    %v3477 = vsel %vm3473, %v3461, %v3476
    %v3478 = vsel %vm3472, %v3475, %v3477
    %v3479 = vsel %vm3471, %v3458, %v3461
    %v3480 = vsel %vm3474, %v3467, 920167782
    %v3481 = vsel %vm3473, %v3464, %v3480
    %v3482 = vsel %vm3472, %v3479, %v3481
    %v3483 = vsel %vm3471, %v3461, %v3464
    %v3484 = vsel %vm3474, %v3470, 1326507024
    %v3485 = vsel %vm3473, %v3467, %v3484
    %v3486 = vsel %vm3472, %v3483, %v3485
    %v3487 = vshll.u32 %v3447, 8
    %v3488 = vand.u32 %v3487, 65535
    %v3489 = vshrl.u32 %v3487, 16
    %v3490 = vand.u32 %v3486, 65535
    %v3491 = vshrl.u32 %v3486, 16
    %v3492 = vmul.u32 %v3488, %v3490
    %v3493 = vmul.u32 %v3488, %v3491
    %v3494 = vmul.u32 %v3489, %v3490
    %v3495 = vmul.u32 %v3489, %v3491
    %v3496 = vshll.u32 %v3493, 16
    %v3497 = vshrl.u32 %v3493, 16
    %v3498 = vshll.u32 %v3494, 16
    %v3499 = vshrl.u32 %v3494, 16
    %vm3500 = vc.u32 %v3492, %v3496
    %v3501 = vsel %vm3500, 1, 0
    %v3502 = vadd.s32 %v3492, %v3496
    %v3503 = vadd.s32 %v3495, %v3501
    %vm3504 = vc.u32 %v3502, %v3498
    %v3505 = vsel %vm3504, 1, 0
    %v3506 = vadd.s32 %v3502, %v3498
    %v3507 = vadd.s32 %v3503, %v3505
    %v3508 = vadd.s32 %v3507, %v3497
    %v3509 = vadd.s32 %v3508, %v3499
    %v3510 = vand.u32 %v3487, 65535
    %v3511 = vshrl.u32 %v3487, 16
    %v3512 = vand.u32 %v3482, 65535
    %v3513 = vshrl.u32 %v3482, 16
    %v3514 = vmul.u32 %v3510, %v3512
    %v3515 = vmul.u32 %v3510, %v3513
    %v3516 = vmul.u32 %v3511, %v3512
    %v3517 = vmul.u32 %v3511, %v3513
    %v3518 = vshll.u32 %v3515, 16
    %v3519 = vshrl.u32 %v3515, 16
    %v3520 = vshll.u32 %v3516, 16
    %v3521 = vshrl.u32 %v3516, 16
    %vm3522 = vc.u32 %v3514, %v3518
    %v3523 = vsel %vm3522, 1, 0
    %v3524 = vadd.s32 %v3514, %v3518
    %v3525 = vadd.s32 %v3517, %v3523
    %vm3526 = vc.u32 %v3524, %v3520
    %v3527 = vsel %vm3526, 1, 0
    %v3528 = vadd.s32 %v3524, %v3520
    %v3529 = vadd.s32 %v3525, %v3527
    %v3530 = vadd.s32 %v3529, %v3519
    %v3531 = vadd.s32 %v3530, %v3521
    %v3532 = vmul.u32 %v3487, %v3478
    %v3533 = vadd.s32 %v3509, %v3528
    %vm3534 = vc.u32 %v3509, %v3528
    %v3535 = vadd.s32 %v3531, 1
    %v3536 = vsel %vm3534, %v3535, %v3531
    %v3537 = vadd.s32 %v3532, %v3536
    %v3538 = vadd.s32 %v3537, 536870912
    %v3539 = vshrl.u32 %v3538, 30
    %v3540 = vshll.u32 %v3539, 30
    %v3541 = vsub.s32 %v3537, %v3540
    %vm3542 = vcmp.lt.s32.totalorder %v3541, 0
    %v3543 = vsub.s32 0, %v3541
    %v3544 = vsel %vm3542, %v3543, %v3541
    %v3545 = vclz %v3544
    %v3546 = vsub.s32 %v3545, 2
    %vm3547 = vcmp.gt.s32.totalorder 0, %v3546
    %v3548 = vsel %vm3547, 0, %v3546
    %v3549 = vsub.s32 32, %v3548
    %v3550 = vshll.u32 %v3541, %v3548
    %v3551 = vshrl.u32 %v3533, %v3549
    %v3552 = vor.u32 %v3550, %v3551
    %v3553 = vsub.s32 4294967266, %v3548
    %v3554 = vadd.s32 %v3553, 127
    %v3555 = vshll.u32 %v3554, 23
    %v3556 = vor.u32 4788187, %v3555
    %v3557 = vand.u32 2147483647, %v3556
    %v3559 = vcvt.s32.f32 %v3552
    %v3560 = vmul.f32 %v3559, %v3557
    %v3561 = vxor.u32 %v3560, 2147483648
    %v3562 = vsel %vm3441, %v3561, %v3560
    %v3563 = vsub.s32 4, %v3539
    %v3564 = vsel %vm3441, %v3563, %v3539
    %v3565 = vsel %vm3440, %v2973, %v3562
    %v3566 = vsel %vm3440, 0, %v3564
    %v3567 = vmul.f32 %v3565, %v3565
    %v3568 = vmul.f32 %v3567, -0.001358992
    %v3569 = vadd.f32 %v3568, 0.041655596
    %v3570 = vmul.f32 %v3567, %v3569
    %v3571 = vadd.f32 %v3570, -0.4999988
    %v3572 = vmul.f32 %v3567, %v3571
    %v3573 = vadd.f32 1.0, %v3572
    %v3574 = vmul.f32 %v3565, %v3565
    %v3575 = vmul.f32 %v3574, -0.00019511016
    %v3576 = vadd.f32 %v3575, 0.008332121
    %v3577 = vmul.f32 %v3574, %v3576
    %v3578 = vadd.f32 %v3577, -0.16666654
    %v3579 = vmul.f32 %v3574, %v3578
    %v3580 = vadd.f32 %v3579, 1.0
    %v3581 = vmul.f32 %v3580, %v3565
    %vm3582 = vweird.f32 %v2973
    %v3583 = vadd.s32 %v3566, 3
    %v3584 = vand.u32 %v3583, 3
    %vm3585 = vcmp.lt.s32.totalorder %v3584, 2
    %vm3586 = vcmp.eq.s32.totalorder %v3584, 0
    %v3587 = vxor.u32 %v3581, 2147483648
    %v3588 = vsel %vm3586, %v3573, %v3587
    %vm3589 = vcmp.eq.s32.totalorder %v3584, 2
    %v3590 = vxor.u32 %v3573, 2147483648
    %v3591 = vsel %vm3589, %v3590, %v3581
    %v3592 = vsel %vm3585, %v3588, %v3591
    %v3593 = vsel %vm3582, nan, %v3592
    %v3594 = vand.u32 2147483647, %v2970
    %vm3595 = vcmp.le.f32.partialorder %v3594, 0.7853982
    %vm3596 = vcmp.lt.s32.totalorder %v2970, 0
    %v3597 = vand.u32 %v2970, 2139095040
    %v3598 = vshrl.u32 %v3597, 23
    %v3599 = vsub.s32 %v3598, 127
    %v3600 = vand.u32 2147483647, %v2970
    %v3601 = vand.u32 %v3600, 8388607
    %v3602 = vor.u32 %v3601, 8388608
    %v3603 = vsub.s32 0, %v3602
    %v3604 = vadd.s32 %v3599, 1
    %vm3605 = vcmp.gt.s32.totalorder %v3604, 0
    %v3606 = vsel %vm3605, %v3604, 0
    %v3607 = vshrl.u32 %v3606, 5
    %v3608 = vand.u32 %v3606, 31
    %v3609 = vsub.s32 32, %v3608
    %v3610 = vshrl.u32 683565275, %v3609
    %v3611 = vshll.u32 683565275, %v3608
    %v3612 = vshrl.u32 2475754826, %v3609
    %v3613 = vor.u32 %v3611, %v3612
    %v3614 = vshll.u32 2475754826, %v3608
    %v3615 = vshrl.u32 2131351028, %v3609
    %v3616 = vor.u32 %v3614, %v3615
    %v3617 = vshll.u32 2131351028, %v3608
    %v3618 = vshrl.u32 2102212464, %v3609
    %v3619 = vor.u32 %v3617, %v3618
    %v3620 = vshll.u32 2102212464, %v3608
    %v3621 = vshrl.u32 920167782, %v3609
    %v3622 = vor.u32 %v3620, %v3621
    %v3623 = vshll.u32 920167782, %v3608
    %v3624 = vshrl.u32 1326507024, %v3609
    %v3625 = vor.u32 %v3623, %v3624
    %vm3626 = vcmp.lt.s32.totalorder %v3607, 1
    %vm3627 = vcmp.lt.s32.totalorder %v3607, 2
    %vm3628 = vcmp.lt.s32.totalorder %v3607, 3
    %vm3629 = vcmp.lt.s32.totalorder %v3607, 4
    %v3630 = vsel %vm3626, %v3610, %v3613
    %v3631 = vsel %vm3629, %v3619, 2102212464
    %v3632 = vsel %vm3628, %v3616, %v3631
    %v3633 = vsel %vm3627, %v3630, %v3632
    %v3634 = vsel %vm3626, %v3613, %v3616
    %v3635 = vsel %vm3629, %v3622, 920167782
    %v3636 = vsel %vm3628, %v3619, %v3635
    %v3637 = vsel %vm3627, %v3634, %v3636
    %v3638 = vsel %vm3626, %v3616, %v3619
    %v3639 = vsel %vm3629, %v3625, 1326507024
    %v3640 = vsel %vm3628, %v3622, %v3639
    %v3641 = vsel %vm3627, %v3638, %v3640
    %v3642 = vshll.u32 %v3602, 8
    %v3643 = vand.u32 %v3642, 65535
    %v3644 = vshrl.u32 %v3642, 16
    %v3645 = vand.u32 %v3641, 65535
    %v3646 = vshrl.u32 %v3641, 16
    %v3647 = vmul.u32 %v3643, %v3645
    %v3648 = vmul.u32 %v3643, %v3646
    %v3649 = vmul.u32 %v3644, %v3645
    %v3650 = vmul.u32 %v3644, %v3646
    %v3651 = vshll.u32 %v3648, 16
    %v3652 = vshrl.u32 %v3648, 16
    %v3653 = vshll.u32 %v3649, 16
    %v3654 = vshrl.u32 %v3649, 16
    %vm3655 = vc.u32 %v3647, %v3651
    %v3656 = vsel %vm3655, 1, 0
    %v3657 = vadd.s32 %v3647, %v3651
    %v3658 = vadd.s32 %v3650, %v3656
    %vm3659 = vc.u32 %v3657, %v3653
    %v3660 = vsel %vm3659, 1, 0
    %v3661 = vadd.s32 %v3657, %v3653
    %v3662 = vadd.s32 %v3658, %v3660
    %v3663 = vadd.s32 %v3662, %v3652
    %v3664 = vadd.s32 %v3663, %v3654
    %v3665 = vand.u32 %v3642, 65535
    %v3666 = vshrl.u32 %v3642, 16
    %v3667 = vand.u32 %v3637, 65535
    %v3668 = vshrl.u32 %v3637, 16
    %v3669 = vmul.u32 %v3665, %v3667
    %v3670 = vmul.u32 %v3665, %v3668
    %v3671 = vmul.u32 %v3666, %v3667
    %v3672 = vmul.u32 %v3666, %v3668
    %v3673 = vshll.u32 %v3670, 16
    %v3674 = vshrl.u32 %v3670, 16
    %v3675 = vshll.u32 %v3671, 16
    %v3676 = vshrl.u32 %v3671, 16
    %vm3677 = vc.u32 %v3669, %v3673
    %v3678 = vsel %vm3677, 1, 0
    %v3679 = vadd.s32 %v3669, %v3673
    %v3680 = vadd.s32 %v3672, %v3678
    %vm3681 = vc.u32 %v3679, %v3675
    %v3682 = vsel %vm3681, 1, 0
    %v3683 = vadd.s32 %v3679, %v3675
    %v3684 = vadd.s32 %v3680, %v3682
    %v3685 = vadd.s32 %v3684, %v3674
    %v3686 = vadd.s32 %v3685, %v3676
    %v3687 = vmul.u32 %v3642, %v3633
    %v3688 = vadd.s32 %v3664, %v3683
    %vm3689 = vc.u32 %v3664, %v3683
    %v3690 = vadd.s32 %v3686, 1
    %v3691 = vsel %vm3689, %v3690, %v3686
    %v3692 = vadd.s32 %v3687, %v3691
    %v3693 = vadd.s32 %v3692, 536870912
    %v3694 = vshrl.u32 %v3693, 30
    %v3695 = vshll.u32 %v3694, 30
    %v3696 = vsub.s32 %v3692, %v3695
    %vm3697 = vcmp.lt.s32.totalorder %v3696, 0
    %v3698 = vsub.s32 0, %v3696
    %v3699 = vsel %vm3697, %v3698, %v3696
    %v3700 = vclz %v3699
    %v3701 = vsub.s32 %v3700, 2
    %vm3702 = vcmp.gt.s32.totalorder 0, %v3701
    %v3703 = vsel %vm3702, 0, %v3701
    %v3704 = vsub.s32 32, %v3703
    %v3705 = vshll.u32 %v3696, %v3703
    %v3706 = vshrl.u32 %v3688, %v3704
    %v3707 = vor.u32 %v3705, %v3706
    %v3708 = vsub.s32 4294967266, %v3703
    %v3709 = vadd.s32 %v3708, 127
    %v3710 = vshll.u32 %v3709, 23
    %v3711 = vor.u32 4788187, %v3710
    %v3712 = vand.u32 2147483647, %v3711
    %v3714 = vcvt.s32.f32 %v3707
    %v3715 = vmul.f32 %v3714, %v3712
    %v3716 = vxor.u32 %v3715, 2147483648
    %v3717 = vsel %vm3596, %v3716, %v3715
    %v3718 = vsub.s32 4, %v3694
    %v3719 = vsel %vm3596, %v3718, %v3694
    %v3720 = vsel %vm3595, %v2970, %v3717
    %v3721 = vsel %vm3595, 0, %v3719
    %v3722 = vmul.f32 %v3720, %v3720
    %v3723 = vmul.f32 %v3722, -0.001358992
    %v3724 = vadd.f32 %v3723, 0.041655596
    %v3725 = vmul.f32 %v3722, %v3724
    %v3726 = vadd.f32 %v3725, -0.4999988
    %v3727 = vmul.f32 %v3722, %v3726
    %v3728 = vadd.f32 1.0, %v3727
    %v3729 = vmul.f32 %v3720, %v3720
    %v3730 = vmul.f32 %v3729, -0.00019511016
    %v3731 = vadd.f32 %v3730, 0.008332121
    %v3732 = vmul.f32 %v3729, %v3731
    %v3733 = vadd.f32 %v3732, -0.16666654
    %v3734 = vmul.f32 %v3729, %v3733
    %v3735 = vadd.f32 %v3734, 1.0
    %v3736 = vmul.f32 %v3735, %v3720
    %vm3737 = vweird.f32 %v2970
    %v3738 = vand.u32 %v3721, 3
    %vm3739 = vcmp.lt.s32.totalorder %v3738, 2
    %vm3740 = vcmp.eq.s32.totalorder %v3738, 0
    %v3741 = vxor.u32 %v3736, 2147483648
    %v3742 = vsel %vm3740, %v3728, %v3741
    %vm3743 = vcmp.eq.s32.totalorder %v3738, 2
    %v3744 = vxor.u32 %v3728, 2147483648
    %v3745 = vsel %vm3743, %v3744, %v3736
    %v3746 = vsel %vm3739, %v3742, %v3745
    %v3747 = vsel %vm3737, nan, %v3746
    %v3748 = vand.u32 2147483647, %v2971
    %vm3749 = vcmp.le.f32.partialorder %v3748, 0.7853982
    %vm3750 = vcmp.lt.s32.totalorder %v2971, 0
    %v3751 = vand.u32 %v2971, 2139095040
    %v3752 = vshrl.u32 %v3751, 23
    %v3753 = vsub.s32 %v3752, 127
    %v3754 = vand.u32 2147483647, %v2971
    %v3755 = vand.u32 %v3754, 8388607
    %v3756 = vor.u32 %v3755, 8388608
    %v3757 = vsub.s32 0, %v3756
    %v3758 = vadd.s32 %v3753, 1
    %vm3759 = vcmp.gt.s32.totalorder %v3758, 0
    %v3760 = vsel %vm3759, %v3758, 0
    %v3761 = vshrl.u32 %v3760, 5
    %v3762 = vand.u32 %v3760, 31
    %v3763 = vsub.s32 32, %v3762
    %v3764 = vshrl.u32 683565275, %v3763
    %v3765 = vshll.u32 683565275, %v3762
    %v3766 = vshrl.u32 2475754826, %v3763
    %v3767 = vor.u32 %v3765, %v3766
    %v3768 = vshll.u32 2475754826, %v3762
    %v3769 = vshrl.u32 2131351028, %v3763
    %v3770 = vor.u32 %v3768, %v3769
    %v3771 = vshll.u32 2131351028, %v3762
    %v3772 = vshrl.u32 2102212464, %v3763
    %v3773 = vor.u32 %v3771, %v3772
    %v3774 = vshll.u32 2102212464, %v3762
    %v3775 = vshrl.u32 920167782, %v3763
    %v3776 = vor.u32 %v3774, %v3775
    %v3777 = vshll.u32 920167782, %v3762
    %v3778 = vshrl.u32 1326507024, %v3763
    %v3779 = vor.u32 %v3777, %v3778
    %vm3780 = vcmp.lt.s32.totalorder %v3761, 1
    %vm3781 = vcmp.lt.s32.totalorder %v3761, 2
    %vm3782 = vcmp.lt.s32.totalorder %v3761, 3
    %vm3783 = vcmp.lt.s32.totalorder %v3761, 4
    %v3784 = vsel %vm3780, %v3764, %v3767
    %v3785 = vsel %vm3783, %v3773, 2102212464
    %v3786 = vsel %vm3782, %v3770, %v3785
    %v3787 = vsel %vm3781, %v3784, %v3786
    %v3788 = vsel %vm3780, %v3767, %v3770
    %v3789 = vsel %vm3783, %v3776, 920167782
    %v3790 = vsel %vm3782, %v3773, %v3789
    %v3791 = vsel %vm3781, %v3788, %v3790
    %v3792 = vsel %vm3780, %v3770, %v3773
    %v3793 = vsel %vm3783, %v3779, 1326507024
    %v3794 = vsel %vm3782, %v3776, %v3793
    %v3795 = vsel %vm3781, %v3792, %v3794
    %v3796 = vshll.u32 %v3756, 8
    %v3797 = vand.u32 %v3796, 65535
    %v3798 = vshrl.u32 %v3796, 16
    %v3799 = vand.u32 %v3795, 65535
    %v3800 = vshrl.u32 %v3795, 16
    %v3801 = vmul.u32 %v3797, %v3799
    %v3802 = vmul.u32 %v3797, %v3800
    %v3803 = vmul.u32 %v3798, %v3799
    %v3804 = vmul.u32 %v3798, %v3800
    %v3805 = vshll.u32 %v3802, 16
    %v3806 = vshrl.u32 %v3802, 16
    %v3807 = vshll.u32 %v3803, 16
    %v3808 = vshrl.u32 %v3803, 16
    %vm3809 = vc.u32 %v3801, %v3805
    %v3810 = vsel %vm3809, 1, 0
    %v3811 = vadd.s32 %v3801, %v3805
    %v3812 = vadd.s32 %v3804, %v3810
    %vm3813 = vc.u32 %v3811, %v3807
    %v3814 = vsel %vm3813, 1, 0
    %v3815 = vadd.s32 %v3811, %v3807
    %v3816 = vadd.s32 %v3812, %v3814
    %v3817 = vadd.s32 %v3816, %v3806
    %v3818 = vadd.s32 %v3817, %v3808
    %v3819 = vand.u32 %v3796, 65535
    %v3820 = vshrl.u32 %v3796, 16
    %v3821 = vand.u32 %v3791, 65535
    %v3822 = vshrl.u32 %v3791, 16
    %v3823 = vmul.u32 %v3819, %v3821
    %v3824 = vmul.u32 %v3819, %v3822
    %v3825 = vmul.u32 %v3820, %v3821
    %v3826 = vmul.u32 %v3820, %v3822
    %v3827 = vshll.u32 %v3824, 16
    %v3828 = vshrl.u32 %v3824, 16
    %v3829 = vshll.u32 %v3825, 16
    %v3830 = vshrl.u32 %v3825, 16
    %vm3831 = vc.u32 %v3823, %v3827
    %v3832 = vsel %vm3831, 1, 0
    %v3833 = vadd.s32 %v3823, %v3827
    %v3834 = vadd.s32 %v3826, %v3832
    %vm3835 = vc.u32 %v3833, %v3829
    %v3836 = vsel %vm3835, 1, 0
    %v3837 = vadd.s32 %v3833, %v3829
    %v3838 = vadd.s32 %v3834, %v3836
    %v3839 = vadd.s32 %v3838, %v3828
    %v3840 = vadd.s32 %v3839, %v3830
    %v3841 = vmul.u32 %v3796, %v3787
    %v3842 = vadd.s32 %v3818, %v3837
    %vm3843 = vc.u32 %v3818, %v3837
    %v3844 = vadd.s32 %v3840, 1
    %v3845 = vsel %vm3843, %v3844, %v3840
    %v3846 = vadd.s32 %v3841, %v3845
    %v3847 = vadd.s32 %v3846, 536870912
    %v3848 = vshrl.u32 %v3847, 30
    %v3849 = vshll.u32 %v3848, 30
    %v3850 = vsub.s32 %v3846, %v3849
    %vm3851 = vcmp.lt.s32.totalorder %v3850, 0
    %v3852 = vsub.s32 0, %v3850
    %v3853 = vsel %vm3851, %v3852, %v3850
    %v3854 = vclz %v3853
    %v3855 = vsub.s32 %v3854, 2
    %vm3856 = vcmp.gt.s32.totalorder 0, %v3855
    %v3857 = vsel %vm3856, 0, %v3855
    %v3858 = vsub.s32 32, %v3857
    %v3859 = vshll.u32 %v3850, %v3857
    %v3860 = vshrl.u32 %v3842, %v3858
    %v3861 = vor.u32 %v3859, %v3860
    %v3862 = vsub.s32 4294967266, %v3857
    %v3863 = vadd.s32 %v3862, 127
    %v3864 = vshll.u32 %v3863, 23
    %v3865 = vor.u32 4788187, %v3864
    %v3866 = vand.u32 2147483647, %v3865
    %v3868 = vcvt.s32.f32 %v3861
    %v3869 = vmul.f32 %v3868, %v3866
    %v3870 = vxor.u32 %v3869, 2147483648
    %v3871 = vsel %vm3750, %v3870, %v3869
    %v3872 = vsub.s32 4, %v3848
    %v3873 = vsel %vm3750, %v3872, %v3848
    %v3874 = vsel %vm3749, %v2971, %v3871
    %v3875 = vsel %vm3749, 0, %v3873
    %v3876 = vmul.f32 %v3874, %v3874
    %v3877 = vmul.f32 %v3876, -0.001358992
    %v3878 = vadd.f32 %v3877, 0.041655596
    %v3879 = vmul.f32 %v3876, %v3878
    %v3880 = vadd.f32 %v3879, -0.4999988
    %v3881 = vmul.f32 %v3876, %v3880
    %v3882 = vadd.f32 1.0, %v3881
    %v3883 = vmul.f32 %v3874, %v3874
    %v3884 = vmul.f32 %v3883, -0.00019511016
    %v3885 = vadd.f32 %v3884, 0.008332121
    %v3886 = vmul.f32 %v3883, %v3885
    %v3887 = vadd.f32 %v3886, -0.16666654
    %v3888 = vmul.f32 %v3883, %v3887
    %v3889 = vadd.f32 %v3888, 1.0
    %v3890 = vmul.f32 %v3889, %v3874
    %vm3891 = vweird.f32 %v2971
    %v3892 = vand.u32 %v3875, 3
    %vm3893 = vcmp.lt.s32.totalorder %v3892, 2
    %vm3894 = vcmp.eq.s32.totalorder %v3892, 0
    %v3895 = vxor.u32 %v3890, 2147483648
    %v3896 = vsel %vm3894, %v3882, %v3895
    %vm3897 = vcmp.eq.s32.totalorder %v3892, 2
    %v3898 = vxor.u32 %v3882, 2147483648
    %v3899 = vsel %vm3897, %v3898, %v3890
    %v3900 = vsel %vm3893, %v3896, %v3899
    %v3901 = vsel %vm3891, nan, %v3900
    %v3902 = vand.u32 2147483647, %v2972
    %vm3903 = vcmp.le.f32.partialorder %v3902, 0.7853982
    %vm3904 = vcmp.lt.s32.totalorder %v2972, 0
    %v3905 = vand.u32 %v2972, 2139095040
    %v3906 = vshrl.u32 %v3905, 23
    %v3907 = vsub.s32 %v3906, 127
    %v3908 = vand.u32 2147483647, %v2972
    %v3909 = vand.u32 %v3908, 8388607
    %v3910 = vor.u32 %v3909, 8388608
    %v3911 = vsub.s32 0, %v3910
    %v3912 = vadd.s32 %v3907, 1
    %vm3913 = vcmp.gt.s32.totalorder %v3912, 0
    %v3914 = vsel %vm3913, %v3912, 0
    %v3915 = vshrl.u32 %v3914, 5
    %v3916 = vand.u32 %v3914, 31
    %v3917 = vsub.s32 32, %v3916
    %v3918 = vshrl.u32 683565275, %v3917
    %v3919 = vshll.u32 683565275, %v3916
    %v3920 = vshrl.u32 2475754826, %v3917
    %v3921 = vor.u32 %v3919, %v3920
    %v3922 = vshll.u32 2475754826, %v3916
    %v3923 = vshrl.u32 2131351028, %v3917
    %v3924 = vor.u32 %v3922, %v3923
    %v3925 = vshll.u32 2131351028, %v3916
    %v3926 = vshrl.u32 2102212464, %v3917
    %v3927 = vor.u32 %v3925, %v3926
    %v3928 = vshll.u32 2102212464, %v3916
    %v3929 = vshrl.u32 920167782, %v3917
    %v3930 = vor.u32 %v3928, %v3929
    %v3931 = vshll.u32 920167782, %v3916
    %v3932 = vshrl.u32 1326507024, %v3917
    %v3933 = vor.u32 %v3931, %v3932
    %vm3934 = vcmp.lt.s32.totalorder %v3915, 1
    %vm3935 = vcmp.lt.s32.totalorder %v3915, 2
    %vm3936 = vcmp.lt.s32.totalorder %v3915, 3
    %vm3937 = vcmp.lt.s32.totalorder %v3915, 4
    %v3938 = vsel %vm3934, %v3918, %v3921
    %v3939 = vsel %vm3937, %v3927, 2102212464
    %v3940 = vsel %vm3936, %v3924, %v3939
    %v3941 = vsel %vm3935, %v3938, %v3940
    %v3942 = vsel %vm3934, %v3921, %v3924
    %v3943 = vsel %vm3937, %v3930, 920167782
    %v3944 = vsel %vm3936, %v3927, %v3943
    %v3945 = vsel %vm3935, %v3942, %v3944
    %v3946 = vsel %vm3934, %v3924, %v3927
    %v3947 = vsel %vm3937, %v3933, 1326507024
    %v3948 = vsel %vm3936, %v3930, %v3947
    %v3949 = vsel %vm3935, %v3946, %v3948
    %v3950 = vshll.u32 %v3910, 8
    %v3951 = vand.u32 %v3950, 65535
    %v3952 = vshrl.u32 %v3950, 16
    %v3953 = vand.u32 %v3949, 65535
    %v3954 = vshrl.u32 %v3949, 16
    %v3955 = vmul.u32 %v3951, %v3953
    %v3956 = vmul.u32 %v3951, %v3954
    %v3957 = vmul.u32 %v3952, %v3953
    %v3958 = vmul.u32 %v3952, %v3954
    %v3959 = vshll.u32 %v3956, 16
    %v3960 = vshrl.u32 %v3956, 16
    %v3961 = vshll.u32 %v3957, 16
    %v3962 = vshrl.u32 %v3957, 16
    %vm3963 = vc.u32 %v3955, %v3959
    %v3964 = vsel %vm3963, 1, 0
    %v3965 = vadd.s32 %v3955, %v3959
    %v3966 = vadd.s32 %v3958, %v3964
    %vm3967 = vc.u32 %v3965, %v3961
    %v3968 = vsel %vm3967, 1, 0
    %v3969 = vadd.s32 %v3965, %v3961
    %v3970 = vadd.s32 %v3966, %v3968
    %v3971 = vadd.s32 %v3970, %v3960
    %v3972 = vadd.s32 %v3971, %v3962
    %v3973 = vand.u32 %v3950, 65535
    %v3974 = vshrl.u32 %v3950, 16
    %v3975 = vand.u32 %v3945, 65535
    %v3976 = vshrl.u32 %v3945, 16
    %v3977 = vmul.u32 %v3973, %v3975
    %v3978 = vmul.u32 %v3973, %v3976
    %v3979 = vmul.u32 %v3974, %v3975
    %v3980 = vmul.u32 %v3974, %v3976
    %v3981 = vshll.u32 %v3978, 16
    %v3982 = vshrl.u32 %v3978, 16
    %v3983 = vshll.u32 %v3979, 16
    %v3984 = vshrl.u32 %v3979, 16
    %vm3985 = vc.u32 %v3977, %v3981
    %v3986 = vsel %vm3985, 1, 0
    %v3987 = vadd.s32 %v3977, %v3981
    %v3988 = vadd.s32 %v3980, %v3986
    %vm3989 = vc.u32 %v3987, %v3983
    %v3990 = vsel %vm3989, 1, 0
    %v3991 = vadd.s32 %v3987, %v3983
    %v3992 = vadd.s32 %v3988, %v3990
    %v3993 = vadd.s32 %v3992, %v3982
    %v3994 = vadd.s32 %v3993, %v3984
    %v3995 = vmul.u32 %v3950, %v3941
    %v3996 = vadd.s32 %v3972, %v3991
    %vm3997 = vc.u32 %v3972, %v3991
    %v3998 = vadd.s32 %v3994, 1
    %v3999 = vsel %vm3997, %v3998, %v3994
    %v4000 = vadd.s32 %v3995, %v3999
    %v4001 = vadd.s32 %v4000, 536870912
    %v4002 = vshrl.u32 %v4001, 30
    %v4003 = vshll.u32 %v4002, 30
    %v4004 = vsub.s32 %v4000, %v4003
    %vm4005 = vcmp.lt.s32.totalorder %v4004, 0
    %v4006 = vsub.s32 0, %v4004
    %v4007 = vsel %vm4005, %v4006, %v4004
    %v4008 = vclz %v4007
    %v4009 = vsub.s32 %v4008, 2
    %vm4010 = vcmp.gt.s32.totalorder 0, %v4009
    %v4011 = vsel %vm4010, 0, %v4009
    %v4012 = vsub.s32 32, %v4011
    %v4013 = vshll.u32 %v4004, %v4011
    %v4014 = vshrl.u32 %v3996, %v4012
    %v4015 = vor.u32 %v4013, %v4014
    %v4016 = vsub.s32 4294967266, %v4011
    %v4017 = vadd.s32 %v4016, 127
    %v4018 = vshll.u32 %v4017, 23
    %v4019 = vor.u32 4788187, %v4018
    %v4020 = vand.u32 2147483647, %v4019
    %v4022 = vcvt.s32.f32 %v4015
    %v4023 = vmul.f32 %v4022, %v4020
    %v4024 = vxor.u32 %v4023, 2147483648
    %v4025 = vsel %vm3904, %v4024, %v4023
    %v4026 = vsub.s32 4, %v4002
    %v4027 = vsel %vm3904, %v4026, %v4002
    %v4028 = vsel %vm3903, %v2972, %v4025
    %v4029 = vsel %vm3903, 0, %v4027
    %v4030 = vmul.f32 %v4028, %v4028
    %v4031 = vmul.f32 %v4030, -0.001358992
    %v4032 = vadd.f32 %v4031, 0.041655596
    %v4033 = vmul.f32 %v4030, %v4032
    %v4034 = vadd.f32 %v4033, -0.4999988
    %v4035 = vmul.f32 %v4030, %v4034
    %v4036 = vadd.f32 1.0, %v4035
    %v4037 = vmul.f32 %v4028, %v4028
    %v4038 = vmul.f32 %v4037, -0.00019511016
    %v4039 = vadd.f32 %v4038, 0.008332121
    %v4040 = vmul.f32 %v4037, %v4039
    %v4041 = vadd.f32 %v4040, -0.16666654
    %v4042 = vmul.f32 %v4037, %v4041
    %v4043 = vadd.f32 %v4042, 1.0
    %v4044 = vmul.f32 %v4043, %v4028
    %vm4045 = vweird.f32 %v2972
    %v4046 = vand.u32 %v4029, 3
    %vm4047 = vcmp.lt.s32.totalorder %v4046, 2
    %vm4048 = vcmp.eq.s32.totalorder %v4046, 0
    %v4049 = vxor.u32 %v4044, 2147483648
    %v4050 = vsel %vm4048, %v4036, %v4049
    %vm4051 = vcmp.eq.s32.totalorder %v4046, 2
    %v4052 = vxor.u32 %v4036, 2147483648
    %v4053 = vsel %vm4051, %v4052, %v4044
    %v4054 = vsel %vm4047, %v4050, %v4053
    %v4055 = vsel %vm4045, nan, %v4054
    %v4056 = vand.u32 2147483647, %v2973
    %vm4057 = vcmp.le.f32.partialorder %v4056, 0.7853982
    %vm4058 = vcmp.lt.s32.totalorder %v2973, 0
    %v4059 = vand.u32 %v2973, 2139095040
    %v4060 = vshrl.u32 %v4059, 23
    %v4061 = vsub.s32 %v4060, 127
    %v4062 = vand.u32 2147483647, %v2973
    %v4063 = vand.u32 %v4062, 8388607
    %v4064 = vor.u32 %v4063, 8388608
    %v4065 = vsub.s32 0, %v4064
    %v4066 = vadd.s32 %v4061, 1
    %vm4067 = vcmp.gt.s32.totalorder %v4066, 0
    %v4068 = vsel %vm4067, %v4066, 0
    %v4069 = vshrl.u32 %v4068, 5
    %v4070 = vand.u32 %v4068, 31
    %v4071 = vsub.s32 32, %v4070
    %v4072 = vshrl.u32 683565275, %v4071
    %v4073 = vshll.u32 683565275, %v4070
    %v4074 = vshrl.u32 2475754826, %v4071
    %v4075 = vor.u32 %v4073, %v4074
    %v4076 = vshll.u32 2475754826, %v4070
    %v4077 = vshrl.u32 2131351028, %v4071
    %v4078 = vor.u32 %v4076, %v4077
    %v4079 = vshll.u32 2131351028, %v4070
    %v4080 = vshrl.u32 2102212464, %v4071
    %v4081 = vor.u32 %v4079, %v4080
    %v4082 = vshll.u32 2102212464, %v4070
    %v4083 = vshrl.u32 920167782, %v4071
    %v4084 = vor.u32 %v4082, %v4083
    %v4085 = vshll.u32 920167782, %v4070
    %v4086 = vshrl.u32 1326507024, %v4071
    %v4087 = vor.u32 %v4085, %v4086
    %vm4088 = vcmp.lt.s32.totalorder %v4069, 1
    %vm4089 = vcmp.lt.s32.totalorder %v4069, 2
    %vm4090 = vcmp.lt.s32.totalorder %v4069, 3
    %vm4091 = vcmp.lt.s32.totalorder %v4069, 4
    %v4092 = vsel %vm4088, %v4072, %v4075
    %v4093 = vsel %vm4091, %v4081, 2102212464
    %v4094 = vsel %vm4090, %v4078, %v4093
    %v4095 = vsel %vm4089, %v4092, %v4094
    %v4096 = vsel %vm4088, %v4075, %v4078
    %v4097 = vsel %vm4091, %v4084, 920167782
    %v4098 = vsel %vm4090, %v4081, %v4097
    %v4099 = vsel %vm4089, %v4096, %v4098
    %v4100 = vsel %vm4088, %v4078, %v4081
    %v4101 = vsel %vm4091, %v4087, 1326507024
    %v4102 = vsel %vm4090, %v4084, %v4101
    %v4103 = vsel %vm4089, %v4100, %v4102
    %v4104 = vshll.u32 %v4064, 8
    %v4105 = vand.u32 %v4104, 65535
    %v4106 = vshrl.u32 %v4104, 16
    %v4107 = vand.u32 %v4103, 65535
    %v4108 = vshrl.u32 %v4103, 16
    %v4109 = vmul.u32 %v4105, %v4107
    %v4110 = vmul.u32 %v4105, %v4108
    %v4111 = vmul.u32 %v4106, %v4107
    %v4112 = vmul.u32 %v4106, %v4108
    %v4113 = vshll.u32 %v4110, 16
    %v4114 = vshrl.u32 %v4110, 16
    %v4115 = vshll.u32 %v4111, 16
    %v4116 = vshrl.u32 %v4111, 16
    %vm4117 = vc.u32 %v4109, %v4113
    %v4118 = vsel %vm4117, 1, 0
    %v4119 = vadd.s32 %v4109, %v4113
    %v4120 = vadd.s32 %v4112, %v4118
    %vm4121 = vc.u32 %v4119, %v4115
    %v4122 = vsel %vm4121, 1, 0
    %v4123 = vadd.s32 %v4119, %v4115
    %v4124 = vadd.s32 %v4120, %v4122
    %v4125 = vadd.s32 %v4124, %v4114
    %v4126 = vadd.s32 %v4125, %v4116
    %v4127 = vand.u32 %v4104, 65535
    %v4128 = vshrl.u32 %v4104, 16
    %v4129 = vand.u32 %v4099, 65535
    %v4130 = vshrl.u32 %v4099, 16
    %v4131 = vmul.u32 %v4127, %v4129
    %v4132 = vmul.u32 %v4127, %v4130
    %v4133 = vmul.u32 %v4128, %v4129
    %v4134 = vmul.u32 %v4128, %v4130
    %v4135 = vshll.u32 %v4132, 16
    %v4136 = vshrl.u32 %v4132, 16
    %v4137 = vshll.u32 %v4133, 16
    %v4138 = vshrl.u32 %v4133, 16
    %vm4139 = vc.u32 %v4131, %v4135
    %v4140 = vsel %vm4139, 1, 0
    %v4141 = vadd.s32 %v4131, %v4135
    %v4142 = vadd.s32 %v4134, %v4140
    %vm4143 = vc.u32 %v4141, %v4137
    %v4144 = vsel %vm4143, 1, 0
    %v4145 = vadd.s32 %v4141, %v4137
    %v4146 = vadd.s32 %v4142, %v4144
    %v4147 = vadd.s32 %v4146, %v4136
    %v4148 = vadd.s32 %v4147, %v4138
    %v4149 = vmul.u32 %v4104, %v4095
    %v4150 = vadd.s32 %v4126, %v4145
    %vm4151 = vc.u32 %v4126, %v4145
    %v4152 = vadd.s32 %v4148, 1
    %v4153 = vsel %vm4151, %v4152, %v4148
    %v4154 = vadd.s32 %v4149, %v4153
    %v4155 = vadd.s32 %v4154, 536870912
    %v4156 = vshrl.u32 %v4155, 30
    %v4157 = vshll.u32 %v4156, 30
    %v4158 = vsub.s32 %v4154, %v4157
    %vm4159 = vcmp.lt.s32.totalorder %v4158, 0
    %v4160 = vsub.s32 0, %v4158
    %v4161 = vsel %vm4159, %v4160, %v4158
    %v4162 = vclz %v4161
    %v4163 = vsub.s32 %v4162, 2
    %vm4164 = vcmp.gt.s32.totalorder 0, %v4163
    %v4165 = vsel %vm4164, 0, %v4163
    %v4166 = vsub.s32 32, %v4165
    %v4167 = vshll.u32 %v4158, %v4165
    %v4168 = vshrl.u32 %v4150, %v4166
    %v4169 = vor.u32 %v4167, %v4168
    %v4170 = vsub.s32 4294967266, %v4165
    %v4171 = vadd.s32 %v4170, 127
    %v4172 = vshll.u32 %v4171, 23
    %v4173 = vor.u32 4788187, %v4172
    %v4174 = vand.u32 2147483647, %v4173
    %v4176 = vcvt.s32.f32 %v4169
    %v4177 = vmul.f32 %v4176, %v4174
    %v4178 = vxor.u32 %v4177, 2147483648
    %v4179 = vsel %vm4058, %v4178, %v4177
    %v4180 = vsub.s32 4, %v4156
    %v4181 = vsel %vm4058, %v4180, %v4156
    %v4182 = vsel %vm4057, %v2973, %v4179
    %v4183 = vsel %vm4057, 0, %v4181
    %v4184 = vmul.f32 %v4182, %v4182
    %v4185 = vmul.f32 %v4184, -0.001358992
    %v4186 = vadd.f32 %v4185, 0.041655596
    %v4187 = vmul.f32 %v4184, %v4186
    %v4188 = vadd.f32 %v4187, -0.4999988
    %v4189 = vmul.f32 %v4184, %v4188
    %v4190 = vadd.f32 1.0, %v4189
    %v4191 = vmul.f32 %v4182, %v4182
    %v4192 = vmul.f32 %v4191, -0.00019511016
    %v4193 = vadd.f32 %v4192, 0.008332121
    %v4194 = vmul.f32 %v4191, %v4193
    %v4195 = vadd.f32 %v4194, -0.16666654
    %v4196 = vmul.f32 %v4191, %v4195
    %v4197 = vadd.f32 %v4196, 1.0
    %v4198 = vmul.f32 %v4197, %v4182
    %vm4199 = vweird.f32 %v2973
    %v4200 = vand.u32 %v4183, 3
    %vm4201 = vcmp.lt.s32.totalorder %v4200, 2
    %vm4202 = vcmp.eq.s32.totalorder %v4200, 0
    %v4203 = vxor.u32 %v4198, 2147483648
    %v4204 = vsel %vm4202, %v4190, %v4203
    %vm4205 = vcmp.eq.s32.totalorder %v4200, 2
    %v4206 = vxor.u32 %v4190, 2147483648
    %v4207 = vsel %vm4205, %v4206, %v4198
    %v4208 = vsel %vm4201, %v4204, %v4207
    %v4209 = vsel %vm4199, nan, %v4208
    %v4210 = vrcp.pop %v3747
    %v4211 = vrcp.pop %v3901
    %v4212 = vrcp.pop %v4055
    %v4213 = vrcp.pop %v4209
    %v4214 = vmul.f32 %v3128, %v4210
    %v4215 = vmul.f32 %v3283, %v4211
    %v4216 = vmul.f32 %v3438, %v4212
    %v4217 = vmul.f32 %v3593, %v4213
    %v4218 = vand.u32 2147483647, %v2942
    %vm4219 = vcmp.le.f32.partialorder %v4218, 0.7853982
    %vm4220 = vcmp.lt.s32.totalorder %v2942, 0
    %v4221 = vand.u32 %v2942, 2139095040
    %v4222 = vshrl.u32 %v4221, 23
    %v4223 = vsub.s32 %v4222, 127
    %v4224 = vand.u32 2147483647, %v2942
    %v4225 = vand.u32 %v4224, 8388607
    %v4226 = vor.u32 %v4225, 8388608
    %v4227 = vsub.s32 0, %v4226
    %v4228 = vadd.s32 %v4223, 1
    %vm4229 = vcmp.gt.s32.totalorder %v4228, 0
    %v4230 = vsel %vm4229, %v4228, 0
    %v4231 = vshrl.u32 %v4230, 5
    %v4232 = vand.u32 %v4230, 31
    %v4233 = vsub.s32 32, %v4232
    %v4234 = vshrl.u32 683565275, %v4233
    %v4235 = vshll.u32 683565275, %v4232
    %v4236 = vshrl.u32 2475754826, %v4233
    %v4237 = vor.u32 %v4235, %v4236
    %v4238 = vshll.u32 2475754826, %v4232
    %v4239 = vshrl.u32 2131351028, %v4233
    %v4240 = vor.u32 %v4238, %v4239
    %v4241 = vshll.u32 2131351028, %v4232
    %v4242 = vshrl.u32 2102212464, %v4233
    %v4243 = vor.u32 %v4241, %v4242
    %v4244 = vshll.u32 2102212464, %v4232
    %v4245 = vshrl.u32 920167782, %v4233
    %v4246 = vor.u32 %v4244, %v4245
    %v4247 = vshll.u32 920167782, %v4232
    %v4248 = vshrl.u32 1326507024, %v4233
    %v4249 = vor.u32 %v4247, %v4248
    %vm4250 = vcmp.lt.s32.totalorder %v4231, 1
    %vm4251 = vcmp.lt.s32.totalorder %v4231, 2
    %vm4252 = vcmp.lt.s32.totalorder %v4231, 3
    %vm4253 = vcmp.lt.s32.totalorder %v4231, 4
    %v4254 = vsel %vm4250, %v4234, %v4237
    %v4255 = vsel %vm4253, %v4243, 2102212464
    %v4256 = vsel %vm4252, %v4240, %v4255
    %v4257 = vsel %vm4251, %v4254, %v4256
    %v4258 = vsel %vm4250, %v4237, %v4240
    %v4259 = vsel %vm4253, %v4246, 920167782
    %v4260 = vsel %vm4252, %v4243, %v4259
    %v4261 = vsel %vm4251, %v4258, %v4260
    %v4262 = vsel %vm4250, %v4240, %v4243
    %v4263 = vsel %vm4253, %v4249, 1326507024
    %v4264 = vsel %vm4252, %v4246, %v4263
    %v4265 = vsel %vm4251, %v4262, %v4264
    %v4266 = vshll.u32 %v4226, 8
    %v4267 = vand.u32 %v4266, 65535
    %v4268 = vshrl.u32 %v4266, 16
    %v4269 = vand.u32 %v4265, 65535
    %v4270 = vshrl.u32 %v4265, 16
    %v4271 = vmul.u32 %v4267, %v4269
    %v4272 = vmul.u32 %v4267, %v4270
    %v4273 = vmul.u32 %v4268, %v4269
    %v4274 = vmul.u32 %v4268, %v4270
    %v4275 = vshll.u32 %v4272, 16
    %v4276 = vshrl.u32 %v4272, 16
    %v4277 = vshll.u32 %v4273, 16
    %v4278 = vshrl.u32 %v4273, 16
    %vm4279 = vc.u32 %v4271, %v4275
    %v4280 = vsel %vm4279, 1, 0
    %v4281 = vadd.s32 %v4271, %v4275
    %v4282 = vadd.s32 %v4274, %v4280
    %vm4283 = vc.u32 %v4281, %v4277
    %v4284 = vsel %vm4283, 1, 0
    %v4285 = vadd.s32 %v4281, %v4277
    %v4286 = vadd.s32 %v4282, %v4284
    %v4287 = vadd.s32 %v4286, %v4276
    %v4288 = vadd.s32 %v4287, %v4278
    %v4289 = vand.u32 %v4266, 65535
    %v4290 = vshrl.u32 %v4266, 16
    %v4291 = vand.u32 %v4261, 65535
    %v4292 = vshrl.u32 %v4261, 16
    %v4293 = vmul.u32 %v4289, %v4291
    %v4294 = vmul.u32 %v4289, %v4292
    %v4295 = vmul.u32 %v4290, %v4291
    %v4296 = vmul.u32 %v4290, %v4292
    %v4297 = vshll.u32 %v4294, 16
    %v4298 = vshrl.u32 %v4294, 16
    %v4299 = vshll.u32 %v4295, 16
    %v4300 = vshrl.u32 %v4295, 16
    %vm4301 = vc.u32 %v4293, %v4297
    %v4302 = vsel %vm4301, 1, 0
    %v4303 = vadd.s32 %v4293, %v4297
    %v4304 = vadd.s32 %v4296, %v4302
    %vm4305 = vc.u32 %v4303, %v4299
    %v4306 = vsel %vm4305, 1, 0
    %v4307 = vadd.s32 %v4303, %v4299
    %v4308 = vadd.s32 %v4304, %v4306
    %v4309 = vadd.s32 %v4308, %v4298
    %v4310 = vadd.s32 %v4309, %v4300
    %v4311 = vmul.u32 %v4266, %v4257
    %v4312 = vadd.s32 %v4288, %v4307
    %vm4313 = vc.u32 %v4288, %v4307
    %v4314 = vadd.s32 %v4310, 1
    %v4315 = vsel %vm4313, %v4314, %v4310
    %v4316 = vadd.s32 %v4311, %v4315
    %v4317 = vadd.s32 %v4316, 536870912
    %v4318 = vshrl.u32 %v4317, 30
    %v4319 = vshll.u32 %v4318, 30
    %v4320 = vsub.s32 %v4316, %v4319
    %vm4321 = vcmp.lt.s32.totalorder %v4320, 0
    %v4322 = vsub.s32 0, %v4320
    %v4323 = vsel %vm4321, %v4322, %v4320
    %v4324 = vclz %v4323
    %v4325 = vsub.s32 %v4324, 2
    %vm4326 = vcmp.gt.s32.totalorder 0, %v4325
    %v4327 = vsel %vm4326, 0, %v4325
    %v4328 = vsub.s32 32, %v4327
    %v4329 = vshll.u32 %v4320, %v4327
    %v4330 = vshrl.u32 %v4312, %v4328
    %v4331 = vor.u32 %v4329, %v4330
    %v4332 = vsub.s32 4294967266, %v4327
    %v4333 = vadd.s32 %v4332, 127
    %v4334 = vshll.u32 %v4333, 23
    %v4335 = vor.u32 4788187, %v4334
    %v4336 = vand.u32 2147483647, %v4335
    %v4338 = vcvt.s32.f32 %v4331
    %v4339 = vmul.f32 %v4338, %v4336
    %v4340 = vxor.u32 %v4339, 2147483648
    %v4341 = vsel %vm4220, %v4340, %v4339
    %v4342 = vsub.s32 4, %v4318
    %v4343 = vsel %vm4220, %v4342, %v4318
    %v4344 = vsel %vm4219, %v2942, %v4341
    %v4345 = vsel %vm4219, 0, %v4343
    %v4346 = vmul.f32 %v4344, %v4344
    %v4347 = vmul.f32 %v4346, -0.001358992
    %v4348 = vadd.f32 %v4347, 0.041655596
    %v4349 = vmul.f32 %v4346, %v4348
    %v4350 = vadd.f32 %v4349, -0.4999988
    %v4351 = vmul.f32 %v4346, %v4350
    %v4352 = vadd.f32 1.0, %v4351
    %v4353 = vmul.f32 %v4344, %v4344
    %v4354 = vmul.f32 %v4353, -0.00019511016
    %v4355 = vadd.f32 %v4354, 0.008332121
    %v4356 = vmul.f32 %v4353, %v4355
    %v4357 = vadd.f32 %v4356, -0.16666654
    %v4358 = vmul.f32 %v4353, %v4357
    %v4359 = vadd.f32 %v4358, 1.0
    %v4360 = vmul.f32 %v4359, %v4344
    %vm4361 = vweird.f32 %v2942
    %v4362 = vand.u32 %v4345, 3
    %vm4363 = vcmp.lt.s32.totalorder %v4362, 2
    %vm4364 = vcmp.eq.s32.totalorder %v4362, 0
    %v4365 = vxor.u32 %v4360, 2147483648
    %v4366 = vsel %vm4364, %v4352, %v4365
    %vm4367 = vcmp.eq.s32.totalorder %v4362, 2
    %v4368 = vxor.u32 %v4352, 2147483648
    %v4369 = vsel %vm4367, %v4368, %v4360
    %v4370 = vsel %vm4363, %v4366, %v4369
    %v4371 = vsel %vm4361, nan, %v4370
    %v4372 = vand.u32 2147483647, %v2943
    %vm4373 = vcmp.le.f32.partialorder %v4372, 0.7853982
    %vm4374 = vcmp.lt.s32.totalorder %v2943, 0
    %v4375 = vand.u32 %v2943, 2139095040
    %v4376 = vshrl.u32 %v4375, 23
    %v4377 = vsub.s32 %v4376, 127
    %v4378 = vand.u32 2147483647, %v2943
    %v4379 = vand.u32 %v4378, 8388607
    %v4380 = vor.u32 %v4379, 8388608
    %v4381 = vsub.s32 0, %v4380
    %v4382 = vadd.s32 %v4377, 1
    %vm4383 = vcmp.gt.s32.totalorder %v4382, 0
    %v4384 = vsel %vm4383, %v4382, 0
    %v4385 = vshrl.u32 %v4384, 5
    %v4386 = vand.u32 %v4384, 31
    %v4387 = vsub.s32 32, %v4386
    %v4388 = vshrl.u32 683565275, %v4387
    %v4389 = vshll.u32 683565275, %v4386
    %v4390 = vshrl.u32 2475754826, %v4387
    %v4391 = vor.u32 %v4389, %v4390
    %v4392 = vshll.u32 2475754826, %v4386
    %v4393 = vshrl.u32 2131351028, %v4387
    %v4394 = vor.u32 %v4392, %v4393
    %v4395 = vshll.u32 2131351028, %v4386
    %v4396 = vshrl.u32 2102212464, %v4387
    %v4397 = vor.u32 %v4395, %v4396
    %v4398 = vshll.u32 2102212464, %v4386
    %v4399 = vshrl.u32 920167782, %v4387
    %v4400 = vor.u32 %v4398, %v4399
    %v4401 = vshll.u32 920167782, %v4386
    %v4402 = vshrl.u32 1326507024, %v4387
    %v4403 = vor.u32 %v4401, %v4402
    %vm4404 = vcmp.lt.s32.totalorder %v4385, 1
    %vm4405 = vcmp.lt.s32.totalorder %v4385, 2
    %vm4406 = vcmp.lt.s32.totalorder %v4385, 3
    %vm4407 = vcmp.lt.s32.totalorder %v4385, 4
    %v4408 = vsel %vm4404, %v4388, %v4391
    %v4409 = vsel %vm4407, %v4397, 2102212464
    %v4410 = vsel %vm4406, %v4394, %v4409
    %v4411 = vsel %vm4405, %v4408, %v4410
    %v4412 = vsel %vm4404, %v4391, %v4394
    %v4413 = vsel %vm4407, %v4400, 920167782
    %v4414 = vsel %vm4406, %v4397, %v4413
    %v4415 = vsel %vm4405, %v4412, %v4414
    %v4416 = vsel %vm4404, %v4394, %v4397
    %v4417 = vsel %vm4407, %v4403, 1326507024
    %v4418 = vsel %vm4406, %v4400, %v4417
    %v4419 = vsel %vm4405, %v4416, %v4418
    %v4420 = vshll.u32 %v4380, 8
    %v4421 = vand.u32 %v4420, 65535
    %v4422 = vshrl.u32 %v4420, 16
    %v4423 = vand.u32 %v4419, 65535
    %v4424 = vshrl.u32 %v4419, 16
    %v4425 = vmul.u32 %v4421, %v4423
    %v4426 = vmul.u32 %v4421, %v4424
    %v4427 = vmul.u32 %v4422, %v4423
    %v4428 = vmul.u32 %v4422, %v4424
    %v4429 = vshll.u32 %v4426, 16
    %v4430 = vshrl.u32 %v4426, 16
    %v4431 = vshll.u32 %v4427, 16
    %v4432 = vshrl.u32 %v4427, 16
    %vm4433 = vc.u32 %v4425, %v4429
    %v4434 = vsel %vm4433, 1, 0
    %v4435 = vadd.s32 %v4425, %v4429
    %v4436 = vadd.s32 %v4428, %v4434
    %vm4437 = vc.u32 %v4435, %v4431
    %v4438 = vsel %vm4437, 1, 0
    %v4439 = vadd.s32 %v4435, %v4431
    %v4440 = vadd.s32 %v4436, %v4438
    %v4441 = vadd.s32 %v4440, %v4430
    %v4442 = vadd.s32 %v4441, %v4432
    %v4443 = vand.u32 %v4420, 65535
    %v4444 = vshrl.u32 %v4420, 16
    %v4445 = vand.u32 %v4415, 65535
    %v4446 = vshrl.u32 %v4415, 16
    %v4447 = vmul.u32 %v4443, %v4445
    %v4448 = vmul.u32 %v4443, %v4446
    %v4449 = vmul.u32 %v4444, %v4445
    %v4450 = vmul.u32 %v4444, %v4446
    %v4451 = vshll.u32 %v4448, 16
    %v4452 = vshrl.u32 %v4448, 16
    %v4453 = vshll.u32 %v4449, 16
    %v4454 = vshrl.u32 %v4449, 16
    %vm4455 = vc.u32 %v4447, %v4451
    %v4456 = vsel %vm4455, 1, 0
    %v4457 = vadd.s32 %v4447, %v4451
    %v4458 = vadd.s32 %v4450, %v4456
    %vm4459 = vc.u32 %v4457, %v4453
    %v4460 = vsel %vm4459, 1, 0
    %v4461 = vadd.s32 %v4457, %v4453
    %v4462 = vadd.s32 %v4458, %v4460
    %v4463 = vadd.s32 %v4462, %v4452
    %v4464 = vadd.s32 %v4463, %v4454
    %v4465 = vmul.u32 %v4420, %v4411
    %v4466 = vadd.s32 %v4442, %v4461
    %vm4467 = vc.u32 %v4442, %v4461
    %v4468 = vadd.s32 %v4464, 1
    %v4469 = vsel %vm4467, %v4468, %v4464
    %v4470 = vadd.s32 %v4465, %v4469
    %v4471 = vadd.s32 %v4470, 536870912
    %v4472 = vshrl.u32 %v4471, 30
    %v4473 = vshll.u32 %v4472, 30
    %v4474 = vsub.s32 %v4470, %v4473
    %vm4475 = vcmp.lt.s32.totalorder %v4474, 0
    %v4476 = vsub.s32 0, %v4474
    %v4477 = vsel %vm4475, %v4476, %v4474
    %v4478 = vclz %v4477
    %v4479 = vsub.s32 %v4478, 2
    %vm4480 = vcmp.gt.s32.totalorder 0, %v4479
    %v4481 = vsel %vm4480, 0, %v4479
    %v4482 = vsub.s32 32, %v4481
    %v4483 = vshll.u32 %v4474, %v4481
    %v4484 = vshrl.u32 %v4466, %v4482
    %v4485 = vor.u32 %v4483, %v4484
    %v4486 = vsub.s32 4294967266, %v4481
    %v4487 = vadd.s32 %v4486, 127
    %v4488 = vshll.u32 %v4487, 23
    %v4489 = vor.u32 4788187, %v4488
    %v4490 = vand.u32 2147483647, %v4489
    %v4492 = vcvt.s32.f32 %v4485
    %v4493 = vmul.f32 %v4492, %v4490
    %v4494 = vxor.u32 %v4493, 2147483648
    %v4495 = vsel %vm4374, %v4494, %v4493
    %v4496 = vsub.s32 4, %v4472
    %v4497 = vsel %vm4374, %v4496, %v4472
    %v4498 = vsel %vm4373, %v2943, %v4495
    %v4499 = vsel %vm4373, 0, %v4497
    %v4500 = vmul.f32 %v4498, %v4498
    %v4501 = vmul.f32 %v4500, -0.001358992
    %v4502 = vadd.f32 %v4501, 0.041655596
    %v4503 = vmul.f32 %v4500, %v4502
    %v4504 = vadd.f32 %v4503, -0.4999988
    %v4505 = vmul.f32 %v4500, %v4504
    %v4506 = vadd.f32 1.0, %v4505
    %v4507 = vmul.f32 %v4498, %v4498
    %v4508 = vmul.f32 %v4507, -0.00019511016
    %v4509 = vadd.f32 %v4508, 0.008332121
    %v4510 = vmul.f32 %v4507, %v4509
    %v4511 = vadd.f32 %v4510, -0.16666654
    %v4512 = vmul.f32 %v4507, %v4511
    %v4513 = vadd.f32 %v4512, 1.0
    %v4514 = vmul.f32 %v4513, %v4498
    %vm4515 = vweird.f32 %v2943
    %v4516 = vand.u32 %v4499, 3
    %vm4517 = vcmp.lt.s32.totalorder %v4516, 2
    %vm4518 = vcmp.eq.s32.totalorder %v4516, 0
    %v4519 = vxor.u32 %v4514, 2147483648
    %v4520 = vsel %vm4518, %v4506, %v4519
    %vm4521 = vcmp.eq.s32.totalorder %v4516, 2
    %v4522 = vxor.u32 %v4506, 2147483648
    %v4523 = vsel %vm4521, %v4522, %v4514
    %v4524 = vsel %vm4517, %v4520, %v4523
    %v4525 = vsel %vm4515, nan, %v4524
    %4528 = vrot.lane.b32.xlu0 %v4371, 66
    %v4529 = vpop.permute.xlu0 %4528
    %4530 = vrot.lane.b32.xlu0 %v4525, 66
    %v4531 = vpop.permute.xlu0 %4530
    %v4534 = vmul.f32 %v4214, %v4529
    %v4535 = vmul.f32 %v4215, %v4529
    %v4536 = vmul.f32 %v4216, %v4531
    %v4537 = vmul.f32 %v4217, %v4531
    %v4538 = vand.u32 2147483647, %v2942
    %vm4539 = vcmp.le.f32.partialorder %v4538, 0.7853982
    %vm4540 = vcmp.lt.s32.totalorder %v2942, 0
    %v4541 = vand.u32 %v2942, 2139095040
    %v4542 = vshrl.u32 %v4541, 23
    %v4543 = vsub.s32 %v4542, 127
    %v4544 = vand.u32 2147483647, %v2942
    %v4545 = vand.u32 %v4544, 8388607
    %v4546 = vor.u32 %v4545, 8388608
    %v4547 = vsub.s32 0, %v4546
    %v4548 = vadd.s32 %v4543, 1
    %vm4549 = vcmp.gt.s32.totalorder %v4548, 0
    %v4550 = vsel %vm4549, %v4548, 0
    %v4551 = vshrl.u32 %v4550, 5
    %v4552 = vand.u32 %v4550, 31
    %v4553 = vsub.s32 32, %v4552
    %v4554 = vshrl.u32 683565275, %v4553
    %v4555 = vshll.u32 683565275, %v4552
    %v4556 = vshrl.u32 2475754826, %v4553
    %v4557 = vor.u32 %v4555, %v4556
    %v4558 = vshll.u32 2475754826, %v4552
    %v4559 = vshrl.u32 2131351028, %v4553
    %v4560 = vor.u32 %v4558, %v4559
    %v4561 = vshll.u32 2131351028, %v4552
    %v4562 = vshrl.u32 2102212464, %v4553
    %v4563 = vor.u32 %v4561, %v4562
    %v4564 = vshll.u32 2102212464, %v4552
    %v4565 = vshrl.u32 920167782, %v4553
    %v4566 = vor.u32 %v4564, %v4565
    %v4567 = vshll.u32 920167782, %v4552
    %v4568 = vshrl.u32 1326507024, %v4553
    %v4569 = vor.u32 %v4567, %v4568
    %vm4570 = vcmp.lt.s32.totalorder %v4551, 1
    %vm4571 = vcmp.lt.s32.totalorder %v4551, 2
    %vm4572 = vcmp.lt.s32.totalorder %v4551, 3
    %vm4573 = vcmp.lt.s32.totalorder %v4551, 4
    %v4574 = vsel %vm4570, %v4554, %v4557
    %v4575 = vsel %vm4573, %v4563, 2102212464
    %v4576 = vsel %vm4572, %v4560, %v4575
    %v4577 = vsel %vm4571, %v4574, %v4576
    %v4578 = vsel %vm4570, %v4557, %v4560
    %v4579 = vsel %vm4573, %v4566, 920167782
    %v4580 = vsel %vm4572, %v4563, %v4579
    %v4581 = vsel %vm4571, %v4578, %v4580
    %v4582 = vsel %vm4570, %v4560, %v4563
    %v4583 = vsel %vm4573, %v4569, 1326507024
    %v4584 = vsel %vm4572, %v4566, %v4583
    %v4585 = vsel %vm4571, %v4582, %v4584
    %v4586 = vshll.u32 %v4546, 8
    %v4587 = vand.u32 %v4586, 65535
    %v4588 = vshrl.u32 %v4586, 16
    %v4589 = vand.u32 %v4585, 65535
    %v4590 = vshrl.u32 %v4585, 16
    %v4591 = vmul.u32 %v4587, %v4589
    %v4592 = vmul.u32 %v4587, %v4590
    %v4593 = vmul.u32 %v4588, %v4589
    %v4594 = vmul.u32 %v4588, %v4590
    %v4595 = vshll.u32 %v4592, 16
    %v4596 = vshrl.u32 %v4592, 16
    %v4597 = vshll.u32 %v4593, 16
    %v4598 = vshrl.u32 %v4593, 16
    %vm4599 = vc.u32 %v4591, %v4595
    %v4600 = vsel %vm4599, 1, 0
    %v4601 = vadd.s32 %v4591, %v4595
    %v4602 = vadd.s32 %v4594, %v4600
    %vm4603 = vc.u32 %v4601, %v4597
    %v4604 = vsel %vm4603, 1, 0
    %v4605 = vadd.s32 %v4601, %v4597
    %v4606 = vadd.s32 %v4602, %v4604
    %v4607 = vadd.s32 %v4606, %v4596
    %v4608 = vadd.s32 %v4607, %v4598
    %v4609 = vand.u32 %v4586, 65535
    %v4610 = vshrl.u32 %v4586, 16
    %v4611 = vand.u32 %v4581, 65535
    %v4612 = vshrl.u32 %v4581, 16
    %v4613 = vmul.u32 %v4609, %v4611
    %v4614 = vmul.u32 %v4609, %v4612
    %v4615 = vmul.u32 %v4610, %v4611
    %v4616 = vmul.u32 %v4610, %v4612
    %v4617 = vshll.u32 %v4614, 16
    %v4618 = vshrl.u32 %v4614, 16
    %v4619 = vshll.u32 %v4615, 16
    %v4620 = vshrl.u32 %v4615, 16
    %vm4621 = vc.u32 %v4613, %v4617
    %v4622 = vsel %vm4621, 1, 0
    %v4623 = vadd.s32 %v4613, %v4617
    %v4624 = vadd.s32 %v4616, %v4622
    %vm4625 = vc.u32 %v4623, %v4619
    %v4626 = vsel %vm4625, 1, 0
    %v4627 = vadd.s32 %v4623, %v4619
    %v4628 = vadd.s32 %v4624, %v4626
    %v4629 = vadd.s32 %v4628, %v4618
    %v4630 = vadd.s32 %v4629, %v4620
    %v4631 = vmul.u32 %v4586, %v4577
    %v4632 = vadd.s32 %v4608, %v4627
    %vm4633 = vc.u32 %v4608, %v4627
    %v4634 = vadd.s32 %v4630, 1
    %v4635 = vsel %vm4633, %v4634, %v4630
    %v4636 = vadd.s32 %v4631, %v4635
    %v4637 = vadd.s32 %v4636, 536870912
    %v4638 = vshrl.u32 %v4637, 30
    %v4639 = vshll.u32 %v4638, 30
    %v4640 = vsub.s32 %v4636, %v4639
    %vm4641 = vcmp.lt.s32.totalorder %v4640, 0
    %v4642 = vsub.s32 0, %v4640
    %v4643 = vsel %vm4641, %v4642, %v4640
    %v4644 = vclz %v4643
    %v4645 = vsub.s32 %v4644, 2
    %vm4646 = vcmp.gt.s32.totalorder 0, %v4645
    %v4647 = vsel %vm4646, 0, %v4645
    %v4648 = vsub.s32 32, %v4647
    %v4649 = vshll.u32 %v4640, %v4647
    %v4650 = vshrl.u32 %v4632, %v4648
    %v4651 = vor.u32 %v4649, %v4650
    %v4652 = vsub.s32 4294967266, %v4647
    %v4653 = vadd.s32 %v4652, 127
    %v4654 = vshll.u32 %v4653, 23
    %v4655 = vor.u32 4788187, %v4654
    %v4656 = vand.u32 2147483647, %v4655
    %v4658 = vcvt.s32.f32 %v4651
    %v4659 = vmul.f32 %v4658, %v4656
    %v4660 = vxor.u32 %v4659, 2147483648
    %v4661 = vsel %vm4540, %v4660, %v4659
    %v4662 = vsub.s32 4, %v4638
    %v4663 = vsel %vm4540, %v4662, %v4638
    %v4664 = vsel %vm4539, %v2942, %v4661
    %v4665 = vsel %vm4539, 0, %v4663
    %v4666 = vmul.f32 %v4664, %v4664
    %v4667 = vmul.f32 %v4666, -0.001358992
    %v4668 = vadd.f32 %v4667, 0.041655596
    %v4669 = vmul.f32 %v4666, %v4668
    %v4670 = vadd.f32 %v4669, -0.4999988
    %v4671 = vmul.f32 %v4666, %v4670
    %v4672 = vadd.f32 1.0, %v4671
    %v4673 = vmul.f32 %v4664, %v4664
    %v4674 = vmul.f32 %v4673, -0.00019511016
    %v4675 = vadd.f32 %v4674, 0.008332121
    %v4676 = vmul.f32 %v4673, %v4675
    %v4677 = vadd.f32 %v4676, -0.16666654
    %v4678 = vmul.f32 %v4673, %v4677
    %v4679 = vadd.f32 %v4678, 1.0
    %v4680 = vmul.f32 %v4679, %v4664
    %vm4681 = vweird.f32 %v2942
    %v4682 = vadd.s32 %v4665, 3
    %v4683 = vand.u32 %v4682, 3
    %vm4684 = vcmp.lt.s32.totalorder %v4683, 2
    %vm4685 = vcmp.eq.s32.totalorder %v4683, 0
    %v4686 = vxor.u32 %v4680, 2147483648
    %v4687 = vsel %vm4685, %v4672, %v4686
    %vm4688 = vcmp.eq.s32.totalorder %v4683, 2
    %v4689 = vxor.u32 %v4672, 2147483648
    %v4690 = vsel %vm4688, %v4689, %v4680
    %v4691 = vsel %vm4684, %v4687, %v4690
    %v4692 = vsel %vm4681, nan, %v4691
    %v4693 = vand.u32 2147483647, %v2943
    %vm4694 = vcmp.le.f32.partialorder %v4693, 0.7853982
    %vm4695 = vcmp.lt.s32.totalorder %v2943, 0
    %v4696 = vand.u32 %v2943, 2139095040
    %v4697 = vshrl.u32 %v4696, 23
    %v4698 = vsub.s32 %v4697, 127
    %v4699 = vand.u32 2147483647, %v2943
    %v4700 = vand.u32 %v4699, 8388607
    %v4701 = vor.u32 %v4700, 8388608
    %v4702 = vsub.s32 0, %v4701
    %v4703 = vadd.s32 %v4698, 1
    %vm4704 = vcmp.gt.s32.totalorder %v4703, 0
    %v4705 = vsel %vm4704, %v4703, 0
    %v4706 = vshrl.u32 %v4705, 5
    %v4707 = vand.u32 %v4705, 31
    %v4708 = vsub.s32 32, %v4707
    %v4709 = vshrl.u32 683565275, %v4708
    %v4710 = vshll.u32 683565275, %v4707
    %v4711 = vshrl.u32 2475754826, %v4708
    %v4712 = vor.u32 %v4710, %v4711
    %v4713 = vshll.u32 2475754826, %v4707
    %v4714 = vshrl.u32 2131351028, %v4708
    %v4715 = vor.u32 %v4713, %v4714
    %v4716 = vshll.u32 2131351028, %v4707
    %v4717 = vshrl.u32 2102212464, %v4708
    %v4718 = vor.u32 %v4716, %v4717
    %v4719 = vshll.u32 2102212464, %v4707
    %v4720 = vshrl.u32 920167782, %v4708
    %v4721 = vor.u32 %v4719, %v4720
    %v4722 = vshll.u32 920167782, %v4707
    %v4723 = vshrl.u32 1326507024, %v4708
    %v4724 = vor.u32 %v4722, %v4723
    %vm4725 = vcmp.lt.s32.totalorder %v4706, 1
    %vm4726 = vcmp.lt.s32.totalorder %v4706, 2
    %vm4727 = vcmp.lt.s32.totalorder %v4706, 3
    %vm4728 = vcmp.lt.s32.totalorder %v4706, 4
    %v4729 = vsel %vm4725, %v4709, %v4712
    %v4730 = vsel %vm4728, %v4718, 2102212464
    %v4731 = vsel %vm4727, %v4715, %v4730
    %v4732 = vsel %vm4726, %v4729, %v4731
    %v4733 = vsel %vm4725, %v4712, %v4715
    %v4734 = vsel %vm4728, %v4721, 920167782
    %v4735 = vsel %vm4727, %v4718, %v4734
    %v4736 = vsel %vm4726, %v4733, %v4735
    %v4737 = vsel %vm4725, %v4715, %v4718
    %v4738 = vsel %vm4728, %v4724, 1326507024
    %v4739 = vsel %vm4727, %v4721, %v4738
    %v4740 = vsel %vm4726, %v4737, %v4739
    %v4741 = vshll.u32 %v4701, 8
    %v4742 = vand.u32 %v4741, 65535
    %v4743 = vshrl.u32 %v4741, 16
    %v4744 = vand.u32 %v4740, 65535
    %v4745 = vshrl.u32 %v4740, 16
    %v4746 = vmul.u32 %v4742, %v4744
    %v4747 = vmul.u32 %v4742, %v4745
    %v4748 = vmul.u32 %v4743, %v4744
    %v4749 = vmul.u32 %v4743, %v4745
    %v4750 = vshll.u32 %v4747, 16
    %v4751 = vshrl.u32 %v4747, 16
    %v4752 = vshll.u32 %v4748, 16
    %v4753 = vshrl.u32 %v4748, 16
    %vm4754 = vc.u32 %v4746, %v4750
    %v4755 = vsel %vm4754, 1, 0
    %v4756 = vadd.s32 %v4746, %v4750
    %v4757 = vadd.s32 %v4749, %v4755
    %vm4758 = vc.u32 %v4756, %v4752
    %v4759 = vsel %vm4758, 1, 0
    %v4760 = vadd.s32 %v4756, %v4752
    %v4761 = vadd.s32 %v4757, %v4759
    %v4762 = vadd.s32 %v4761, %v4751
    %v4763 = vadd.s32 %v4762, %v4753
    %v4764 = vand.u32 %v4741, 65535
    %v4765 = vshrl.u32 %v4741, 16
    %v4766 = vand.u32 %v4736, 65535
    %v4767 = vshrl.u32 %v4736, 16
    %v4768 = vmul.u32 %v4764, %v4766
    %v4769 = vmul.u32 %v4764, %v4767
    %v4770 = vmul.u32 %v4765, %v4766
    %v4771 = vmul.u32 %v4765, %v4767
    %v4772 = vshll.u32 %v4769, 16
    %v4773 = vshrl.u32 %v4769, 16
    %v4774 = vshll.u32 %v4770, 16
    %v4775 = vshrl.u32 %v4770, 16
    %vm4776 = vc.u32 %v4768, %v4772
    %v4777 = vsel %vm4776, 1, 0
    %v4778 = vadd.s32 %v4768, %v4772
    %v4779 = vadd.s32 %v4771, %v4777
    %vm4780 = vc.u32 %v4778, %v4774
    %v4781 = vsel %vm4780, 1, 0
    %v4782 = vadd.s32 %v4778, %v4774
    %v4783 = vadd.s32 %v4779, %v4781
    %v4784 = vadd.s32 %v4783, %v4773
    %v4785 = vadd.s32 %v4784, %v4775
    %v4786 = vmul.u32 %v4741, %v4732
    %v4787 = vadd.s32 %v4763, %v4782
    %vm4788 = vc.u32 %v4763, %v4782
    %v4789 = vadd.s32 %v4785, 1
    %v4790 = vsel %vm4788, %v4789, %v4785
    %v4791 = vadd.s32 %v4786, %v4790
    %v4792 = vadd.s32 %v4791, 536870912
    %v4793 = vshrl.u32 %v4792, 30
    %v4794 = vshll.u32 %v4793, 30
    %v4795 = vsub.s32 %v4791, %v4794
    %vm4796 = vcmp.lt.s32.totalorder %v4795, 0
    %v4797 = vsub.s32 0, %v4795
    %v4798 = vsel %vm4796, %v4797, %v4795
    %v4799 = vclz %v4798
    %v4800 = vsub.s32 %v4799, 2
    %vm4801 = vcmp.gt.s32.totalorder 0, %v4800
    %v4802 = vsel %vm4801, 0, %v4800
    %v4803 = vsub.s32 32, %v4802
    %v4804 = vshll.u32 %v4795, %v4802
    %v4805 = vshrl.u32 %v4787, %v4803
    %v4806 = vor.u32 %v4804, %v4805
    %v4807 = vsub.s32 4294967266, %v4802
    %v4808 = vadd.s32 %v4807, 127
    %v4809 = vshll.u32 %v4808, 23
    %v4810 = vor.u32 4788187, %v4809
    %v4811 = vand.u32 2147483647, %v4810
    %v4813 = vcvt.s32.f32 %v4806
    %v4814 = vmul.f32 %v4813, %v4811
    %v4815 = vxor.u32 %v4814, 2147483648
    %v4816 = vsel %vm4695, %v4815, %v4814
    %v4817 = vsub.s32 4, %v4793
    %v4818 = vsel %vm4695, %v4817, %v4793
    %v4819 = vsel %vm4694, %v2943, %v4816
    %v4820 = vsel %vm4694, 0, %v4818
    %v4821 = vmul.f32 %v4819, %v4819
    %v4822 = vmul.f32 %v4821, -0.001358992
    %v4823 = vadd.f32 %v4822, 0.041655596
    %v4824 = vmul.f32 %v4821, %v4823
    %v4825 = vadd.f32 %v4824, -0.4999988
    %v4826 = vmul.f32 %v4821, %v4825
    %v4827 = vadd.f32 1.0, %v4826
    %v4828 = vmul.f32 %v4819, %v4819
    %v4829 = vmul.f32 %v4828, -0.00019511016
    %v4830 = vadd.f32 %v4829, 0.008332121
    %v4831 = vmul.f32 %v4828, %v4830
    %v4832 = vadd.f32 %v4831, -0.16666654
    %v4833 = vmul.f32 %v4828, %v4832
    %v4834 = vadd.f32 %v4833, 1.0
    %v4835 = vmul.f32 %v4834, %v4819
    %vm4836 = vweird.f32 %v2943
    %v4837 = vadd.s32 %v4820, 3
    %v4838 = vand.u32 %v4837, 3
    %vm4839 = vcmp.lt.s32.totalorder %v4838, 2
    %vm4840 = vcmp.eq.s32.totalorder %v4838, 0
    %v4841 = vxor.u32 %v4835, 2147483648
    %v4842 = vsel %vm4840, %v4827, %v4841
    %vm4843 = vcmp.eq.s32.totalorder %v4838, 2
    %v4844 = vxor.u32 %v4827, 2147483648
    %v4845 = vsel %vm4843, %v4844, %v4835
    %v4846 = vsel %vm4839, %v4842, %v4845
    %v4847 = vsel %vm4836, nan, %v4846
    %4850 = vrot.lane.b32.xlu0 %v4692, 66
    %v4851 = vpop.permute.xlu0 %4850
    %4852 = vrot.lane.b32.xlu0 %v4847, 66
    %v4853 = vpop.permute.xlu0 %4852
    %v4856 = vmul.f32 %v4214, %v4851
    %v4857 = vmul.f32 %v4215, %v4851
    %v4858 = vmul.f32 %v4216, %v4853
    %v4859 = vmul.f32 %v4217, %v4853
    %v4860 = vld [vmem:[%s63] sm:$0x1]
    %v4862 = vperm.slane %v4860, 0
    %4863 = vrot.lane.b32.xlu0 %v4862, 66
    %v4864 = vpop.permute.xlu0 %4863
    %v4866 = vmul.f32 %v4534, %v4864
    %v4867 = vmul.f32 %v4535, %v4864
    %v4868 = vmul.f32 %v4536, %v4864
    %v4869 = vmul.f32 %v4537, %v4864
    %v4870 = vld [vmem:[%s65] sm:$0x1]
    %v4872 = vperm.slane %v4870, 0
    %4873 = vrot.lane.b32.xlu0 %v4872, 66
    %v4874 = vpop.permute.xlu0 %4873
    %v4876 = vmul.f32 %v4856, %v4874
    %v4877 = vmul.f32 %v4857, %v4874
    %v4878 = vmul.f32 %v4858, %v4874
    %v4879 = vmul.f32 %v4859, %v4874
    %v4880 = vsub.f32 %v4866, %v4876
    %v4881 = vsub.f32 %v4867, %v4877
    %v4882 = vsub.f32 %v4868, %v4878
    %v4883 = vsub.f32 %v4869, %v4879
    %4886 = vrot.lane.b32.xlu0 %v4880, 62
    %v4887 = vpop.permute.xlu0 %4886
    %4888 = vrot.lane.b32.xlu0 %v4882, 62
    %v4889 = vpop.permute.xlu0 %4888
    %vm4892 = vcmask 269312
    %v4893 = vsel %vm4892, %v4887, 0.0
    %4894 = vadd.xlane.f32.xlu0 %v4893
    %v4895 = vpop.xlane.xlu0 %4894
    %v4896 = vsel %vm4892, %v4889, 0.0
    %4897 = vadd.xlane.f32.xlu0 %v4896
    %v4898 = vpop.xlane.xlu0 %4897
    %4901 = vrot.lane.b32.xlu0 %v4880, 29
    %v4902 = vpop.permute.xlu0 %4901
    %4903 = vrot.lane.b32.xlu0 %v4881, 29
    %v4904 = vpop.permute.xlu0 %4903
    %4905 = vrot.lane.b32.xlu0 %v4882, 29
    %v4906 = vpop.permute.xlu0 %4905
    %4907 = vrot.lane.b32.xlu0 %v4883, 29
    %v4908 = vpop.permute.xlu0 %4907
    %vm4909 = vcmask 236544
    %v4910 = vsel %vm4909, %v4902, %v4904
    %v4911 = vsel %vm4909, %v4906, %v4908
    %v4914 = vsel %vm4892, %v4910, 0.0
    %4915 = vadd.xlane.f32.xlu0 %v4914
    %v4916 = vpop.xlane.xlu0 %4915
    %v4917 = vsel %vm4892, %v4911, 0.0
    %4918 = vadd.xlane.f32.xlu0 %v4917
    %v4919 = vpop.xlane.xlu0 %4918
    %vm4920 = vcmask 7168
    %v4921 = vsel %vm4920, %v4895, %v4916
    %v4922 = vsel %vm4920, %v4898, %v4919
    %v4923 = vld [vmem:[%s67] sm:$0xff]
    %v4924 = vld [vmem:[%s67 + $0x8] sm:$0xff]
    %4926 = vset.pattern.permute.xlu0 0
    %4927 = vperm.xlu0 %4926, %v4923
    %v4928 = vpop.permute.xlu0 %4927
    %4931 = vset.pattern.permute.xlu0 0
    %4932 = vperm.xlu0 %4931, %v4924
    %v4933 = vpop.permute.xlu0 %4932
    %v4935 = vmul.f32 %v4921, %v4928
    %v4936 = vmul.f32 %v4922, %v4933
    %4937 = vst.msk [vmem:[%s69] sm:$0xff] %vm2789, %v4935
    %4938 = vst.msk [vmem:[%s69 + $0x8] sm:$0xff] %vm2789, %v4936
    // Predicated region
    $region202: #{neural_laplace_forward.1} parent=1 // pred_check
      _
    $region203: #{neural_laplace_forward.1} parent=1 // pred_check_branch
      %4940 = sbr.rel (0) target = $region205
    $region204: #{neural_laplace_forward.1} parent=1 // pred_region
      _
    $region205: #{neural_laplace_forward.1} parent=1 // pred_fallthru
      _
    // Predicated region
    $region206: #{neural_laplace_forward.1} parent=1 // pred_check
      _
    $region207: #{neural_laplace_forward.1} parent=1 // pred_check_branch
      %4942 = sbr.rel (0) target = $region209
    $region208: #{neural_laplace_forward.1} parent=1 // pred_region
      _
    $region209: #{neural_laplace_forward.1} parent=1 // pred_fallthru
      _
    %4943 = vsyncpa [#allocation3], 1
    %4944 = vsyncpa [#allocation5], 1
    %4945 = vsyncpa [#allocation8], 1
    %4946 = vsyncpa [#allocation11], 1
    %4947 = vsyncpa [#allocation14], 1
    %4948 = vsyncpa [#allocation17], 1
    %4949 = vsyncpa [#allocation20], 1
    %4950 = vsyncpa [#allocation23], 1
    %4951 = vsyncpa [#allocation26], 1

</llo_original>
